<compile_context>
chip_gen: v7x
topology: tpu7x:2x2x1
jax: 0.10.0
libtpu: 0.0.40
codegen_flags: <defaults>
</compile_context>

<pallas_src>
import functools

import jax
import jax.numpy as jnp
from jax.experimental import pallas as pl
from jax.experimental.pallas import tpu as pltpu

NUM_ATT = 26      # reference module hard-codes 26 in the classifier (ignores num_att kwarg)
FEAT_C = 2048
POOL_HW = 7       # avg_pool2d kernel size (7, 7)


# --------------------------------------------------------------------------- kernels

def _infer_kernel(x_ref, w_ref, b_ref, out_ref, *, inv_hw):
    # x_ref: (TB, HW, C) streamed block; w_ref: (C, A) resident; b_ref: (1, A); out_ref: (TB, A)
    # avg_pool2d(7,7) on a 7x7 map == mean over the HW (sublane) axis; cast folded into reduce.
    pooled = jnp.sum(x_ref[...], axis=1, dtype=jnp.float32) * inv_hw            # (TB, C) f32
    # 1x1 conv on a 1x1 spatial map == dense matmul + bias (MXU, f32 accumulation).
    logits = jnp.dot(pooled.astype(w_ref.dtype), w_ref[...],
                     preferred_element_type=jnp.float32)
    out_ref[...] = (logits + b_ref[...]).astype(out_ref.dtype)


def _dropout_kernel(x_ref, bits_ref, w_ref, b_ref, out_ref, *,
                    inv_hw, threshold, keep_scale):
    # Same as _infer_kernel plus inverted dropout on the pooled features.
    pooled = jnp.sum(x_ref[...], axis=1, dtype=jnp.float32) * inv_hw            # (TB, C) f32
    # Integer threshold compare on pre-generated uniform bits (no float convert / no in-kernel PRNG).
    keep = bits_ref[...] >= threshold                                           # (TB, C) bool
    pooled = jnp.where(keep, pooled * keep_scale, 0.0)
    logits = jnp.dot(pooled.astype(w_ref.dtype), w_ref[...],
                     preferred_element_type=jnp.float32)
    out_ref[...] = (logits + b_ref[...]).astype(out_ref.dtype)


# --------------------------------------------------------------------------- dropout bits

def _dropout_threshold(p):
    # bits are uniform int32; u = (bits + 2^31) / 2^32 in [0,1); drop iff u < p
    #   <=> bits < p*2^32 - 2^31  => keep iff bits >= threshold.
    t = int(round(float(p) * (1 << 32))) - (1 << 31)
    return int(max(-(1 << 31), min((1 << 31) - 1, t)))


def _dropout_bits(rng, n_rows, n_cols):
    # Host-side (well, XLA-side) uniform bits; reinterpreted as int32 for a signed in-kernel compare.
    # TODO(synk): bitwise parity with torch's RNG stream is impossible by construction.
    u = jax.random.bits(rng, (n_rows, n_cols), dtype=jnp.uint32)
    return jax.lax.bitcast_convert_type(u, jnp.int32)


# --------------------------------------------------------------------------- tiling

def _padded_rows(rows, itemsize):
    # Sublane padding: f32 -> multiple of 8, bf16 -> multiple of 16 (sublane packing).
    mult = 8 * max(1, 4 // int(itemsize))
    return ((rows + mult - 1) // mult) * mult


def _pick_batch_tile(B, requested, hw, c, x_dtype, vmem_limit_bytes):
    """Derive TB from the *padded* VMEM footprint so the double-buffered block always fits."""
    itemsize = int(jnp.zeros((), x_dtype).dtype.itemsize)
    per_sample = _padded_rows(hw, itemsize) * c * itemsize + c * 4   # + dropout-bits row margin
    resident = 2 * FEAT_C * 128 * 4 + (256 << 10)                    # padded weight slots + bias/out
    budget = int(0.75 * vmem_limit_bytes)                            # compiler-scratch headroom
    max_tb = max(8, (budget - resident) // (2 * per_sample))
    tb = min(int(requested), int(max_tb))
    if B <= tb:
        return B                         # block dim == full array dim: always legal
    return max(8, (tb // 8) * 8)         # multiple of 8 for sublane-aligned output blocks


# --------------------------------------------------------------------------- wrapper

def deepmar_head(feat, conv_w, conv_b, *, data_format="NCHW",
                 drop_pool5=True, drop_pool5_rate=0.5, training=False,
                 dropout_rng=None, batch_tile=None, vmem_limit_bytes=56 << 20,
                 x_buffers=2):
    """DeepMAR head forward.

    feat: (B, 2048, 7, 7) NCHW (PyTorch parity) or (B, 7, 7, 2048) NHWC (preferred, no transpose).
    conv_w: (26, 2048, 1, 1); conv_b: (26,). Returns (B, 26) f32 logits.
    """
    if data_format == "NCHW":
        B, C, H, W = feat.shape
        # TODO(synk): extra XLA transpose pass purely for PyTorch-layout parity; a JAX backbone
        # should emit NHWC directly so this is free.
        x = jnp.transpose(feat, (0, 2, 3, 1))
    elif data_format == "NHWC":
        B, H, W, C = feat.shape
        x = feat
    else:
        raise ValueError(f"bad data_format: {data_format}")
    assert C == FEAT_C and H == POOL_HW and W == POOL_HW, (feat.shape,)
    HW = H * W
    x = x.reshape(B, HW, C)                                  # free view on the NHWC layout

    # Tiny classifier params: (2048, 26) weight in the streamed dtype (bf16 MXU path when input
    # is bf16), bias in f32. Constant index maps keep them VMEM-resident across grid steps.
    w = jnp.transpose(conv_w.reshape(NUM_ATT, FEAT_C), (1, 0)).astype(x.dtype)   # (C, A)
    b = conv_b.reshape(1, NUM_ATT).astype(jnp.float32)

    requested = 64 if batch_tile is None else batch_tile
    TB = _pick_batch_tile(B, requested, HW, C, x.dtype, vmem_limit_bytes)
    grid = (pl.cdiv(B, TB),)

    x_spec_kwargs = {}
    if x_buffers != 2:
        # Optional deeper pipelining on the streamed input only (useful on v7x once VMEM allows).
        x_spec_kwargs["pipeline_mode"] = pl.Buffered(x_buffers)
    x_spec = pl.BlockSpec((TB, HW, C), lambda i: (i, 0, 0), **x_spec_kwargs)
    w_spec = pl.BlockSpec((FEAT_C, NUM_ATT), lambda i: (0, 0))   # constant -> one DMA total
    b_spec = pl.BlockSpec((1, NUM_ATT), lambda i: (0, 0))
    out_spec = pl.BlockSpec((TB, NUM_ATT), lambda i: (i, 0))

    compiler_params = pltpu.CompilerParams(
        dimension_semantics=("parallel",),        # megacore-shard batch tiles across TCs
        vmem_limit_bytes=int(vmem_limit_bytes),
    )
    inv_hw = 1.0 / float(HW)
    use_dropout = bool(training and drop_pool5 and drop_pool5_rate > 0.0)

    if not use_dropout:
        kernel = functools.partial(_infer_kernel, inv_hw=inv_hw)
        return pl.pallas_call(
            kernel,
            out_shape=jax.ShapeDtypeStruct((B, NUM_ATT), jnp.float32),
            grid=grid,
            in_specs=[x_spec, w_spec, b_spec],
            out_specs=out_spec,
            compiler_params=compiler_params,
        )(x, w, b)

    if dropout_rng is None:
        dropout_rng = jax.random.PRNGKey(0)
    bits = _dropout_bits(dropout_rng, B, C)                       # (B, 2048) int32
    kernel = functools.partial(
        _dropout_kernel, inv_hw=inv_hw,
        threshold=_dropout_threshold(drop_pool5_rate),
        keep_scale=1.0 / (1.0 - float(drop_pool5_rate)),
    )
    bits_spec = pl.BlockSpec((TB, C), lambda i: (i, 0))
    return pl.pallas_call(
        kernel,
        out_shape=jax.ShapeDtypeStruct((B, NUM_ATT), jnp.float32),
        grid=grid,
        in_specs=[x_spec, bits_spec, w_spec, b_spec],
        out_specs=out_spec,
        compiler_params=compiler_params,
    )(x, bits, w, b)


# --------------------------------------------------------------------------- demo / checks

if __name__ == "__main__":
    key = jax.random.PRNGKey(0)
    k_feat, k_w, k_drop = jax.random.split(key, 3)

    # Channels / spatial are fixed by the module (2048, 7x7); batch kept small but > batch_tile
    # so the batch-tiled grid path (grid=(2,)) is exercised.
    B = 16
    feat_nchw = jax.random.normal(k_feat, (B, FEAT_C, POOL_HW, POOL_HW), dtype=jnp.float32)

    # Parameter init mirroring the module's __init__:
    #   init.normal_(classifier.weight, std=0.001); init.constant_(classifier.bias, 0)
    conv_w = 0.001 * jax.random.normal(k_w, (NUM_ATT, FEAT_C, 1, 1), dtype=jnp.float32)
    conv_b = jnp.zeros((NUM_ATT,), dtype=jnp.float32)

    # Pure-JAX reference of the module's forward (eval mode).
    pooled_ref = feat_nchw.mean(axis=(2, 3))                                 # (B, 2048)
    w2d = conv_w.reshape(NUM_ATT, FEAT_C)
    ref = pooled_ref @ w2d.T + conv_b                                        # (B, 26)

    # 1) Inference, NCHW entry, f32 streaming, batch_tile=8 -> grid=(2,).
    out = deepmar_head(feat_nchw, conv_w, conv_b, training=False, batch_tile=8)
    out = jax.block_until_ready(out)
    assert out.shape == (B, NUM_ATT), out.shape
    assert jnp.allclose(out, ref, atol=1e-5, rtol=1e-5), float(jnp.max(jnp.abs(out - ref)))

    # 2) Inference, NHWC entry (preferred, no transpose), bf16 streaming, auto batch tile.
    feat_nhwc_bf16 = jnp.transpose(feat_nchw, (0, 2, 3, 1)).astype(jnp.bfloat16)
    out_bf16 = deepmar_head(feat_nhwc_bf16, conv_w, conv_b, data_format="NHWC", training=False)
    out_bf16 = jax.block_until_ready(out_bf16)
    assert out_bf16.shape == (B, NUM_ATT)
    assert jnp.allclose(out_bf16, ref, atol=3e-3, rtol=5e-2), \
        float(jnp.max(jnp.abs(out_bf16 - ref)))

    # 3) Training mode: deterministic check against the same wrapper-generated dropout bits.
    p = 0.5
    out_tr = deepmar_head(feat_nchw, conv_w, conv_b, training=True,
                          drop_pool5_rate=p, dropout_rng=k_drop, batch_tile=8)
    out_tr = jax.block_until_ready(out_tr)
    keep = _dropout_bits(k_drop, B, FEAT_C) >= _dropout_threshold(p)
    ref_tr = jnp.where(keep, pooled_ref / (1.0 - p), 0.0) @ w2d.T + conv_b
    assert out_tr.shape == (B, NUM_ATT)
    assert jnp.allclose(out_tr, ref_tr, atol=1e-5, rtol=1e-5), \
        float(jnp.max(jnp.abs(out_tr - ref_tr)))

    print("KERNEL_OK")
</pallas_src>

<mosaic_0001>
module attributes {stable_mosaic.version = 11 : i64} {
  func.func @_infer_kernel(%arg0: i32, %arg1: memref<8x49x2048xf32, #tpu.memory_space<vmem>>, %arg2: memref<2048x26xf32, #tpu.memory_space<vmem>>, %arg3: memref<1x26xf32, #tpu.memory_space<vmem>>, %arg4: memref<8x26xf32, #tpu.memory_space<vmem>>) attributes {dimension_semantics = [#tpu.dimension_semantics<parallel>], iteration_bounds = array<i64: 2>, scalar_prefetch = 0 : i64, scratch_operands = 0 : i64, tpu.core_type = #tpu.core_type<tc>, window_params = [{transform_indices = @transform_0, window_bounds = array<i64: 8, 49, 2048>}, {pipeline_mode = #tpu.pipeline_mode<synchronous>, transform_indices = @transform_1, window_bounds = array<i64: 2048, 26>}, {pipeline_mode = #tpu.pipeline_mode<synchronous>, transform_indices = @transform_2, window_bounds = array<i64: 1, 26>}, {transform_indices = @transform_3, window_bounds = array<i64: 8, 26>}]} {
    %c0 = arith.constant 0 : index
    %c0_0 = arith.constant 0 : index
    %c0_1 = arith.constant 0 : index
    %0 = vector.load %arg1[%c0, %c0_0, %c0_1] : memref<8x49x2048xf32, #tpu.memory_space<vmem>>, vector<8x49x2048xf32>
    %cst = arith.constant dense<0.000000e+00> : vector<8x2048xf32>
    %1 = vector.multi_reduction <add>, %0, %cst [1] : vector<8x49x2048xf32> to vector<8x2048xf32>
    %cst_2 = arith.constant 0.0204081628 : f32
    %2 = vector.broadcast %cst_2 : f32 to vector<8x2048xf32>
    %3 = arith.mulf %1, %2 : vector<8x2048xf32>
    %c0_3 = arith.constant 0 : index
    %c0_4 = arith.constant 0 : index
    %4 = vector.load %arg2[%c0_3, %c0_4] : memref<2048x26xf32, #tpu.memory_space<vmem>>, vector<2048x26xf32>
    %cst_5 = arith.constant dense<0.000000e+00> : vector<8x26xf32>
    %5 = tpu.matmul %3, %4, %cst_5 {dimension_numbers = #tpu.dot_dimension_numbers<[1], [0], [0], [1], [0, 0, 1, 1], [], []>} : vector<8x2048xf32>, vector<2048x26xf32>, vector<8x26xf32> -> vector<8x26xf32>
    %c0_6 = arith.constant 0 : index
    %c0_7 = arith.constant 0 : index
    %6 = vector.load %arg3[%c0_6, %c0_7] : memref<1x26xf32, #tpu.memory_space<vmem>>, vector<1x26xf32>
    %7 = vector.broadcast %6 : vector<1x26xf32> to vector<8x26xf32>
    %8 = arith.addf %5, %7 : vector<8x26xf32>
    %c0_8 = arith.constant 0 : index
    %c0_9 = arith.constant 0 : index
    %9 = vector.load %arg4[%c0_8, %c0_9] : memref<8x26xf32, #tpu.memory_space<vmem>>, vector<8x26xf32>
    tpu.vector_store %arg4[%c0_8, %c0_9], %8 {strides = array<i32>} : memref<8x26xf32, #tpu.memory_space<vmem>>, vector<8x26xf32>,
    return
  }
  func.func @transform_0(%arg0: i32) -> (i32, i32, i32) {
    %c0_i32 = arith.constant 0 : i32
    %c0_i32_0 = arith.constant 0 : i32
    %c0_i32_1 = arith.constant 0 : i32
    return %arg0, %c0_i32, %c0_i32_0 : i32, i32, i32
  }
  func.func @transform_1(%arg0: i32) -> (i32, i32) {
    %c0_i32 = arith.constant 0 : i32
    %c0_i32_0 = arith.constant 0 : i32
    %c0_i32_1 = arith.constant 0 : i32
    return %c0_i32, %c0_i32_0 : i32, i32
  }
  func.func @transform_2(%arg0: i32) -> (i32, i32) {
    %c0_i32 = arith.constant 0 : i32
    %c0_i32_0 = arith.constant 0 : i32
    %c0_i32_1 = arith.constant 0 : i32
    return %c0_i32, %c0_i32_0 : i32, i32
  }
  func.func @transform_3(%arg0: i32) -> (i32, i32) {
    %c0_i32 = arith.constant 0 : i32
    %c0_i32_0 = arith.constant 0 : i32
    return %arg0, %c0_i32 : i32, i32
  }
}

</mosaic_0001>

<llo_original>
// kernel: tpu_custom_call.1
$region0: #{tpu_custom_call.1}
  #allocation0 [shape = 'u32[]', space=smem, size = 0x4, offset = 0x4, fixed_abs, tag = 'smem constant byte address 0x4 - core index']
  #allocation1 [shape = 'u32[144,128]{1,0:T(1,128)}', space=vmem, size = 0x12000, scoped, tag = 'internal scratch']
  %s0 = inlined_call_operand.vmem [shape: f32[16,49,2048], index: 0, kind: input, shape index: {}]
  %s1 = inlined_call_operand.vmem [shape: f32[2048,26], index: 1, kind: input, shape index: {}]
  %s2 = inlined_call_operand.hbm [shape: f32[1,26], index: 2, kind: input, shape index: {}]
  %s3 = inlined_call_operand.hbm [shape: f32[16,26], index: 3, kind: output, shape index: {}]
  %s4 = sld [smem:[#allocation0]]
  $region49: #{tpu_custom_call.1} parent=0
    _
  %s6 = ssub.s32 1, %s4
  %s7 = scalar_select 0, %s6, %s4
  $region1: #{tpu_custom_call.1} parent=0
    #allocation2 [shape = 'u8[512]{0}', space=vmem, size = 0x400, scoped, tag = 'input window, operand 2, single buffered']
    #allocation3 [shape = 's32[2]{0}', space=sflag, size = 0x8, scoped, tag = 'scoped memory for tpu_custom_call.1']
    #allocation4 [shape = 's32[2]{0}', space=sflag, size = 0x8, scoped, tag = 'scoped memory for tpu_custom_call.1']
    #allocation5 [shape = 'u8[8192]{0}', space=vmem, size = 0x2000, scoped, tag = 'output window, operand 0']
    %8 = vsyncpa [#allocation3], 0
    %9 = vsyncpa [#allocation4], 0
    %s10 = scalar_lea.sflag [#allocation4], 1
    %11 = vsyncpa %s10, 0
    loop: start=0, step=1, limit=4
    $region2: #{tpu_custom_call.1} parent=1 // loop_pre_header
      _
    $region3: #{tpu_custom_call.1} parent=1 // loop_header
      %s13 = sphi 0, %s17
      %p14 = scmp.ge.s32.totalorder %s13, 4
      %s23 = sphi 0, %s25
      %s26 = sphi 0, %s23
      %s27 = sphi 0, %s26
      %s43 = sphi 0, %s27
      %s47 = sphi 0, %s47
      %s49 = sphi 0, %s47
      %s50 = sphi 0, %s49
      %s64 = sphi 0, %s50
      %s68 = sphi 0, %s68
      %s70 = sphi 0, %s68
      %s71 = sphi 0, %s70
      %s85 = sphi 0, %s71
      %s91 = sphi 0, %s93
      %s94 = sphi 0, %s91
      %s95 = sphi 0, %s94
      %s111 = sphi 0, %s95
    $region4: #{tpu_custom_call.1} parent=1 // loop_header_branch
      %16 = sbr.rel (%p14) target = $region8
    $region5: #{tpu_custom_call.1} parent=1 // loop_body
      %s18 = ssub.s32 %s13, 1
      %s19 = ssub.s32 %s13, 2
      %s20 = sadd.s32 %s13, 1
      %s21 = ssub.s32 %s13, %s20
      %p22 = scmp.eq.s32.totalorder %s21, 0
      %s24 = sadd.s32 %s23, 1
      %s25 = scalar_select %p22, %s23, %s24
      %p28 = pneg %p22
      %p29 = scmp.eq.s32.totalorder %s13, 1
      %p30 = por %p28, %p29
      %p31 = scmp.ne.s32.totalorder %s23, %s26
      %p32 = scmp.eq.s32.totalorder %s13, 0
      %p33 = por %p31, %p32
      %p34 = scmp.ne.s32.totalorder %s23, %s26
      %p35 = scmp.eq.s32.totalorder %s18, 1
      %p36 = por %p34, %p35
      %p37 = scmp.ne.s32.totalorder %s26, %s27
      %p38 = scmp.eq.s32.totalorder %s18, 0
      %p39 = por %p37, %p38
      %p40 = scmp.ne.s32.totalorder %s26, %s27
      %p41 = scmp.eq.s32.totalorder %s19, 1
      %p42 = por %p40, %p41
      %p44 = scmp.ne.s32.totalorder %s27, %s43
      %p45 = scmp.eq.s32.totalorder %s19, 0
      %p46 = por %p44, %p45
      %s48 = sadd.s32 %s47, 1
      %p51 = scmp.eq.s32.totalorder %s13, 1
      %p52 = scmp.ne.s32.totalorder %s47, %s49
      %p53 = scmp.eq.s32.totalorder %s13, 0
      %p54 = por %p52, %p53
      %p55 = scmp.ne.s32.totalorder %s47, %s49
      %p56 = scmp.eq.s32.totalorder %s18, 1
      %p57 = por %p55, %p56
      %p58 = scmp.ne.s32.totalorder %s49, %s50
      %p59 = scmp.eq.s32.totalorder %s18, 0
      %p60 = por %p58, %p59
      %p61 = scmp.ne.s32.totalorder %s49, %s50
      %p62 = scmp.eq.s32.totalorder %s19, 1
      %p63 = por %p61, %p62
      %p65 = scmp.ne.s32.totalorder %s50, %s64
      %p66 = scmp.eq.s32.totalorder %s19, 0
      %p67 = por %p65, %p66
      %s69 = sadd.s32 %s68, 1
      %p72 = scmp.eq.s32.totalorder %s13, 1
      %p73 = scmp.ne.s32.totalorder %s68, %s70
      %p74 = scmp.eq.s32.totalorder %s13, 0
      %p75 = por %p73, %p74
      %p76 = scmp.ne.s32.totalorder %s68, %s70
      %p77 = scmp.eq.s32.totalorder %s18, 1
      %p78 = por %p76, %p77
      %p79 = scmp.ne.s32.totalorder %s70, %s71
      %p80 = scmp.eq.s32.totalorder %s18, 0
      %p81 = por %p79, %p80
      %p82 = scmp.ne.s32.totalorder %s70, %s71
      %p83 = scmp.eq.s32.totalorder %s19, 1
      %p84 = por %p82, %p83
      %p86 = scmp.ne.s32.totalorder %s71, %s85
      %p87 = scmp.eq.s32.totalorder %s19, 0
      %p88 = por %p86, %p87
      %s89 = ssub.s32 %s13, %s20
      %p90 = scmp.eq.s32.totalorder %s89, 0
      %s92 = sadd.s32 %s91, 1
      %s93 = scalar_select %p90, %s91, %s92
      %p96 = pneg %p90
      %p97 = scmp.eq.s32.totalorder %s13, 1
      %p98 = por %p96, %p97
      %p99 = scmp.ne.s32.totalorder %s91, %s94
      %p100 = scmp.eq.s32.totalorder %s13, 0
      %p101 = por %p99, %p100
      %p102 = scmp.ne.s32.totalorder %s91, %s94
      %p103 = scmp.eq.s32.totalorder %s18, 1
      %p104 = por %p102, %p103
      %p105 = scmp.ne.s32.totalorder %s94, %s95
      %p106 = scmp.eq.s32.totalorder %s18, 0
      %p107 = por %p105, %p106
      %p108 = scmp.ne.s32.totalorder %s94, %s95
      %p109 = scmp.eq.s32.totalorder %s19, 1
      %p110 = por %p108, %p109
      %p112 = scmp.ne.s32.totalorder %s95, %s111
      %p113 = scmp.eq.s32.totalorder %s19, 0
      %p114 = por %p112, %p113
      %p115 = scmp.le.s32.totalorder 1, %s13
      %p116 = scmp.lt.s32.totalorder %s13, 3
      %p117 = pnand %p115, %p116
      %p118 = pneg %p117
      // Predicated region
      $region9: #{tpu_custom_call.1} parent=5 // pred_check
        _
      $region10: #{tpu_custom_call.1} parent=5 // pred_check_branch
        %120 = sbr.rel (%p117) target = $region12
      $region11: #{tpu_custom_call.1} parent=5 // pred_region
        %s121 = ssub.s32 %s13, 1
        // Predicated region
        $region13: #{tpu_custom_call.1} parent=11 // pred_check
          %p122 = pneg %p60
        $region14: #{tpu_custom_call.1} parent=11 // pred_check_branch
          %124 = sbr.rel (%p122) target = $region16
        $region15: #{tpu_custom_call.1} parent=11 // pred_region
          _
        $region16: #{tpu_custom_call.1} parent=11 // pred_fallthru
          _
        // Predicated region
        $region17: #{tpu_custom_call.1} parent=11 // pred_check
          %p125 = pneg %p81
        $region18: #{tpu_custom_call.1} parent=11 // pred_check_branch
          %127 = sbr.rel (%p125) target = $region20
        $region19: #{tpu_custom_call.1} parent=11 // pred_region
          %s129 = ssub.s32 16, 16
          %130 = vsyncadd [#allocation3], %s129
          %s132 = sshll.u32 [#allocation2], 4
          %s133 = int_to_ptr.vmem [resolvable:$true] %s132
          %135 = dma.hbm_to_vmem [thread:$0]  %s2, 16, %s133, [#allocation3]
        $region20: #{tpu_custom_call.1} parent=11 // pred_fallthru
          _
      $region12: #{tpu_custom_call.1} parent=5 // pred_fallthru
        _
      %p136 = scmp.lt.s32.totalorder %s13, 2
      // Predicated region
      $region21: #{tpu_custom_call.1} parent=5 // pred_check
        %p137 = pneg %p136
      $region22: #{tpu_custom_call.1} parent=5 // pred_check_branch
        %139 = sbr.rel (%p137) target = $region24
      $region23: #{tpu_custom_call.1} parent=5 // pred_region
        // Predicated region
        $region25: #{tpu_custom_call.1} parent=23 // pred_check
          %p140 = pneg %p33
        $region26: #{tpu_custom_call.1} parent=23 // pred_check_branch
          %142 = sbr.rel (%p140) target = $region28
        $region27: #{tpu_custom_call.1} parent=23 // pred_region
          %s143 = smul.u32 8, %s13
          %p144 = scmp.lt.s32.totalorder %s143, 15
          %s145 = scalar_select %p144, %s143, 15
          %s146 = smul.addr %s145, 112
          %s147 = smul.addr %s146, 8
          %s148 = scalar_lea.vmem %s0, %s147
          %s149 = smul.u32 8, %s13
        $region28: #{tpu_custom_call.1} parent=23 // pred_fallthru
          _
      $region24: #{tpu_custom_call.1} parent=5 // pred_fallthru
        _
      %p150 = scmp.le.s32.totalorder 1, %s13
      %p151 = scmp.lt.s32.totalorder %s13, 3
      %p152 = pnand %p150, %p151
      %p153 = pneg %p152
      // Predicated region
      $region29: #{tpu_custom_call.1} parent=5 // pred_check
        _
      $region30: #{tpu_custom_call.1} parent=5 // pred_check_branch
        %155 = sbr.rel (%p152) target = $region32
      $region31: #{tpu_custom_call.1} parent=5 // pred_region
        %s156 = ssub.s32 %s13, 1
        // Predicated region
        $region33: #{tpu_custom_call.1} parent=31 // pred_check
          %p157 = pneg %p81
        $region34: #{tpu_custom_call.1} parent=31 // pred_check_branch
          %159 = sbr.rel (%p157) target = $region36
        $region35: #{tpu_custom_call.1} parent=31 // pred_region
          %160 = dma.done [#allocation3], 16
        $region36: #{tpu_custom_call.1} parent=31 // pred_fallthru
          _
        %s161 = smul.u32 8, %s18
        %p162 = scmp.lt.s32.totalorder %s161, 15
        %s163 = scalar_select %p162, %s161, 15
        %s164 = smul.addr %s163, 112
        %s165 = smul.addr %s164, 8
        %s166 = scalar_lea.vmem %s0, %s165
        %p167 = pneg %p39
        %p168 = pneg %p36
        %p169 = pneg %p60
        %p170 = pneg %p57
        %p171 = pneg %p81
        %p172 = pneg %p78
        %p173 = pneg %p107
        %p174 = pneg %p104
        %s175 = sand.u32 %s94, 1
        %s176 = scalar_lea.sflag [#allocation4], %s175
        %s177 = sand.u32 %s94, 1
        %s178 = smul.addr %s177, 8
        %s179 = scalar_lea.vmem [#allocation5], %s178
        %s180 = smul.u32 8, %s18
        %p181 = scmp.lt.s32.totalorder %s180, 15
        %s182 = scalar_select %p181, %s180, 15
        %s183 = smul.addr %s182, 112
        %s184 = smul.addr %s183, 8
        %s185 = scalar_lea.vmem %s0, %s184
        %s186 = smul.u32 8, %s18
        %v187 = vld [vmem:[%s185] sm:$0xff]
        %v188 = vld [vmem:[%s185 + $0x8] sm:$0xff]
        %v189 = vld [vmem:[%s185 + $0x10] sm:$0xff]
        %v190 = vld [vmem:[%s185 + $0x18] sm:$0xff]
        %v191 = vld [vmem:[%s185 + $0x20] sm:$0xff]
        %v192 = vld [vmem:[%s185 + $0x28] sm:$0xff]
        %v193 = vld [vmem:[%s185 + $0x30] sm:$0xff]
        %v194 = vld [vmem:[%s185 + $0x38] sm:$0xff]
        %v195 = vld [vmem:[%s185 + $0x40] sm:$0xff]
        %v196 = vld [vmem:[%s185 + $0x48] sm:$0xff]
        %v197 = vld [vmem:[%s185 + $0x50] sm:$0xff]
        %v198 = vld [vmem:[%s185 + $0x58] sm:$0xff]
        %v199 = vld [vmem:[%s185 + $0x60] sm:$0xff]
        %v200 = vld [vmem:[%s185 + $0x68] sm:$0xff]
        %v201 = vld [vmem:[%s185 + $0x70] sm:$0xff]
        %v202 = vld [vmem:[%s185 + $0x78] sm:$0xff]
        %v203 = vld [vmem:[%s185 + $0x80] sm:$0xff]
        %v204 = vld [vmem:[%s185 + $0x88] sm:$0xff]
        %v205 = vld [vmem:[%s185 + $0x90] sm:$0xff]
        %v206 = vld [vmem:[%s185 + $0x98] sm:$0xff]
        %v207 = vld [vmem:[%s185 + $0xa0] sm:$0xff]
        %v208 = vld [vmem:[%s185 + $0xa8] sm:$0xff]
        %v209 = vld [vmem:[%s185 + $0xb0] sm:$0xff]
        %v210 = vld [vmem:[%s185 + $0xb8] sm:$0xff]
        %v211 = vld [vmem:[%s185 + $0xc0] sm:$0xff]
        %v212 = vld [vmem:[%s185 + $0xc8] sm:$0xff]
        %v213 = vld [vmem:[%s185 + $0xd0] sm:$0xff]
        %v214 = vld [vmem:[%s185 + $0xd8] sm:$0xff]
        %v215 = vld [vmem:[%s185 + $0xe0] sm:$0xff]
        %v216 = vld [vmem:[%s185 + $0xe8] sm:$0xff]
        %v217 = vld [vmem:[%s185 + $0xf0] sm:$0xff]
        %v218 = vld [vmem:[%s185 + $0xf8] sm:$0xff]
        %v219 = vld [vmem:[%s185 + $0x100] sm:$0xff]
        %v220 = vld [vmem:[%s185 + $0x108] sm:$0xff]
        %v221 = vld [vmem:[%s185 + $0x110] sm:$0xff]
        %v222 = vld [vmem:[%s185 + $0x118] sm:$0xff]
        %v223 = vld [vmem:[%s185 + $0x120] sm:$0xff]
        %v224 = vld [vmem:[%s185 + $0x128] sm:$0xff]
        %v225 = vld [vmem:[%s185 + $0x130] sm:$0xff]
        %v226 = vld [vmem:[%s185 + $0x138] sm:$0xff]
        %v227 = vld [vmem:[%s185 + $0x140] sm:$0xff]
        %v228 = vld [vmem:[%s185 + $0x148] sm:$0xff]
        %v229 = vld [vmem:[%s185 + $0x150] sm:$0xff]
        %v230 = vld [vmem:[%s185 + $0x158] sm:$0xff]
        %v231 = vld [vmem:[%s185 + $0x160] sm:$0xff]
        %v232 = vld [vmem:[%s185 + $0x168] sm:$0xff]
        %v233 = vld [vmem:[%s185 + $0x170] sm:$0xff]
        %v234 = vld [vmem:[%s185 + $0x178] sm:$0xff]
        %v235 = vld [vmem:[%s185 + $0x180] sm:$0xff]
        %v236 = vld [vmem:[%s185 + $0x188] sm:$0xff]
        %v237 = vld [vmem:[%s185 + $0x190] sm:$0xff]
        %v238 = vld [vmem:[%s185 + $0x198] sm:$0xff]
        %v239 = vld [vmem:[%s185 + $0x1a0] sm:$0xff]
        %v240 = vld [vmem:[%s185 + $0x1a8] sm:$0xff]
        %v241 = vld [vmem:[%s185 + $0x1b0] sm:$0xff]
        %v242 = vld [vmem:[%s185 + $0x1b8] sm:$0xff]
        %v243 = vld [vmem:[%s185 + $0x1c0] sm:$0xff]
        %v244 = vld [vmem:[%s185 + $0x1c8] sm:$0xff]
        %v245 = vld [vmem:[%s185 + $0x1d0] sm:$0xff]
        %v246 = vld [vmem:[%s185 + $0x1d8] sm:$0xff]
        %v247 = vld [vmem:[%s185 + $0x1e0] sm:$0xff]
        %v248 = vld [vmem:[%s185 + $0x1e8] sm:$0xff]
        %v249 = vld [vmem:[%s185 + $0x1f0] sm:$0xff]
        %v250 = vld [vmem:[%s185 + $0x1f8] sm:$0xff]
        %v251 = vld [vmem:[%s185 + $0x200] sm:$0xff]
        %v252 = vld [vmem:[%s185 + $0x208] sm:$0xff]
        %v253 = vld [vmem:[%s185 + $0x210] sm:$0xff]
        %v254 = vld [vmem:[%s185 + $0x218] sm:$0xff]
        %v255 = vld [vmem:[%s185 + $0x220] sm:$0xff]
        %v256 = vld [vmem:[%s185 + $0x228] sm:$0xff]
        %v257 = vld [vmem:[%s185 + $0x230] sm:$0xff]
        %v258 = vld [vmem:[%s185 + $0x238] sm:$0xff]
        %v259 = vld [vmem:[%s185 + $0x240] sm:$0xff]
        %v260 = vld [vmem:[%s185 + $0x248] sm:$0xff]
        %v261 = vld [vmem:[%s185 + $0x250] sm:$0xff]
        %v262 = vld [vmem:[%s185 + $0x258] sm:$0xff]
        %v263 = vld [vmem:[%s185 + $0x260] sm:$0xff]
        %v264 = vld [vmem:[%s185 + $0x268] sm:$0xff]
        %v265 = vld [vmem:[%s185 + $0x270] sm:$0xff]
        %v266 = vld [vmem:[%s185 + $0x278] sm:$0xff]
        %v267 = vld [vmem:[%s185 + $0x280] sm:$0xff]
        %v268 = vld [vmem:[%s185 + $0x288] sm:$0xff]
        %v269 = vld [vmem:[%s185 + $0x290] sm:$0xff]
        %v270 = vld [vmem:[%s185 + $0x298] sm:$0xff]
        %v271 = vld [vmem:[%s185 + $0x2a0] sm:$0xff]
        %v272 = vld [vmem:[%s185 + $0x2a8] sm:$0xff]
        %v273 = vld [vmem:[%s185 + $0x2b0] sm:$0xff]
        %v274 = vld [vmem:[%s185 + $0x2b8] sm:$0xff]
        %v275 = vld [vmem:[%s185 + $0x2c0] sm:$0xff]
        %v276 = vld [vmem:[%s185 + $0x2c8] sm:$0xff]
        %v277 = vld [vmem:[%s185 + $0x2d0] sm:$0xff]
        %v278 = vld [vmem:[%s185 + $0x2d8] sm:$0xff]
        %v279 = vld [vmem:[%s185 + $0x2e0] sm:$0xff]
        %v280 = vld [vmem:[%s185 + $0x2e8] sm:$0xff]
        %v281 = vld [vmem:[%s185 + $0x2f0] sm:$0xff]
        %v282 = vld [vmem:[%s185 + $0x2f8] sm:$0xff]
        %v283 = vld [vmem:[%s185 + $0x300] sm:$0x1]
        %v284 = vld [vmem:[%s185 + $0x308] sm:$0x1]
        %v285 = vld [vmem:[%s185 + $0x310] sm:$0x1]
        %v286 = vld [vmem:[%s185 + $0x318] sm:$0x1]
        %v287 = vld [vmem:[%s185 + $0x320] sm:$0x1]
        %v288 = vld [vmem:[%s185 + $0x328] sm:$0x1]
        %v289 = vld [vmem:[%s185 + $0x330] sm:$0x1]
        %v290 = vld [vmem:[%s185 + $0x338] sm:$0x1]
        %v291 = vld [vmem:[%s185 + $0x340] sm:$0x1]
        %v292 = vld [vmem:[%s185 + $0x348] sm:$0x1]
        %v293 = vld [vmem:[%s185 + $0x350] sm:$0x1]
        %v294 = vld [vmem:[%s185 + $0x358] sm:$0x1]
        %v295 = vld [vmem:[%s185 + $0x360] sm:$0x1]
        %v296 = vld [vmem:[%s185 + $0x368] sm:$0x1]
        %v297 = vld [vmem:[%s185 + $0x370] sm:$0x1]
        %v298 = vld [vmem:[%s185 + $0x378] sm:$0x1]
        %v299 = vld [vmem:[%s185 + $0x380] sm:$0xff]
        %v300 = vld [vmem:[%s185 + $0x388] sm:$0xff]
        %v301 = vld [vmem:[%s185 + $0x390] sm:$0xff]
        %v302 = vld [vmem:[%s185 + $0x398] sm:$0xff]
        %v303 = vld [vmem:[%s185 + $0x3a0] sm:$0xff]
        %v304 = vld [vmem:[%s185 + $0x3a8] sm:$0xff]
        %v305 = vld [vmem:[%s185 + $0x3b0] sm:$0xff]
        %v306 = vld [vmem:[%s185 + $0x3b8] sm:$0xff]
        %v307 = vld [vmem:[%s185 + $0x3c0] sm:$0xff]
        %v308 = vld [vmem:[%s185 + $0x3c8] sm:$0xff]
        %v309 = vld [vmem:[%s185 + $0x3d0] sm:$0xff]
        %v310 = vld [vmem:[%s185 + $0x3d8] sm:$0xff]
        %v311 = vld [vmem:[%s185 + $0x3e0] sm:$0xff]
        %v312 = vld [vmem:[%s185 + $0x3e8] sm:$0xff]
        %v313 = vld [vmem:[%s185 + $0x3f0] sm:$0xff]
        %v314 = vld [vmem:[%s185 + $0x3f8] sm:$0xff]
        %v315 = vld [vmem:[%s185 + $0x400] sm:$0xff]
        %v316 = vld [vmem:[%s185 + $0x408] sm:$0xff]
        %v317 = vld [vmem:[%s185 + $0x410] sm:$0xff]
        %v318 = vld [vmem:[%s185 + $0x418] sm:$0xff]
        %v319 = vld [vmem:[%s185 + $0x420] sm:$0xff]
        %v320 = vld [vmem:[%s185 + $0x428] sm:$0xff]
        %v321 = vld [vmem:[%s185 + $0x430] sm:$0xff]
        %v322 = vld [vmem:[%s185 + $0x438] sm:$0xff]
        %v323 = vld [vmem:[%s185 + $0x440] sm:$0xff]
        %v324 = vld [vmem:[%s185 + $0x448] sm:$0xff]
        %v325 = vld [vmem:[%s185 + $0x450] sm:$0xff]
        %v326 = vld [vmem:[%s185 + $0x458] sm:$0xff]
        %v327 = vld [vmem:[%s185 + $0x460] sm:$0xff]
        %v328 = vld [vmem:[%s185 + $0x468] sm:$0xff]
        %v329 = vld [vmem:[%s185 + $0x470] sm:$0xff]
        %v330 = vld [vmem:[%s185 + $0x478] sm:$0xff]
        %v331 = vld [vmem:[%s185 + $0x480] sm:$0xff]
        %v332 = vld [vmem:[%s185 + $0x488] sm:$0xff]
        %v333 = vld [vmem:[%s185 + $0x490] sm:$0xff]
        %v334 = vld [vmem:[%s185 + $0x498] sm:$0xff]
        %v335 = vld [vmem:[%s185 + $0x4a0] sm:$0xff]
        %v336 = vld [vmem:[%s185 + $0x4a8] sm:$0xff]
        %v337 = vld [vmem:[%s185 + $0x4b0] sm:$0xff]
        %v338 = vld [vmem:[%s185 + $0x4b8] sm:$0xff]
        %v339 = vld [vmem:[%s185 + $0x4c0] sm:$0xff]
        %v340 = vld [vmem:[%s185 + $0x4c8] sm:$0xff]
        %v341 = vld [vmem:[%s185 + $0x4d0] sm:$0xff]
        %v342 = vld [vmem:[%s185 + $0x4d8] sm:$0xff]
        %v343 = vld [vmem:[%s185 + $0x4e0] sm:$0xff]
        %v344 = vld [vmem:[%s185 + $0x4e8] sm:$0xff]
        %v345 = vld [vmem:[%s185 + $0x4f0] sm:$0xff]
        %v346 = vld [vmem:[%s185 + $0x4f8] sm:$0xff]
        %v347 = vld [vmem:[%s185 + $0x500] sm:$0xff]
        %v348 = vld [vmem:[%s185 + $0x508] sm:$0xff]
        %v349 = vld [vmem:[%s185 + $0x510] sm:$0xff]
        %v350 = vld [vmem:[%s185 + $0x518] sm:$0xff]
        %v351 = vld [vmem:[%s185 + $0x520] sm:$0xff]
        %v352 = vld [vmem:[%s185 + $0x528] sm:$0xff]
        %v353 = vld [vmem:[%s185 + $0x530] sm:$0xff]
        %v354 = vld [vmem:[%s185 + $0x538] sm:$0xff]
        %v355 = vld [vmem:[%s185 + $0x540] sm:$0xff]
        %v356 = vld [vmem:[%s185 + $0x548] sm:$0xff]
        %v357 = vld [vmem:[%s185 + $0x550] sm:$0xff]
        %v358 = vld [vmem:[%s185 + $0x558] sm:$0xff]
        %v359 = vld [vmem:[%s185 + $0x560] sm:$0xff]
        %v360 = vld [vmem:[%s185 + $0x568] sm:$0xff]
        %v361 = vld [vmem:[%s185 + $0x570] sm:$0xff]
        %v362 = vld [vmem:[%s185 + $0x578] sm:$0xff]
        %v363 = vld [vmem:[%s185 + $0x580] sm:$0xff]
        %v364 = vld [vmem:[%s185 + $0x588] sm:$0xff]
        %v365 = vld [vmem:[%s185 + $0x590] sm:$0xff]
        %v366 = vld [vmem:[%s185 + $0x598] sm:$0xff]
        %v367 = vld [vmem:[%s185 + $0x5a0] sm:$0xff]
        %v368 = vld [vmem:[%s185 + $0x5a8] sm:$0xff]
        %v369 = vld [vmem:[%s185 + $0x5b0] sm:$0xff]
        %v370 = vld [vmem:[%s185 + $0x5b8] sm:$0xff]
        %v371 = vld [vmem:[%s185 + $0x5c0] sm:$0xff]
        %v372 = vld [vmem:[%s185 + $0x5c8] sm:$0xff]
        %v373 = vld [vmem:[%s185 + $0x5d0] sm:$0xff]
        %v374 = vld [vmem:[%s185 + $0x5d8] sm:$0xff]
        %v375 = vld [vmem:[%s185 + $0x5e0] sm:$0xff]
        %v376 = vld [vmem:[%s185 + $0x5e8] sm:$0xff]
        %v377 = vld [vmem:[%s185 + $0x5f0] sm:$0xff]
        %v378 = vld [vmem:[%s185 + $0x5f8] sm:$0xff]
        %v379 = vld [vmem:[%s185 + $0x600] sm:$0xff]
        %v380 = vld [vmem:[%s185 + $0x608] sm:$0xff]
        %v381 = vld [vmem:[%s185 + $0x610] sm:$0xff]
        %v382 = vld [vmem:[%s185 + $0x618] sm:$0xff]
        %v383 = vld [vmem:[%s185 + $0x620] sm:$0xff]
        %v384 = vld [vmem:[%s185 + $0x628] sm:$0xff]
        %v385 = vld [vmem:[%s185 + $0x630] sm:$0xff]
        %v386 = vld [vmem:[%s185 + $0x638] sm:$0xff]
        %v387 = vld [vmem:[%s185 + $0x640] sm:$0xff]
        %v388 = vld [vmem:[%s185 + $0x648] sm:$0xff]
        %v389 = vld [vmem:[%s185 + $0x650] sm:$0xff]
        %v390 = vld [vmem:[%s185 + $0x658] sm:$0xff]
        %v391 = vld [vmem:[%s185 + $0x660] sm:$0xff]
        %v392 = vld [vmem:[%s185 + $0x668] sm:$0xff]
        %v393 = vld [vmem:[%s185 + $0x670] sm:$0xff]
        %v394 = vld [vmem:[%s185 + $0x678] sm:$0xff]
        %v395 = vld [vmem:[%s185 + $0x680] sm:$0x1]
        %v396 = vld [vmem:[%s185 + $0x688] sm:$0x1]
        %v397 = vld [vmem:[%s185 + $0x690] sm:$0x1]
        %v398 = vld [vmem:[%s185 + $0x698] sm:$0x1]
        %v399 = vld [vmem:[%s185 + $0x6a0] sm:$0x1]
        %v400 = vld [vmem:[%s185 + $0x6a8] sm:$0x1]
        %v401 = vld [vmem:[%s185 + $0x6b0] sm:$0x1]
        %v402 = vld [vmem:[%s185 + $0x6b8] sm:$0x1]
        %v403 = vld [vmem:[%s185 + $0x6c0] sm:$0x1]
        %v404 = vld [vmem:[%s185 + $0x6c8] sm:$0x1]
        %v405 = vld [vmem:[%s185 + $0x6d0] sm:$0x1]
        %v406 = vld [vmem:[%s185 + $0x6d8] sm:$0x1]
        %v407 = vld [vmem:[%s185 + $0x6e0] sm:$0x1]
        %v408 = vld [vmem:[%s185 + $0x6e8] sm:$0x1]
        %v409 = vld [vmem:[%s185 + $0x6f0] sm:$0x1]
        %v410 = vld [vmem:[%s185 + $0x6f8] sm:$0x1]
        %v411 = vld [vmem:[%s185 + $0x700] sm:$0xff]
        %v412 = vld [vmem:[%s185 + $0x708] sm:$0xff]
        %v413 = vld [vmem:[%s185 + $0x710] sm:$0xff]
        %v414 = vld [vmem:[%s185 + $0x718] sm:$0xff]
        %v415 = vld [vmem:[%s185 + $0x720] sm:$0xff]
        %v416 = vld [vmem:[%s185 + $0x728] sm:$0xff]
        %v417 = vld [vmem:[%s185 + $0x730] sm:$0xff]
        %v418 = vld [vmem:[%s185 + $0x738] sm:$0xff]
        %v419 = vld [vmem:[%s185 + $0x740] sm:$0xff]
        %v420 = vld [vmem:[%s185 + $0x748] sm:$0xff]
        %v421 = vld [vmem:[%s185 + $0x750] sm:$0xff]
        %v422 = vld [vmem:[%s185 + $0x758] sm:$0xff]
        %v423 = vld [vmem:[%s185 + $0x760] sm:$0xff]
        %v424 = vld [vmem:[%s185 + $0x768] sm:$0xff]
        %v425 = vld [vmem:[%s185 + $0x770] sm:$0xff]
        %v426 = vld [vmem:[%s185 + $0x778] sm:$0xff]
        %v427 = vld [vmem:[%s185 + $0x780] sm:$0xff]
        %v428 = vld [vmem:[%s185 + $0x788] sm:$0xff]
        %v429 = vld [vmem:[%s185 + $0x790] sm:$0xff]
        %v430 = vld [vmem:[%s185 + $0x798] sm:$0xff]
        %v431 = vld [vmem:[%s185 + $0x7a0] sm:$0xff]
        %v432 = vld [vmem:[%s185 + $0x7a8] sm:$0xff]
        %v433 = vld [vmem:[%s185 + $0x7b0] sm:$0xff]
        %v434 = vld [vmem:[%s185 + $0x7b8] sm:$0xff]
        %v435 = vld [vmem:[%s185 + $0x7c0] sm:$0xff]
        %v436 = vld [vmem:[%s185 + $0x7c8] sm:$0xff]
        %v437 = vld [vmem:[%s185 + $0x7d0] sm:$0xff]
        %v438 = vld [vmem:[%s185 + $0x7d8] sm:$0xff]
        %v439 = vld [vmem:[%s185 + $0x7e0] sm:$0xff]
        %v440 = vld [vmem:[%s185 + $0x7e8] sm:$0xff]
        %v441 = vld [vmem:[%s185 + $0x7f0] sm:$0xff]
        %v442 = vld [vmem:[%s185 + $0x7f8] sm:$0xff]
        %v443 = vld [vmem:[%s185 + $0x800] sm:$0xff]
        %v444 = vld [vmem:[%s185 + $0x808] sm:$0xff]
        %v445 = vld [vmem:[%s185 + $0x810] sm:$0xff]
        %v446 = vld [vmem:[%s185 + $0x818] sm:$0xff]
        %v447 = vld [vmem:[%s185 + $0x820] sm:$0xff]
        %v448 = vld [vmem:[%s185 + $0x828] sm:$0xff]
        %v449 = vld [vmem:[%s185 + $0x830] sm:$0xff]
        %v450 = vld [vmem:[%s185 + $0x838] sm:$0xff]
        %v451 = vld [vmem:[%s185 + $0x840] sm:$0xff]
        %v452 = vld [vmem:[%s185 + $0x848] sm:$0xff]
        %v453 = vld [vmem:[%s185 + $0x850] sm:$0xff]
        %v454 = vld [vmem:[%s185 + $0x858] sm:$0xff]
        %v455 = vld [vmem:[%s185 + $0x860] sm:$0xff]
        %v456 = vld [vmem:[%s185 + $0x868] sm:$0xff]
        %v457 = vld [vmem:[%s185 + $0x870] sm:$0xff]
        %v458 = vld [vmem:[%s185 + $0x878] sm:$0xff]
        %v459 = vld [vmem:[%s185 + $0x880] sm:$0xff]
        %v460 = vld [vmem:[%s185 + $0x888] sm:$0xff]
        %v461 = vld [vmem:[%s185 + $0x890] sm:$0xff]
        %v462 = vld [vmem:[%s185 + $0x898] sm:$0xff]
        %v463 = vld [vmem:[%s185 + $0x8a0] sm:$0xff]
        %v464 = vld [vmem:[%s185 + $0x8a8] sm:$0xff]
        %v465 = vld [vmem:[%s185 + $0x8b0] sm:$0xff]
        %v466 = vld [vmem:[%s185 + $0x8b8] sm:$0xff]
        %v467 = vld [vmem:[%s185 + $0x8c0] sm:$0xff]
        %v468 = vld [vmem:[%s185 + $0x8c8] sm:$0xff]
        %v469 = vld [vmem:[%s185 + $0x8d0] sm:$0xff]
        %v470 = vld [vmem:[%s185 + $0x8d8] sm:$0xff]
        %v471 = vld [vmem:[%s185 + $0x8e0] sm:$0xff]
        %v472 = vld [vmem:[%s185 + $0x8e8] sm:$0xff]
        %v473 = vld [vmem:[%s185 + $0x8f0] sm:$0xff]
        %v474 = vld [vmem:[%s185 + $0x8f8] sm:$0xff]
        %v475 = vld [vmem:[%s185 + $0x900] sm:$0xff]
        %v476 = vld [vmem:[%s185 + $0x908] sm:$0xff]
        %v477 = vld [vmem:[%s185 + $0x910] sm:$0xff]
        %v478 = vld [vmem:[%s185 + $0x918] sm:$0xff]
        %v479 = vld [vmem:[%s185 + $0x920] sm:$0xff]
        %v480 = vld [vmem:[%s185 + $0x928] sm:$0xff]
        %v481 = vld [vmem:[%s185 + $0x930] sm:$0xff]
        %v482 = vld [vmem:[%s185 + $0x938] sm:$0xff]
        %v483 = vld [vmem:[%s185 + $0x940] sm:$0xff]
        %v484 = vld [vmem:[%s185 + $0x948] sm:$0xff]
        %v485 = vld [vmem:[%s185 + $0x950] sm:$0xff]
        %v486 = vld [vmem:[%s185 + $0x958] sm:$0xff]
        %v487 = vld [vmem:[%s185 + $0x960] sm:$0xff]
        %v488 = vld [vmem:[%s185 + $0x968] sm:$0xff]
        %v489 = vld [vmem:[%s185 + $0x970] sm:$0xff]
        %v490 = vld [vmem:[%s185 + $0x978] sm:$0xff]
        %v491 = vld [vmem:[%s185 + $0x980] sm:$0xff]
        %v492 = vld [vmem:[%s185 + $0x988] sm:$0xff]
        %v493 = vld [vmem:[%s185 + $0x990] sm:$0xff]
        %v494 = vld [vmem:[%s185 + $0x998] sm:$0xff]
        %v495 = vld [vmem:[%s185 + $0x9a0] sm:$0xff]
        %v496 = vld [vmem:[%s185 + $0x9a8] sm:$0xff]
        %v497 = vld [vmem:[%s185 + $0x9b0] sm:$0xff]
        %v498 = vld [vmem:[%s185 + $0x9b8] sm:$0xff]
        %v499 = vld [vmem:[%s185 + $0x9c0] sm:$0xff]
        %v500 = vld [vmem:[%s185 + $0x9c8] sm:$0xff]
        %v501 = vld [vmem:[%s185 + $0x9d0] sm:$0xff]
        %v502 = vld [vmem:[%s185 + $0x9d8] sm:$0xff]
        %v503 = vld [vmem:[%s185 + $0x9e0] sm:$0xff]
        %v504 = vld [vmem:[%s185 + $0x9e8] sm:$0xff]
        %v505 = vld [vmem:[%s185 + $0x9f0] sm:$0xff]
        %v506 = vld [vmem:[%s185 + $0x9f8] sm:$0xff]
        %v507 = vld [vmem:[%s185 + $0xa00] sm:$0x1]
        %v508 = vld [vmem:[%s185 + $0xa08] sm:$0x1]
        %v509 = vld [vmem:[%s185 + $0xa10] sm:$0x1]
        %v510 = vld [vmem:[%s185 + $0xa18] sm:$0x1]
        %v511 = vld [vmem:[%s185 + $0xa20] sm:$0x1]
        %v512 = vld [vmem:[%s185 + $0xa28] sm:$0x1]
        %v513 = vld [vmem:[%s185 + $0xa30] sm:$0x1]
        %v514 = vld [vmem:[%s185 + $0xa38] sm:$0x1]
        %v515 = vld [vmem:[%s185 + $0xa40] sm:$0x1]
        %v516 = vld [vmem:[%s185 + $0xa48] sm:$0x1]
        %v517 = vld [vmem:[%s185 + $0xa50] sm:$0x1]
        %v518 = vld [vmem:[%s185 + $0xa58] sm:$0x1]
        %v519 = vld [vmem:[%s185 + $0xa60] sm:$0x1]
        %v520 = vld [vmem:[%s185 + $0xa68] sm:$0x1]
        %v521 = vld [vmem:[%s185 + $0xa70] sm:$0x1]
        %v522 = vld [vmem:[%s185 + $0xa78] sm:$0x1]
        %v523 = vld [vmem:[%s185 + $0xa80] sm:$0xff]
        %v524 = vld [vmem:[%s185 + $0xa88] sm:$0xff]
        %v525 = vld [vmem:[%s185 + $0xa90] sm:$0xff]
        %v526 = vld [vmem:[%s185 + $0xa98] sm:$0xff]
        %v527 = vld [vmem:[%s185 + $0xaa0] sm:$0xff]
        %v528 = vld [vmem:[%s185 + $0xaa8] sm:$0xff]
        %v529 = vld [vmem:[%s185 + $0xab0] sm:$0xff]
        %v530 = vld [vmem:[%s185 + $0xab8] sm:$0xff]
        %v531 = vld [vmem:[%s185 + $0xac0] sm:$0xff]
        %v532 = vld [vmem:[%s185 + $0xac8] sm:$0xff]
        %v533 = vld [vmem:[%s185 + $0xad0] sm:$0xff]
        %v534 = vld [vmem:[%s185 + $0xad8] sm:$0xff]
        %v535 = vld [vmem:[%s185 + $0xae0] sm:$0xff]
        %v536 = vld [vmem:[%s185 + $0xae8] sm:$0xff]
        %v537 = vld [vmem:[%s185 + $0xaf0] sm:$0xff]
        %v538 = vld [vmem:[%s185 + $0xaf8] sm:$0xff]
        %v539 = vld [vmem:[%s185 + $0xb00] sm:$0xff]
        %v540 = vld [vmem:[%s185 + $0xb08] sm:$0xff]
        %v541 = vld [vmem:[%s185 + $0xb10] sm:$0xff]
        %v542 = vld [vmem:[%s185 + $0xb18] sm:$0xff]
        %v543 = vld [vmem:[%s185 + $0xb20] sm:$0xff]
        %v544 = vld [vmem:[%s185 + $0xb28] sm:$0xff]
        %v545 = vld [vmem:[%s185 + $0xb30] sm:$0xff]
        %v546 = vld [vmem:[%s185 + $0xb38] sm:$0xff]
        %v547 = vld [vmem:[%s185 + $0xb40] sm:$0xff]
        %v548 = vld [vmem:[%s185 + $0xb48] sm:$0xff]
        %v549 = vld [vmem:[%s185 + $0xb50] sm:$0xff]
        %v550 = vld [vmem:[%s185 + $0xb58] sm:$0xff]
        %v551 = vld [vmem:[%s185 + $0xb60] sm:$0xff]
        %v552 = vld [vmem:[%s185 + $0xb68] sm:$0xff]
        %v553 = vld [vmem:[%s185 + $0xb70] sm:$0xff]
        %v554 = vld [vmem:[%s185 + $0xb78] sm:$0xff]
        %v555 = vld [vmem:[%s185 + $0xb80] sm:$0xff]
        %v556 = vld [vmem:[%s185 + $0xb88] sm:$0xff]
        %v557 = vld [vmem:[%s185 + $0xb90] sm:$0xff]
        %v558 = vld [vmem:[%s185 + $0xb98] sm:$0xff]
        %v559 = vld [vmem:[%s185 + $0xba0] sm:$0xff]
        %v560 = vld [vmem:[%s185 + $0xba8] sm:$0xff]
        %v561 = vld [vmem:[%s185 + $0xbb0] sm:$0xff]
        %v562 = vld [vmem:[%s185 + $0xbb8] sm:$0xff]
        %v563 = vld [vmem:[%s185 + $0xbc0] sm:$0xff]
        %v564 = vld [vmem:[%s185 + $0xbc8] sm:$0xff]
        %v565 = vld [vmem:[%s185 + $0xbd0] sm:$0xff]
        %v566 = vld [vmem:[%s185 + $0xbd8] sm:$0xff]
        %v567 = vld [vmem:[%s185 + $0xbe0] sm:$0xff]
        %v568 = vld [vmem:[%s185 + $0xbe8] sm:$0xff]
        %v569 = vld [vmem:[%s185 + $0xbf0] sm:$0xff]
        %v570 = vld [vmem:[%s185 + $0xbf8] sm:$0xff]
        %v571 = vld [vmem:[%s185 + $0xc00] sm:$0xff]
        %v572 = vld [vmem:[%s185 + $0xc08] sm:$0xff]
        %v573 = vld [vmem:[%s185 + $0xc10] sm:$0xff]
        %v574 = vld [vmem:[%s185 + $0xc18] sm:$0xff]
        %v575 = vld [vmem:[%s185 + $0xc20] sm:$0xff]
        %v576 = vld [vmem:[%s185 + $0xc28] sm:$0xff]
        %v577 = vld [vmem:[%s185 + $0xc30] sm:$0xff]
        %v578 = vld [vmem:[%s185 + $0xc38] sm:$0xff]
        %v579 = vld [vmem:[%s185 + $0xc40] sm:$0xff]
        %v580 = vld [vmem:[%s185 + $0xc48] sm:$0xff]
        %v581 = vld [vmem:[%s185 + $0xc50] sm:$0xff]
        %v582 = vld [vmem:[%s185 + $0xc58] sm:$0xff]
        %v583 = vld [vmem:[%s185 + $0xc60] sm:$0xff]
        %v584 = vld [vmem:[%s185 + $0xc68] sm:$0xff]
        %v585 = vld [vmem:[%s185 + $0xc70] sm:$0xff]
        %v586 = vld [vmem:[%s185 + $0xc78] sm:$0xff]
        %v587 = vld [vmem:[%s185 + $0xc80] sm:$0xff]
        %v588 = vld [vmem:[%s185 + $0xc88] sm:$0xff]
        %v589 = vld [vmem:[%s185 + $0xc90] sm:$0xff]
        %v590 = vld [vmem:[%s185 + $0xc98] sm:$0xff]
        %v591 = vld [vmem:[%s185 + $0xca0] sm:$0xff]
        %v592 = vld [vmem:[%s185 + $0xca8] sm:$0xff]
        %v593 = vld [vmem:[%s185 + $0xcb0] sm:$0xff]
        %v594 = vld [vmem:[%s185 + $0xcb8] sm:$0xff]
        %v595 = vld [vmem:[%s185 + $0xcc0] sm:$0xff]
        %v596 = vld [vmem:[%s185 + $0xcc8] sm:$0xff]
        %v597 = vld [vmem:[%s185 + $0xcd0] sm:$0xff]
        %v598 = vld [vmem:[%s185 + $0xcd8] sm:$0xff]
        %v599 = vld [vmem:[%s185 + $0xce0] sm:$0xff]
        %v600 = vld [vmem:[%s185 + $0xce8] sm:$0xff]
        %v601 = vld [vmem:[%s185 + $0xcf0] sm:$0xff]
        %v602 = vld [vmem:[%s185 + $0xcf8] sm:$0xff]
        %v603 = vld [vmem:[%s185 + $0xd00] sm:$0xff]
        %v604 = vld [vmem:[%s185 + $0xd08] sm:$0xff]
        %v605 = vld [vmem:[%s185 + $0xd10] sm:$0xff]
        %v606 = vld [vmem:[%s185 + $0xd18] sm:$0xff]
        %v607 = vld [vmem:[%s185 + $0xd20] sm:$0xff]
        %v608 = vld [vmem:[%s185 + $0xd28] sm:$0xff]
        %v609 = vld [vmem:[%s185 + $0xd30] sm:$0xff]
        %v610 = vld [vmem:[%s185 + $0xd38] sm:$0xff]
        %v611 = vld [vmem:[%s185 + $0xd40] sm:$0xff]
        %v612 = vld [vmem:[%s185 + $0xd48] sm:$0xff]
        %v613 = vld [vmem:[%s185 + $0xd50] sm:$0xff]
        %v614 = vld [vmem:[%s185 + $0xd58] sm:$0xff]
        %v615 = vld [vmem:[%s185 + $0xd60] sm:$0xff]
        %v616 = vld [vmem:[%s185 + $0xd68] sm:$0xff]
        %v617 = vld [vmem:[%s185 + $0xd70] sm:$0xff]
        %v618 = vld [vmem:[%s185 + $0xd78] sm:$0xff]
        %v619 = vld [vmem:[%s185 + $0xd80] sm:$0x1]
        %v620 = vld [vmem:[%s185 + $0xd88] sm:$0x1]
        %v621 = vld [vmem:[%s185 + $0xd90] sm:$0x1]
        %v622 = vld [vmem:[%s185 + $0xd98] sm:$0x1]
        %v623 = vld [vmem:[%s185 + $0xda0] sm:$0x1]
        %v624 = vld [vmem:[%s185 + $0xda8] sm:$0x1]
        %v625 = vld [vmem:[%s185 + $0xdb0] sm:$0x1]
        %v626 = vld [vmem:[%s185 + $0xdb8] sm:$0x1]
        %v627 = vld [vmem:[%s185 + $0xdc0] sm:$0x1]
        %v628 = vld [vmem:[%s185 + $0xdc8] sm:$0x1]
        %v629 = vld [vmem:[%s185 + $0xdd0] sm:$0x1]
        %v630 = vld [vmem:[%s185 + $0xdd8] sm:$0x1]
        %v631 = vld [vmem:[%s185 + $0xde0] sm:$0x1]
        %v632 = vld [vmem:[%s185 + $0xde8] sm:$0x1]
        %v633 = vld [vmem:[%s185 + $0xdf0] sm:$0x1]
        %v634 = vld [vmem:[%s185 + $0xdf8] sm:$0x1]
        %v635 = vld [vmem:[%s185 + $0xe00] sm:$0xff]
        %v636 = vld [vmem:[%s185 + $0xe08] sm:$0xff]
        %v637 = vld [vmem:[%s185 + $0xe10] sm:$0xff]
        %v638 = vld [vmem:[%s185 + $0xe18] sm:$0xff]
        %v639 = vld [vmem:[%s185 + $0xe20] sm:$0xff]
        %v640 = vld [vmem:[%s185 + $0xe28] sm:$0xff]
        %v641 = vld [vmem:[%s185 + $0xe30] sm:$0xff]
        %v642 = vld [vmem:[%s185 + $0xe38] sm:$0xff]
        %v643 = vld [vmem:[%s185 + $0xe40] sm:$0xff]
        %v644 = vld [vmem:[%s185 + $0xe48] sm:$0xff]
        %v645 = vld [vmem:[%s185 + $0xe50] sm:$0xff]
        %v646 = vld [vmem:[%s185 + $0xe58] sm:$0xff]
        %v647 = vld [vmem:[%s185 + $0xe60] sm:$0xff]
        %v648 = vld [vmem:[%s185 + $0xe68] sm:$0xff]
        %v649 = vld [vmem:[%s185 + $0xe70] sm:$0xff]
        %v650 = vld [vmem:[%s185 + $0xe78] sm:$0xff]
        %v651 = vld [vmem:[%s185 + $0xe80] sm:$0xff]
        %v652 = vld [vmem:[%s185 + $0xe88] sm:$0xff]
        %v653 = vld [vmem:[%s185 + $0xe90] sm:$0xff]
        %v654 = vld [vmem:[%s185 + $0xe98] sm:$0xff]
        %v655 = vld [vmem:[%s185 + $0xea0] sm:$0xff]
        %v656 = vld [vmem:[%s185 + $0xea8] sm:$0xff]
        %v657 = vld [vmem:[%s185 + $0xeb0] sm:$0xff]
        %v658 = vld [vmem:[%s185 + $0xeb8] sm:$0xff]
        %v659 = vld [vmem:[%s185 + $0xec0] sm:$0xff]
        %v660 = vld [vmem:[%s185 + $0xec8] sm:$0xff]
        %v661 = vld [vmem:[%s185 + $0xed0] sm:$0xff]
        %v662 = vld [vmem:[%s185 + $0xed8] sm:$0xff]
        %v663 = vld [vmem:[%s185 + $0xee0] sm:$0xff]
        %v664 = vld [vmem:[%s185 + $0xee8] sm:$0xff]
        %v665 = vld [vmem:[%s185 + $0xef0] sm:$0xff]
        %v666 = vld [vmem:[%s185 + $0xef8] sm:$0xff]
        %v667 = vld [vmem:[%s185 + $0xf00] sm:$0xff]
        %v668 = vld [vmem:[%s185 + $0xf08] sm:$0xff]
        %v669 = vld [vmem:[%s185 + $0xf10] sm:$0xff]
        %v670 = vld [vmem:[%s185 + $0xf18] sm:$0xff]
        %v671 = vld [vmem:[%s185 + $0xf20] sm:$0xff]
        %v672 = vld [vmem:[%s185 + $0xf28] sm:$0xff]
        %v673 = vld [vmem:[%s185 + $0xf30] sm:$0xff]
        %v674 = vld [vmem:[%s185 + $0xf38] sm:$0xff]
        %v675 = vld [vmem:[%s185 + $0xf40] sm:$0xff]
        %v676 = vld [vmem:[%s185 + $0xf48] sm:$0xff]
        %v677 = vld [vmem:[%s185 + $0xf50] sm:$0xff]
        %v678 = vld [vmem:[%s185 + $0xf58] sm:$0xff]
        %v679 = vld [vmem:[%s185 + $0xf60] sm:$0xff]
        %v680 = vld [vmem:[%s185 + $0xf68] sm:$0xff]
        %v681 = vld [vmem:[%s185 + $0xf70] sm:$0xff]
        %v682 = vld [vmem:[%s185 + $0xf78] sm:$0xff]
        %v683 = vld [vmem:[%s185 + $0xf80] sm:$0xff]
        %v684 = vld [vmem:[%s185 + $0xf88] sm:$0xff]
        %v685 = vld [vmem:[%s185 + $0xf90] sm:$0xff]
        %v686 = vld [vmem:[%s185 + $0xf98] sm:$0xff]
        %v687 = vld [vmem:[%s185 + $0xfa0] sm:$0xff]
        %v688 = vld [vmem:[%s185 + $0xfa8] sm:$0xff]
        %v689 = vld [vmem:[%s185 + $0xfb0] sm:$0xff]
        %v690 = vld [vmem:[%s185 + $0xfb8] sm:$0xff]
        %v691 = vld [vmem:[%s185 + $0xfc0] sm:$0xff]
        %v692 = vld [vmem:[%s185 + $0xfc8] sm:$0xff]
        %v693 = vld [vmem:[%s185 + $0xfd0] sm:$0xff]
        %v694 = vld [vmem:[%s185 + $0xfd8] sm:$0xff]
        %v695 = vld [vmem:[%s185 + $0xfe0] sm:$0xff]
        %v696 = vld [vmem:[%s185 + $0xfe8] sm:$0xff]
        %v697 = vld [vmem:[%s185 + $0xff0] sm:$0xff]
        %v698 = vld [vmem:[%s185 + $0xff8] sm:$0xff]
        %v699 = vld [vmem:[%s185 + $0x1000] sm:$0xff]
        %v700 = vld [vmem:[%s185 + $0x1008] sm:$0xff]
        %v701 = vld [vmem:[%s185 + $0x1010] sm:$0xff]
        %v702 = vld [vmem:[%s185 + $0x1018] sm:$0xff]
        %v703 = vld [vmem:[%s185 + $0x1020] sm:$0xff]
        %v704 = vld [vmem:[%s185 + $0x1028] sm:$0xff]
        %v705 = vld [vmem:[%s185 + $0x1030] sm:$0xff]
        %v706 = vld [vmem:[%s185 + $0x1038] sm:$0xff]
        %v707 = vld [vmem:[%s185 + $0x1040] sm:$0xff]
        %v708 = vld [vmem:[%s185 + $0x1048] sm:$0xff]
        %v709 = vld [vmem:[%s185 + $0x1050] sm:$0xff]
        %v710 = vld [vmem:[%s185 + $0x1058] sm:$0xff]
        %v711 = vld [vmem:[%s185 + $0x1060] sm:$0xff]
        %v712 = vld [vmem:[%s185 + $0x1068] sm:$0xff]
        %v713 = vld [vmem:[%s185 + $0x1070] sm:$0xff]
        %v714 = vld [vmem:[%s185 + $0x1078] sm:$0xff]
        %v715 = vld [vmem:[%s185 + $0x1080] sm:$0xff]
        %v716 = vld [vmem:[%s185 + $0x1088] sm:$0xff]
        %v717 = vld [vmem:[%s185 + $0x1090] sm:$0xff]
        %v718 = vld [vmem:[%s185 + $0x1098] sm:$0xff]
        %v719 = vld [vmem:[%s185 + $0x10a0] sm:$0xff]
        %v720 = vld [vmem:[%s185 + $0x10a8] sm:$0xff]
        %v721 = vld [vmem:[%s185 + $0x10b0] sm:$0xff]
        %v722 = vld [vmem:[%s185 + $0x10b8] sm:$0xff]
        %v723 = vld [vmem:[%s185 + $0x10c0] sm:$0xff]
        %v724 = vld [vmem:[%s185 + $0x10c8] sm:$0xff]
        %v725 = vld [vmem:[%s185 + $0x10d0] sm:$0xff]
        %v726 = vld [vmem:[%s185 + $0x10d8] sm:$0xff]
        %v727 = vld [vmem:[%s185 + $0x10e0] sm:$0xff]
        %v728 = vld [vmem:[%s185 + $0x10e8] sm:$0xff]
        %v729 = vld [vmem:[%s185 + $0x10f0] sm:$0xff]
        %v730 = vld [vmem:[%s185 + $0x10f8] sm:$0xff]
        %v731 = vld [vmem:[%s185 + $0x1100] sm:$0x1]
        %v732 = vld [vmem:[%s185 + $0x1108] sm:$0x1]
        %v733 = vld [vmem:[%s185 + $0x1110] sm:$0x1]
        %v734 = vld [vmem:[%s185 + $0x1118] sm:$0x1]
        %v735 = vld [vmem:[%s185 + $0x1120] sm:$0x1]
        %v736 = vld [vmem:[%s185 + $0x1128] sm:$0x1]
        %v737 = vld [vmem:[%s185 + $0x1130] sm:$0x1]
        %v738 = vld [vmem:[%s185 + $0x1138] sm:$0x1]
        %v739 = vld [vmem:[%s185 + $0x1140] sm:$0x1]
        %v740 = vld [vmem:[%s185 + $0x1148] sm:$0x1]
        %v741 = vld [vmem:[%s185 + $0x1150] sm:$0x1]
        %v742 = vld [vmem:[%s185 + $0x1158] sm:$0x1]
        %v743 = vld [vmem:[%s185 + $0x1160] sm:$0x1]
        %v744 = vld [vmem:[%s185 + $0x1168] sm:$0x1]
        %v745 = vld [vmem:[%s185 + $0x1170] sm:$0x1]
        %v746 = vld [vmem:[%s185 + $0x1178] sm:$0x1]
        %v747 = vld [vmem:[%s185 + $0x1180] sm:$0xff]
        %v748 = vld [vmem:[%s185 + $0x1188] sm:$0xff]
        %v749 = vld [vmem:[%s185 + $0x1190] sm:$0xff]
        %v750 = vld [vmem:[%s185 + $0x1198] sm:$0xff]
        %v751 = vld [vmem:[%s185 + $0x11a0] sm:$0xff]
        %v752 = vld [vmem:[%s185 + $0x11a8] sm:$0xff]
        %v753 = vld [vmem:[%s185 + $0x11b0] sm:$0xff]
        %v754 = vld [vmem:[%s185 + $0x11b8] sm:$0xff]
        %v755 = vld [vmem:[%s185 + $0x11c0] sm:$0xff]
        %v756 = vld [vmem:[%s185 + $0x11c8] sm:$0xff]
        %v757 = vld [vmem:[%s185 + $0x11d0] sm:$0xff]
        %v758 = vld [vmem:[%s185 + $0x11d8] sm:$0xff]
        %v759 = vld [vmem:[%s185 + $0x11e0] sm:$0xff]
        %v760 = vld [vmem:[%s185 + $0x11e8] sm:$0xff]
        %v761 = vld [vmem:[%s185 + $0x11f0] sm:$0xff]
        %v762 = vld [vmem:[%s185 + $0x11f8] sm:$0xff]
        %v763 = vld [vmem:[%s185 + $0x1200] sm:$0xff]
        %v764 = vld [vmem:[%s185 + $0x1208] sm:$0xff]
        %v765 = vld [vmem:[%s185 + $0x1210] sm:$0xff]
        %v766 = vld [vmem:[%s185 + $0x1218] sm:$0xff]
        %v767 = vld [vmem:[%s185 + $0x1220] sm:$0xff]
        %v768 = vld [vmem:[%s185 + $0x1228] sm:$0xff]
        %v769 = vld [vmem:[%s185 + $0x1230] sm:$0xff]
        %v770 = vld [vmem:[%s185 + $0x1238] sm:$0xff]
        %v771 = vld [vmem:[%s185 + $0x1240] sm:$0xff]
        %v772 = vld [vmem:[%s185 + $0x1248] sm:$0xff]
        %v773 = vld [vmem:[%s185 + $0x1250] sm:$0xff]
        %v774 = vld [vmem:[%s185 + $0x1258] sm:$0xff]
        %v775 = vld [vmem:[%s185 + $0x1260] sm:$0xff]
        %v776 = vld [vmem:[%s185 + $0x1268] sm:$0xff]
        %v777 = vld [vmem:[%s185 + $0x1270] sm:$0xff]
        %v778 = vld [vmem:[%s185 + $0x1278] sm:$0xff]
        %v779 = vld [vmem:[%s185 + $0x1280] sm:$0xff]
        %v780 = vld [vmem:[%s185 + $0x1288] sm:$0xff]
        %v781 = vld [vmem:[%s185 + $0x1290] sm:$0xff]
        %v782 = vld [vmem:[%s185 + $0x1298] sm:$0xff]
        %v783 = vld [vmem:[%s185 + $0x12a0] sm:$0xff]
        %v784 = vld [vmem:[%s185 + $0x12a8] sm:$0xff]
        %v785 = vld [vmem:[%s185 + $0x12b0] sm:$0xff]
        %v786 = vld [vmem:[%s185 + $0x12b8] sm:$0xff]
        %v787 = vld [vmem:[%s185 + $0x12c0] sm:$0xff]
        %v788 = vld [vmem:[%s185 + $0x12c8] sm:$0xff]
        %v789 = vld [vmem:[%s185 + $0x12d0] sm:$0xff]
        %v790 = vld [vmem:[%s185 + $0x12d8] sm:$0xff]
        %v791 = vld [vmem:[%s185 + $0x12e0] sm:$0xff]
        %v792 = vld [vmem:[%s185 + $0x12e8] sm:$0xff]
        %v793 = vld [vmem:[%s185 + $0x12f0] sm:$0xff]
        %v794 = vld [vmem:[%s185 + $0x12f8] sm:$0xff]
        %v795 = vld [vmem:[%s185 + $0x1300] sm:$0xff]
        %v796 = vld [vmem:[%s185 + $0x1308] sm:$0xff]
        %v797 = vld [vmem:[%s185 + $0x1310] sm:$0xff]
        %v798 = vld [vmem:[%s185 + $0x1318] sm:$0xff]
        %v799 = vld [vmem:[%s185 + $0x1320] sm:$0xff]
        %v800 = vld [vmem:[%s185 + $0x1328] sm:$0xff]
        %v801 = vld [vmem:[%s185 + $0x1330] sm:$0xff]
        %v802 = vld [vmem:[%s185 + $0x1338] sm:$0xff]
        %v803 = vld [vmem:[%s185 + $0x1340] sm:$0xff]
        %v804 = vld [vmem:[%s185 + $0x1348] sm:$0xff]
        %v805 = vld [vmem:[%s185 + $0x1350] sm:$0xff]
        %v806 = vld [vmem:[%s185 + $0x1358] sm:$0xff]
        %v807 = vld [vmem:[%s185 + $0x1360] sm:$0xff]
        %v808 = vld [vmem:[%s185 + $0x1368] sm:$0xff]
        %v809 = vld [vmem:[%s185 + $0x1370] sm:$0xff]
        %v810 = vld [vmem:[%s185 + $0x1378] sm:$0xff]
        %v811 = vld [vmem:[%s185 + $0x1380] sm:$0xff]
        %v812 = vld [vmem:[%s185 + $0x1388] sm:$0xff]
        %v813 = vld [vmem:[%s185 + $0x1390] sm:$0xff]
        %v814 = vld [vmem:[%s185 + $0x1398] sm:$0xff]
        %v815 = vld [vmem:[%s185 + $0x13a0] sm:$0xff]
        %v816 = vld [vmem:[%s185 + $0x13a8] sm:$0xff]
        %v817 = vld [vmem:[%s185 + $0x13b0] sm:$0xff]
        %v818 = vld [vmem:[%s185 + $0x13b8] sm:$0xff]
        %v819 = vld [vmem:[%s185 + $0x13c0] sm:$0xff]
        %v820 = vld [vmem:[%s185 + $0x13c8] sm:$0xff]
        %v821 = vld [vmem:[%s185 + $0x13d0] sm:$0xff]
        %v822 = vld [vmem:[%s185 + $0x13d8] sm:$0xff]
        %v823 = vld [vmem:[%s185 + $0x13e0] sm:$0xff]
        %v824 = vld [vmem:[%s185 + $0x13e8] sm:$0xff]
        %v825 = vld [vmem:[%s185 + $0x13f0] sm:$0xff]
        %v826 = vld [vmem:[%s185 + $0x13f8] sm:$0xff]
        %v827 = vld [vmem:[%s185 + $0x1400] sm:$0xff]
        %v828 = vld [vmem:[%s185 + $0x1408] sm:$0xff]
        %v829 = vld [vmem:[%s185 + $0x1410] sm:$0xff]
        %v830 = vld [vmem:[%s185 + $0x1418] sm:$0xff]
        %v831 = vld [vmem:[%s185 + $0x1420] sm:$0xff]
        %v832 = vld [vmem:[%s185 + $0x1428] sm:$0xff]
        %v833 = vld [vmem:[%s185 + $0x1430] sm:$0xff]
        %v834 = vld [vmem:[%s185 + $0x1438] sm:$0xff]
        %v835 = vld [vmem:[%s185 + $0x1440] sm:$0xff]
        %v836 = vld [vmem:[%s185 + $0x1448] sm:$0xff]
        %v837 = vld [vmem:[%s185 + $0x1450] sm:$0xff]
        %v838 = vld [vmem:[%s185 + $0x1458] sm:$0xff]
        %v839 = vld [vmem:[%s185 + $0x1460] sm:$0xff]
        %v840 = vld [vmem:[%s185 + $0x1468] sm:$0xff]
        %v841 = vld [vmem:[%s185 + $0x1470] sm:$0xff]
        %v842 = vld [vmem:[%s185 + $0x1478] sm:$0xff]
        %v843 = vld [vmem:[%s185 + $0x1480] sm:$0x1]
        %v844 = vld [vmem:[%s185 + $0x1488] sm:$0x1]
        %v845 = vld [vmem:[%s185 + $0x1490] sm:$0x1]
        %v846 = vld [vmem:[%s185 + $0x1498] sm:$0x1]
        %v847 = vld [vmem:[%s185 + $0x14a0] sm:$0x1]
        %v848 = vld [vmem:[%s185 + $0x14a8] sm:$0x1]
        %v849 = vld [vmem:[%s185 + $0x14b0] sm:$0x1]
        %v850 = vld [vmem:[%s185 + $0x14b8] sm:$0x1]
        %v851 = vld [vmem:[%s185 + $0x14c0] sm:$0x1]
        %v852 = vld [vmem:[%s185 + $0x14c8] sm:$0x1]
        %v853 = vld [vmem:[%s185 + $0x14d0] sm:$0x1]
        %v854 = vld [vmem:[%s185 + $0x14d8] sm:$0x1]
        %v855 = vld [vmem:[%s185 + $0x14e0] sm:$0x1]
        %v856 = vld [vmem:[%s185 + $0x14e8] sm:$0x1]
        %v857 = vld [vmem:[%s185 + $0x14f0] sm:$0x1]
        %v858 = vld [vmem:[%s185 + $0x14f8] sm:$0x1]
        %v859 = vld [vmem:[%s185 + $0x1500] sm:$0xff]
        %v860 = vld [vmem:[%s185 + $0x1508] sm:$0xff]
        %v861 = vld [vmem:[%s185 + $0x1510] sm:$0xff]
        %v862 = vld [vmem:[%s185 + $0x1518] sm:$0xff]
        %v863 = vld [vmem:[%s185 + $0x1520] sm:$0xff]
        %v864 = vld [vmem:[%s185 + $0x1528] sm:$0xff]
        %v865 = vld [vmem:[%s185 + $0x1530] sm:$0xff]
        %v866 = vld [vmem:[%s185 + $0x1538] sm:$0xff]
        %v867 = vld [vmem:[%s185 + $0x1540] sm:$0xff]
        %v868 = vld [vmem:[%s185 + $0x1548] sm:$0xff]
        %v869 = vld [vmem:[%s185 + $0x1550] sm:$0xff]
        %v870 = vld [vmem:[%s185 + $0x1558] sm:$0xff]
        %v871 = vld [vmem:[%s185 + $0x1560] sm:$0xff]
        %v872 = vld [vmem:[%s185 + $0x1568] sm:$0xff]
        %v873 = vld [vmem:[%s185 + $0x1570] sm:$0xff]
        %v874 = vld [vmem:[%s185 + $0x1578] sm:$0xff]
        %v875 = vld [vmem:[%s185 + $0x1580] sm:$0xff]
        %v876 = vld [vmem:[%s185 + $0x1588] sm:$0xff]
        %v877 = vld [vmem:[%s185 + $0x1590] sm:$0xff]
        %v878 = vld [vmem:[%s185 + $0x1598] sm:$0xff]
        %v879 = vld [vmem:[%s185 + $0x15a0] sm:$0xff]
        %v880 = vld [vmem:[%s185 + $0x15a8] sm:$0xff]
        %v881 = vld [vmem:[%s185 + $0x15b0] sm:$0xff]
        %v882 = vld [vmem:[%s185 + $0x15b8] sm:$0xff]
        %v883 = vld [vmem:[%s185 + $0x15c0] sm:$0xff]
        %v884 = vld [vmem:[%s185 + $0x15c8] sm:$0xff]
        %v885 = vld [vmem:[%s185 + $0x15d0] sm:$0xff]
        %v886 = vld [vmem:[%s185 + $0x15d8] sm:$0xff]
        %v887 = vld [vmem:[%s185 + $0x15e0] sm:$0xff]
        %v888 = vld [vmem:[%s185 + $0x15e8] sm:$0xff]
        %v889 = vld [vmem:[%s185 + $0x15f0] sm:$0xff]
        %v890 = vld [vmem:[%s185 + $0x15f8] sm:$0xff]
        %v891 = vld [vmem:[%s185 + $0x1600] sm:$0xff]
        %v892 = vld [vmem:[%s185 + $0x1608] sm:$0xff]
        %v893 = vld [vmem:[%s185 + $0x1610] sm:$0xff]
        %v894 = vld [vmem:[%s185 + $0x1618] sm:$0xff]
        %v895 = vld [vmem:[%s185 + $0x1620] sm:$0xff]
        %v896 = vld [vmem:[%s185 + $0x1628] sm:$0xff]
        %v897 = vld [vmem:[%s185 + $0x1630] sm:$0xff]
        %v898 = vld [vmem:[%s185 + $0x1638] sm:$0xff]
        %v899 = vld [vmem:[%s185 + $0x1640] sm:$0xff]
        %v900 = vld [vmem:[%s185 + $0x1648] sm:$0xff]
        %v901 = vld [vmem:[%s185 + $0x1650] sm:$0xff]
        %v902 = vld [vmem:[%s185 + $0x1658] sm:$0xff]
        %v903 = vld [vmem:[%s185 + $0x1660] sm:$0xff]
        %v904 = vld [vmem:[%s185 + $0x1668] sm:$0xff]
        %v905 = vld [vmem:[%s185 + $0x1670] sm:$0xff]
        %v906 = vld [vmem:[%s185 + $0x1678] sm:$0xff]
        %v907 = vld [vmem:[%s185 + $0x1680] sm:$0xff]
        %v908 = vld [vmem:[%s185 + $0x1688] sm:$0xff]
        %v909 = vld [vmem:[%s185 + $0x1690] sm:$0xff]
        %v910 = vld [vmem:[%s185 + $0x1698] sm:$0xff]
        %v911 = vld [vmem:[%s185 + $0x16a0] sm:$0xff]
        %v912 = vld [vmem:[%s185 + $0x16a8] sm:$0xff]
        %v913 = vld [vmem:[%s185 + $0x16b0] sm:$0xff]
        %v914 = vld [vmem:[%s185 + $0x16b8] sm:$0xff]
        %v915 = vld [vmem:[%s185 + $0x16c0] sm:$0xff]
        %v916 = vld [vmem:[%s185 + $0x16c8] sm:$0xff]
        %v917 = vld [vmem:[%s185 + $0x16d0] sm:$0xff]
        %v918 = vld [vmem:[%s185 + $0x16d8] sm:$0xff]
        %v919 = vld [vmem:[%s185 + $0x16e0] sm:$0xff]
        %v920 = vld [vmem:[%s185 + $0x16e8] sm:$0xff]
        %v921 = vld [vmem:[%s185 + $0x16f0] sm:$0xff]
        %v922 = vld [vmem:[%s185 + $0x16f8] sm:$0xff]
        %v923 = vld [vmem:[%s185 + $0x1700] sm:$0xff]
        %v924 = vld [vmem:[%s185 + $0x1708] sm:$0xff]
        %v925 = vld [vmem:[%s185 + $0x1710] sm:$0xff]
        %v926 = vld [vmem:[%s185 + $0x1718] sm:$0xff]
        %v927 = vld [vmem:[%s185 + $0x1720] sm:$0xff]
        %v928 = vld [vmem:[%s185 + $0x1728] sm:$0xff]
        %v929 = vld [vmem:[%s185 + $0x1730] sm:$0xff]
        %v930 = vld [vmem:[%s185 + $0x1738] sm:$0xff]
        %v931 = vld [vmem:[%s185 + $0x1740] sm:$0xff]
        %v932 = vld [vmem:[%s185 + $0x1748] sm:$0xff]
        %v933 = vld [vmem:[%s185 + $0x1750] sm:$0xff]
        %v934 = vld [vmem:[%s185 + $0x1758] sm:$0xff]
        %v935 = vld [vmem:[%s185 + $0x1760] sm:$0xff]
        %v936 = vld [vmem:[%s185 + $0x1768] sm:$0xff]
        %v937 = vld [vmem:[%s185 + $0x1770] sm:$0xff]
        %v938 = vld [vmem:[%s185 + $0x1778] sm:$0xff]
        %v939 = vld [vmem:[%s185 + $0x1780] sm:$0xff]
        %v940 = vld [vmem:[%s185 + $0x1788] sm:$0xff]
        %v941 = vld [vmem:[%s185 + $0x1790] sm:$0xff]
        %v942 = vld [vmem:[%s185 + $0x1798] sm:$0xff]
        %v943 = vld [vmem:[%s185 + $0x17a0] sm:$0xff]
        %v944 = vld [vmem:[%s185 + $0x17a8] sm:$0xff]
        %v945 = vld [vmem:[%s185 + $0x17b0] sm:$0xff]
        %v946 = vld [vmem:[%s185 + $0x17b8] sm:$0xff]
        %v947 = vld [vmem:[%s185 + $0x17c0] sm:$0xff]
        %v948 = vld [vmem:[%s185 + $0x17c8] sm:$0xff]
        %v949 = vld [vmem:[%s185 + $0x17d0] sm:$0xff]
        %v950 = vld [vmem:[%s185 + $0x17d8] sm:$0xff]
        %v951 = vld [vmem:[%s185 + $0x17e0] sm:$0xff]
        %v952 = vld [vmem:[%s185 + $0x17e8] sm:$0xff]
        %v953 = vld [vmem:[%s185 + $0x17f0] sm:$0xff]
        %v954 = vld [vmem:[%s185 + $0x17f8] sm:$0xff]
        %v955 = vld [vmem:[%s185 + $0x1800] sm:$0x1]
        %v956 = vld [vmem:[%s185 + $0x1808] sm:$0x1]
        %v957 = vld [vmem:[%s185 + $0x1810] sm:$0x1]
        %v958 = vld [vmem:[%s185 + $0x1818] sm:$0x1]
        %v959 = vld [vmem:[%s185 + $0x1820] sm:$0x1]
        %v960 = vld [vmem:[%s185 + $0x1828] sm:$0x1]
        %v961 = vld [vmem:[%s185 + $0x1830] sm:$0x1]
        %v962 = vld [vmem:[%s185 + $0x1838] sm:$0x1]
        %v963 = vld [vmem:[%s185 + $0x1840] sm:$0x1]
        %v964 = vld [vmem:[%s185 + $0x1848] sm:$0x1]
        %v965 = vld [vmem:[%s185 + $0x1850] sm:$0x1]
        %v966 = vld [vmem:[%s185 + $0x1858] sm:$0x1]
        %v967 = vld [vmem:[%s185 + $0x1860] sm:$0x1]
        %v968 = vld [vmem:[%s185 + $0x1868] sm:$0x1]
        %v969 = vld [vmem:[%s185 + $0x1870] sm:$0x1]
        %v970 = vld [vmem:[%s185 + $0x1878] sm:$0x1]
        %v971 = vld [vmem:[%s185 + $0x1880] sm:$0xff]
        %v972 = vld [vmem:[%s185 + $0x1888] sm:$0xff]
        %v973 = vld [vmem:[%s185 + $0x1890] sm:$0xff]
        %v974 = vld [vmem:[%s185 + $0x1898] sm:$0xff]
        %v975 = vld [vmem:[%s185 + $0x18a0] sm:$0xff]
        %v976 = vld [vmem:[%s185 + $0x18a8] sm:$0xff]
        %v977 = vld [vmem:[%s185 + $0x18b0] sm:$0xff]
        %v978 = vld [vmem:[%s185 + $0x18b8] sm:$0xff]
        %v979 = vld [vmem:[%s185 + $0x18c0] sm:$0xff]
        %v980 = vld [vmem:[%s185 + $0x18c8] sm:$0xff]
        %v981 = vld [vmem:[%s185 + $0x18d0] sm:$0xff]
        %v982 = vld [vmem:[%s185 + $0x18d8] sm:$0xff]
        %v983 = vld [vmem:[%s185 + $0x18e0] sm:$0xff]
        %v984 = vld [vmem:[%s185 + $0x18e8] sm:$0xff]
        %v985 = vld [vmem:[%s185 + $0x18f0] sm:$0xff]
        %v986 = vld [vmem:[%s185 + $0x18f8] sm:$0xff]
        %v987 = vld [vmem:[%s185 + $0x1900] sm:$0xff]
        %v988 = vld [vmem:[%s185 + $0x1908] sm:$0xff]
        %v989 = vld [vmem:[%s185 + $0x1910] sm:$0xff]
        %v990 = vld [vmem:[%s185 + $0x1918] sm:$0xff]
        %v991 = vld [vmem:[%s185 + $0x1920] sm:$0xff]
        %v992 = vld [vmem:[%s185 + $0x1928] sm:$0xff]
        %v993 = vld [vmem:[%s185 + $0x1930] sm:$0xff]
        %v994 = vld [vmem:[%s185 + $0x1938] sm:$0xff]
        %v995 = vld [vmem:[%s185 + $0x1940] sm:$0xff]
        %v996 = vld [vmem:[%s185 + $0x1948] sm:$0xff]
        %v997 = vld [vmem:[%s185 + $0x1950] sm:$0xff]
        %v998 = vld [vmem:[%s185 + $0x1958] sm:$0xff]
        %v999 = vld [vmem:[%s185 + $0x1960] sm:$0xff]
        %v1000 = vld [vmem:[%s185 + $0x1968] sm:$0xff]
        %v1001 = vld [vmem:[%s185 + $0x1970] sm:$0xff]
        %v1002 = vld [vmem:[%s185 + $0x1978] sm:$0xff]
        %v1003 = vld [vmem:[%s185 + $0x1980] sm:$0xff]
        %v1004 = vld [vmem:[%s185 + $0x1988] sm:$0xff]
        %v1005 = vld [vmem:[%s185 + $0x1990] sm:$0xff]
        %v1006 = vld [vmem:[%s185 + $0x1998] sm:$0xff]
        %v1007 = vld [vmem:[%s185 + $0x19a0] sm:$0xff]
        %v1008 = vld [vmem:[%s185 + $0x19a8] sm:$0xff]
        %v1009 = vld [vmem:[%s185 + $0x19b0] sm:$0xff]
        %v1010 = vld [vmem:[%s185 + $0x19b8] sm:$0xff]
        %v1011 = vld [vmem:[%s185 + $0x19c0] sm:$0xff]
        %v1012 = vld [vmem:[%s185 + $0x19c8] sm:$0xff]
        %v1013 = vld [vmem:[%s185 + $0x19d0] sm:$0xff]
        %v1014 = vld [vmem:[%s185 + $0x19d8] sm:$0xff]
        %v1015 = vld [vmem:[%s185 + $0x19e0] sm:$0xff]
        %v1016 = vld [vmem:[%s185 + $0x19e8] sm:$0xff]
        %v1017 = vld [vmem:[%s185 + $0x19f0] sm:$0xff]
        %v1018 = vld [vmem:[%s185 + $0x19f8] sm:$0xff]
        %v1019 = vld [vmem:[%s185 + $0x1a00] sm:$0xff]
        %v1020 = vld [vmem:[%s185 + $0x1a08] sm:$0xff]
        %v1021 = vld [vmem:[%s185 + $0x1a10] sm:$0xff]
        %v1022 = vld [vmem:[%s185 + $0x1a18] sm:$0xff]
        %v1023 = vld [vmem:[%s185 + $0x1a20] sm:$0xff]
        %v1024 = vld [vmem:[%s185 + $0x1a28] sm:$0xff]
        %v1025 = vld [vmem:[%s185 + $0x1a30] sm:$0xff]
        %v1026 = vld [vmem:[%s185 + $0x1a38] sm:$0xff]
        %v1027 = vld [vmem:[%s185 + $0x1a40] sm:$0xff]
        %v1028 = vld [vmem:[%s185 + $0x1a48] sm:$0xff]
        %v1029 = vld [vmem:[%s185 + $0x1a50] sm:$0xff]
        %v1030 = vld [vmem:[%s185 + $0x1a58] sm:$0xff]
        %v1031 = vld [vmem:[%s185 + $0x1a60] sm:$0xff]
        %v1032 = vld [vmem:[%s185 + $0x1a68] sm:$0xff]
        %v1033 = vld [vmem:[%s185 + $0x1a70] sm:$0xff]
        %v1034 = vld [vmem:[%s185 + $0x1a78] sm:$0xff]
        %v1035 = vld [vmem:[%s185 + $0x1a80] sm:$0xff]
        %v1036 = vld [vmem:[%s185 + $0x1a88] sm:$0xff]
        %v1037 = vld [vmem:[%s185 + $0x1a90] sm:$0xff]
        %v1038 = vld [vmem:[%s185 + $0x1a98] sm:$0xff]
        %v1039 = vld [vmem:[%s185 + $0x1aa0] sm:$0xff]
        %v1040 = vld [vmem:[%s185 + $0x1aa8] sm:$0xff]
        %v1041 = vld [vmem:[%s185 + $0x1ab0] sm:$0xff]
        %v1042 = vld [vmem:[%s185 + $0x1ab8] sm:$0xff]
        %v1043 = vld [vmem:[%s185 + $0x1ac0] sm:$0xff]
        %v1044 = vld [vmem:[%s185 + $0x1ac8] sm:$0xff]
        %v1045 = vld [vmem:[%s185 + $0x1ad0] sm:$0xff]
        %v1046 = vld [vmem:[%s185 + $0x1ad8] sm:$0xff]
        %v1047 = vld [vmem:[%s185 + $0x1ae0] sm:$0xff]
        %v1048 = vld [vmem:[%s185 + $0x1ae8] sm:$0xff]
        %v1049 = vld [vmem:[%s185 + $0x1af0] sm:$0xff]
        %v1050 = vld [vmem:[%s185 + $0x1af8] sm:$0xff]
        %v1051 = vld [vmem:[%s185 + $0x1b00] sm:$0xff]
        %v1052 = vld [vmem:[%s185 + $0x1b08] sm:$0xff]
        %v1053 = vld [vmem:[%s185 + $0x1b10] sm:$0xff]
        %v1054 = vld [vmem:[%s185 + $0x1b18] sm:$0xff]
        %v1055 = vld [vmem:[%s185 + $0x1b20] sm:$0xff]
        %v1056 = vld [vmem:[%s185 + $0x1b28] sm:$0xff]
        %v1057 = vld [vmem:[%s185 + $0x1b30] sm:$0xff]
        %v1058 = vld [vmem:[%s185 + $0x1b38] sm:$0xff]
        %v1059 = vld [vmem:[%s185 + $0x1b40] sm:$0xff]
        %v1060 = vld [vmem:[%s185 + $0x1b48] sm:$0xff]
        %v1061 = vld [vmem:[%s185 + $0x1b50] sm:$0xff]
        %v1062 = vld [vmem:[%s185 + $0x1b58] sm:$0xff]
        %v1063 = vld [vmem:[%s185 + $0x1b60] sm:$0xff]
        %v1064 = vld [vmem:[%s185 + $0x1b68] sm:$0xff]
        %v1065 = vld [vmem:[%s185 + $0x1b70] sm:$0xff]
        %v1066 = vld [vmem:[%s185 + $0x1b78] sm:$0xff]
        %v1067 = vld [vmem:[%s185 + $0x1b80] sm:$0x1]
        %v1068 = vld [vmem:[%s185 + $0x1b88] sm:$0x1]
        %v1069 = vld [vmem:[%s185 + $0x1b90] sm:$0x1]
        %v1070 = vld [vmem:[%s185 + $0x1b98] sm:$0x1]
        %v1071 = vld [vmem:[%s185 + $0x1ba0] sm:$0x1]
        %v1072 = vld [vmem:[%s185 + $0x1ba8] sm:$0x1]
        %v1073 = vld [vmem:[%s185 + $0x1bb0] sm:$0x1]
        %v1074 = vld [vmem:[%s185 + $0x1bb8] sm:$0x1]
        %v1075 = vld [vmem:[%s185 + $0x1bc0] sm:$0x1]
        %v1076 = vld [vmem:[%s185 + $0x1bc8] sm:$0x1]
        %v1077 = vld [vmem:[%s185 + $0x1bd0] sm:$0x1]
        %v1078 = vld [vmem:[%s185 + $0x1bd8] sm:$0x1]
        %v1079 = vld [vmem:[%s185 + $0x1be0] sm:$0x1]
        %v1080 = vld [vmem:[%s185 + $0x1be8] sm:$0x1]
        %v1081 = vld [vmem:[%s185 + $0x1bf0] sm:$0x1]
        %v1082 = vld [vmem:[%s185 + $0x1bf8] sm:$0x1]
        %v1083 = vadd.f32 %v187, %v203
        %v1084 = vadd.f32 %v1083, %v219
        %v1085 = vadd.f32 %v1084, %v235
        %v1086 = vadd.f32 %v1085, %v251
        %v1087 = vadd.f32 %v1086, %v267
        %vm1088 = vcmask 1040384
        %v1089 = vsel %vm1088, %v283, 0.0
        %v1090 = vadd.f32 %v1087, %v1089
        %v1091 = vrot.slane %v1090, 4
        %v1092 = vadd.f32 %v1090, %v1091
        %v1093 = vrot.slane %v1092, 2
        %v1094 = vadd.f32 %v1092, %v1093
        %v1095 = vrot.slane %v1094, 1
        %v1096 = vadd.f32 %v1094, %v1095
        %v1097 = vadd.f32 %v188, %v204
        %v1098 = vadd.f32 %v1097, %v220
        %v1099 = vadd.f32 %v1098, %v236
        %v1100 = vadd.f32 %v1099, %v252
        %v1101 = vadd.f32 %v1100, %v268
        %v1102 = vsel %vm1088, %v284, 0.0
        %v1103 = vadd.f32 %v1101, %v1102
        %v1104 = vrot.slane %v1103, 4
        %v1105 = vadd.f32 %v1103, %v1104
        %v1106 = vrot.slane %v1105, 2
        %v1107 = vadd.f32 %v1105, %v1106
        %v1108 = vrot.slane %v1107, 1
        %v1109 = vadd.f32 %v1107, %v1108
        %v1110 = vadd.f32 %v189, %v205
        %v1111 = vadd.f32 %v1110, %v221
        %v1112 = vadd.f32 %v1111, %v237
        %v1113 = vadd.f32 %v1112, %v253
        %v1114 = vadd.f32 %v1113, %v269
        %v1115 = vsel %vm1088, %v285, 0.0
        %v1116 = vadd.f32 %v1114, %v1115
        %v1117 = vrot.slane %v1116, 4
        %v1118 = vadd.f32 %v1116, %v1117
        %v1119 = vrot.slane %v1118, 2
        %v1120 = vadd.f32 %v1118, %v1119
        %v1121 = vrot.slane %v1120, 1
        %v1122 = vadd.f32 %v1120, %v1121
        %v1123 = vadd.f32 %v190, %v206
        %v1124 = vadd.f32 %v1123, %v222
        %v1125 = vadd.f32 %v1124, %v238
        %v1126 = vadd.f32 %v1125, %v254
        %v1127 = vadd.f32 %v1126, %v270
        %v1128 = vsel %vm1088, %v286, 0.0
        %v1129 = vadd.f32 %v1127, %v1128
        %v1130 = vrot.slane %v1129, 4
        %v1131 = vadd.f32 %v1129, %v1130
        %v1132 = vrot.slane %v1131, 2
        %v1133 = vadd.f32 %v1131, %v1132
        %v1134 = vrot.slane %v1133, 1
        %v1135 = vadd.f32 %v1133, %v1134
        %v1136 = vadd.f32 %v191, %v207
        %v1137 = vadd.f32 %v1136, %v223
        %v1138 = vadd.f32 %v1137, %v239
        %v1139 = vadd.f32 %v1138, %v255
        %v1140 = vadd.f32 %v1139, %v271
        %v1141 = vsel %vm1088, %v287, 0.0
        %v1142 = vadd.f32 %v1140, %v1141
        %v1143 = vrot.slane %v1142, 4
        %v1144 = vadd.f32 %v1142, %v1143
        %v1145 = vrot.slane %v1144, 2
        %v1146 = vadd.f32 %v1144, %v1145
        %v1147 = vrot.slane %v1146, 1
        %v1148 = vadd.f32 %v1146, %v1147
        %v1149 = vadd.f32 %v192, %v208
        %v1150 = vadd.f32 %v1149, %v224
        %v1151 = vadd.f32 %v1150, %v240
        %v1152 = vadd.f32 %v1151, %v256
        %v1153 = vadd.f32 %v1152, %v272
        %v1154 = vsel %vm1088, %v288, 0.0
        %v1155 = vadd.f32 %v1153, %v1154
        %v1156 = vrot.slane %v1155, 4
        %v1157 = vadd.f32 %v1155, %v1156
        %v1158 = vrot.slane %v1157, 2
        %v1159 = vadd.f32 %v1157, %v1158
        %v1160 = vrot.slane %v1159, 1
        %v1161 = vadd.f32 %v1159, %v1160
        %v1162 = vadd.f32 %v193, %v209
        %v1163 = vadd.f32 %v1162, %v225
        %v1164 = vadd.f32 %v1163, %v241
        %v1165 = vadd.f32 %v1164, %v257
        %v1166 = vadd.f32 %v1165, %v273
        %v1167 = vsel %vm1088, %v289, 0.0
        %v1168 = vadd.f32 %v1166, %v1167
        %v1169 = vrot.slane %v1168, 4
        %v1170 = vadd.f32 %v1168, %v1169
        %v1171 = vrot.slane %v1170, 2
        %v1172 = vadd.f32 %v1170, %v1171
        %v1173 = vrot.slane %v1172, 1
        %v1174 = vadd.f32 %v1172, %v1173
        %v1175 = vadd.f32 %v194, %v210
        %v1176 = vadd.f32 %v1175, %v226
        %v1177 = vadd.f32 %v1176, %v242
        %v1178 = vadd.f32 %v1177, %v258
        %v1179 = vadd.f32 %v1178, %v274
        %v1180 = vsel %vm1088, %v290, 0.0
        %v1181 = vadd.f32 %v1179, %v1180
        %v1182 = vrot.slane %v1181, 4
        %v1183 = vadd.f32 %v1181, %v1182
        %v1184 = vrot.slane %v1183, 2
        %v1185 = vadd.f32 %v1183, %v1184
        %v1186 = vrot.slane %v1185, 1
        %v1187 = vadd.f32 %v1185, %v1186
        %v1188 = vadd.f32 %v195, %v211
        %v1189 = vadd.f32 %v1188, %v227
        %v1190 = vadd.f32 %v1189, %v243
        %v1191 = vadd.f32 %v1190, %v259
        %v1192 = vadd.f32 %v1191, %v275
        %v1193 = vsel %vm1088, %v291, 0.0
        %v1194 = vadd.f32 %v1192, %v1193
        %v1195 = vrot.slane %v1194, 4
        %v1196 = vadd.f32 %v1194, %v1195
        %v1197 = vrot.slane %v1196, 2
        %v1198 = vadd.f32 %v1196, %v1197
        %v1199 = vrot.slane %v1198, 1
        %v1200 = vadd.f32 %v1198, %v1199
        %v1201 = vadd.f32 %v196, %v212
        %v1202 = vadd.f32 %v1201, %v228
        %v1203 = vadd.f32 %v1202, %v244
        %v1204 = vadd.f32 %v1203, %v260
        %v1205 = vadd.f32 %v1204, %v276
        %v1206 = vsel %vm1088, %v292, 0.0
        %v1207 = vadd.f32 %v1205, %v1206
        %v1208 = vrot.slane %v1207, 4
        %v1209 = vadd.f32 %v1207, %v1208
        %v1210 = vrot.slane %v1209, 2
        %v1211 = vadd.f32 %v1209, %v1210
        %v1212 = vrot.slane %v1211, 1
        %v1213 = vadd.f32 %v1211, %v1212
        %v1214 = vadd.f32 %v197, %v213
        %v1215 = vadd.f32 %v1214, %v229
        %v1216 = vadd.f32 %v1215, %v245
        %v1217 = vadd.f32 %v1216, %v261
        %v1218 = vadd.f32 %v1217, %v277
        %v1219 = vsel %vm1088, %v293, 0.0
        %v1220 = vadd.f32 %v1218, %v1219
        %v1221 = vrot.slane %v1220, 4
        %v1222 = vadd.f32 %v1220, %v1221
        %v1223 = vrot.slane %v1222, 2
        %v1224 = vadd.f32 %v1222, %v1223
        %v1225 = vrot.slane %v1224, 1
        %v1226 = vadd.f32 %v1224, %v1225
        %v1227 = vadd.f32 %v198, %v214
        %v1228 = vadd.f32 %v1227, %v230
        %v1229 = vadd.f32 %v1228, %v246
        %v1230 = vadd.f32 %v1229, %v262
        %v1231 = vadd.f32 %v1230, %v278
        %v1232 = vsel %vm1088, %v294, 0.0
        %v1233 = vadd.f32 %v1231, %v1232
        %v1234 = vrot.slane %v1233, 4
        %v1235 = vadd.f32 %v1233, %v1234
        %v1236 = vrot.slane %v1235, 2
        %v1237 = vadd.f32 %v1235, %v1236
        %v1238 = vrot.slane %v1237, 1
        %v1239 = vadd.f32 %v1237, %v1238
        %v1240 = vadd.f32 %v199, %v215
        %v1241 = vadd.f32 %v1240, %v231
        %v1242 = vadd.f32 %v1241, %v247
        %v1243 = vadd.f32 %v1242, %v263
        %v1244 = vadd.f32 %v1243, %v279
        %v1245 = vsel %vm1088, %v295, 0.0
        %v1246 = vadd.f32 %v1244, %v1245
        %v1247 = vrot.slane %v1246, 4
        %v1248 = vadd.f32 %v1246, %v1247
        %v1249 = vrot.slane %v1248, 2
        %v1250 = vadd.f32 %v1248, %v1249
        %v1251 = vrot.slane %v1250, 1
        %v1252 = vadd.f32 %v1250, %v1251
        %v1253 = vadd.f32 %v200, %v216
        %v1254 = vadd.f32 %v1253, %v232
        %v1255 = vadd.f32 %v1254, %v248
        %v1256 = vadd.f32 %v1255, %v264
        %v1257 = vadd.f32 %v1256, %v280
        %v1258 = vsel %vm1088, %v296, 0.0
        %v1259 = vadd.f32 %v1257, %v1258
        %v1260 = vrot.slane %v1259, 4
        %v1261 = vadd.f32 %v1259, %v1260
        %v1262 = vrot.slane %v1261, 2
        %v1263 = vadd.f32 %v1261, %v1262
        %v1264 = vrot.slane %v1263, 1
        %v1265 = vadd.f32 %v1263, %v1264
        %v1266 = vadd.f32 %v201, %v217
        %v1267 = vadd.f32 %v1266, %v233
        %v1268 = vadd.f32 %v1267, %v249
        %v1269 = vadd.f32 %v1268, %v265
        %v1270 = vadd.f32 %v1269, %v281
        %v1271 = vsel %vm1088, %v297, 0.0
        %v1272 = vadd.f32 %v1270, %v1271
        %v1273 = vrot.slane %v1272, 4
        %v1274 = vadd.f32 %v1272, %v1273
        %v1275 = vrot.slane %v1274, 2
        %v1276 = vadd.f32 %v1274, %v1275
        %v1277 = vrot.slane %v1276, 1
        %v1278 = vadd.f32 %v1276, %v1277
        %v1279 = vadd.f32 %v202, %v218
        %v1280 = vadd.f32 %v1279, %v234
        %v1281 = vadd.f32 %v1280, %v250
        %v1282 = vadd.f32 %v1281, %v266
        %v1283 = vadd.f32 %v1282, %v282
        %v1284 = vsel %vm1088, %v298, 0.0
        %v1285 = vadd.f32 %v1283, %v1284
        %v1286 = vrot.slane %v1285, 4
        %v1287 = vadd.f32 %v1285, %v1286
        %v1288 = vrot.slane %v1287, 2
        %v1289 = vadd.f32 %v1287, %v1288
        %v1290 = vrot.slane %v1289, 1
        %v1291 = vadd.f32 %v1289, %v1290
        %v1292 = vadd.f32 %v299, %v315
        %v1293 = vadd.f32 %v1292, %v331
        %v1294 = vadd.f32 %v1293, %v347
        %v1295 = vadd.f32 %v1294, %v363
        %v1296 = vadd.f32 %v1295, %v379
        %v1297 = vsel %vm1088, %v395, 0.0
        %v1298 = vadd.f32 %v1296, %v1297
        %v1299 = vrot.slane %v1298, 4
        %v1300 = vadd.f32 %v1298, %v1299
        %v1301 = vrot.slane %v1300, 2
        %v1302 = vadd.f32 %v1300, %v1301
        %v1303 = vrot.slane %v1302, 1
        %v1304 = vadd.f32 %v1302, %v1303
        %v1305 = vadd.f32 %v300, %v316
        %v1306 = vadd.f32 %v1305, %v332
        %v1307 = vadd.f32 %v1306, %v348
        %v1308 = vadd.f32 %v1307, %v364
        %v1309 = vadd.f32 %v1308, %v380
        %v1310 = vsel %vm1088, %v396, 0.0
        %v1311 = vadd.f32 %v1309, %v1310
        %v1312 = vrot.slane %v1311, 4
        %v1313 = vadd.f32 %v1311, %v1312
        %v1314 = vrot.slane %v1313, 2
        %v1315 = vadd.f32 %v1313, %v1314
        %v1316 = vrot.slane %v1315, 1
        %v1317 = vadd.f32 %v1315, %v1316
        %v1318 = vadd.f32 %v301, %v317
        %v1319 = vadd.f32 %v1318, %v333
        %v1320 = vadd.f32 %v1319, %v349
        %v1321 = vadd.f32 %v1320, %v365
        %v1322 = vadd.f32 %v1321, %v381
        %v1323 = vsel %vm1088, %v397, 0.0
        %v1324 = vadd.f32 %v1322, %v1323
        %v1325 = vrot.slane %v1324, 4
        %v1326 = vadd.f32 %v1324, %v1325
        %v1327 = vrot.slane %v1326, 2
        %v1328 = vadd.f32 %v1326, %v1327
        %v1329 = vrot.slane %v1328, 1
        %v1330 = vadd.f32 %v1328, %v1329
        %v1331 = vadd.f32 %v302, %v318
        %v1332 = vadd.f32 %v1331, %v334
        %v1333 = vadd.f32 %v1332, %v350
        %v1334 = vadd.f32 %v1333, %v366
        %v1335 = vadd.f32 %v1334, %v382
        %v1336 = vsel %vm1088, %v398, 0.0
        %v1337 = vadd.f32 %v1335, %v1336
        %v1338 = vrot.slane %v1337, 4
        %v1339 = vadd.f32 %v1337, %v1338
        %v1340 = vrot.slane %v1339, 2
        %v1341 = vadd.f32 %v1339, %v1340
        %v1342 = vrot.slane %v1341, 1
        %v1343 = vadd.f32 %v1341, %v1342
        %v1344 = vadd.f32 %v303, %v319
        %v1345 = vadd.f32 %v1344, %v335
        %v1346 = vadd.f32 %v1345, %v351
        %v1347 = vadd.f32 %v1346, %v367
        %v1348 = vadd.f32 %v1347, %v383
        %v1349 = vsel %vm1088, %v399, 0.0
        %v1350 = vadd.f32 %v1348, %v1349
        %v1351 = vrot.slane %v1350, 4
        %v1352 = vadd.f32 %v1350, %v1351
        %v1353 = vrot.slane %v1352, 2
        %v1354 = vadd.f32 %v1352, %v1353
        %v1355 = vrot.slane %v1354, 1
        %v1356 = vadd.f32 %v1354, %v1355
        %v1357 = vadd.f32 %v304, %v320
        %v1358 = vadd.f32 %v1357, %v336
        %v1359 = vadd.f32 %v1358, %v352
        %v1360 = vadd.f32 %v1359, %v368
        %v1361 = vadd.f32 %v1360, %v384
        %v1362 = vsel %vm1088, %v400, 0.0
        %v1363 = vadd.f32 %v1361, %v1362
        %v1364 = vrot.slane %v1363, 4
        %v1365 = vadd.f32 %v1363, %v1364
        %v1366 = vrot.slane %v1365, 2
        %v1367 = vadd.f32 %v1365, %v1366
        %v1368 = vrot.slane %v1367, 1
        %v1369 = vadd.f32 %v1367, %v1368
        %v1370 = vadd.f32 %v305, %v321
        %v1371 = vadd.f32 %v1370, %v337
        %v1372 = vadd.f32 %v1371, %v353
        %v1373 = vadd.f32 %v1372, %v369
        %v1374 = vadd.f32 %v1373, %v385
        %v1375 = vsel %vm1088, %v401, 0.0
        %v1376 = vadd.f32 %v1374, %v1375
        %v1377 = vrot.slane %v1376, 4
        %v1378 = vadd.f32 %v1376, %v1377
        %v1379 = vrot.slane %v1378, 2
        %v1380 = vadd.f32 %v1378, %v1379
        %v1381 = vrot.slane %v1380, 1
        %v1382 = vadd.f32 %v1380, %v1381
        %v1383 = vadd.f32 %v306, %v322
        %v1384 = vadd.f32 %v1383, %v338
        %v1385 = vadd.f32 %v1384, %v354
        %v1386 = vadd.f32 %v1385, %v370
        %v1387 = vadd.f32 %v1386, %v386
        %v1388 = vsel %vm1088, %v402, 0.0
        %v1389 = vadd.f32 %v1387, %v1388
        %v1390 = vrot.slane %v1389, 4
        %v1391 = vadd.f32 %v1389, %v1390
        %v1392 = vrot.slane %v1391, 2
        %v1393 = vadd.f32 %v1391, %v1392
        %v1394 = vrot.slane %v1393, 1
        %v1395 = vadd.f32 %v1393, %v1394
        %v1396 = vadd.f32 %v307, %v323
        %v1397 = vadd.f32 %v1396, %v339
        %v1398 = vadd.f32 %v1397, %v355
        %v1399 = vadd.f32 %v1398, %v371
        %v1400 = vadd.f32 %v1399, %v387
        %v1401 = vsel %vm1088, %v403, 0.0
        %v1402 = vadd.f32 %v1400, %v1401
        %v1403 = vrot.slane %v1402, 4
        %v1404 = vadd.f32 %v1402, %v1403
        %v1405 = vrot.slane %v1404, 2
        %v1406 = vadd.f32 %v1404, %v1405
        %v1407 = vrot.slane %v1406, 1
        %v1408 = vadd.f32 %v1406, %v1407
        %v1409 = vadd.f32 %v308, %v324
        %v1410 = vadd.f32 %v1409, %v340
        %v1411 = vadd.f32 %v1410, %v356
        %v1412 = vadd.f32 %v1411, %v372
        %v1413 = vadd.f32 %v1412, %v388
        %v1414 = vsel %vm1088, %v404, 0.0
        %v1415 = vadd.f32 %v1413, %v1414
        %v1416 = vrot.slane %v1415, 4
        %v1417 = vadd.f32 %v1415, %v1416
        %v1418 = vrot.slane %v1417, 2
        %v1419 = vadd.f32 %v1417, %v1418
        %v1420 = vrot.slane %v1419, 1
        %v1421 = vadd.f32 %v1419, %v1420
        %v1422 = vadd.f32 %v309, %v325
        %v1423 = vadd.f32 %v1422, %v341
        %v1424 = vadd.f32 %v1423, %v357
        %v1425 = vadd.f32 %v1424, %v373
        %v1426 = vadd.f32 %v1425, %v389
        %v1427 = vsel %vm1088, %v405, 0.0
        %v1428 = vadd.f32 %v1426, %v1427
        %v1429 = vrot.slane %v1428, 4
        %v1430 = vadd.f32 %v1428, %v1429
        %v1431 = vrot.slane %v1430, 2
        %v1432 = vadd.f32 %v1430, %v1431
        %v1433 = vrot.slane %v1432, 1
        %v1434 = vadd.f32 %v1432, %v1433
        %v1435 = vadd.f32 %v310, %v326
        %v1436 = vadd.f32 %v1435, %v342
        %v1437 = vadd.f32 %v1436, %v358
        %v1438 = vadd.f32 %v1437, %v374
        %v1439 = vadd.f32 %v1438, %v390
        %v1440 = vsel %vm1088, %v406, 0.0
        %v1441 = vadd.f32 %v1439, %v1440
        %v1442 = vrot.slane %v1441, 4
        %v1443 = vadd.f32 %v1441, %v1442
        %v1444 = vrot.slane %v1443, 2
        %v1445 = vadd.f32 %v1443, %v1444
        %v1446 = vrot.slane %v1445, 1
        %v1447 = vadd.f32 %v1445, %v1446
        %v1448 = vadd.f32 %v311, %v327
        %v1449 = vadd.f32 %v1448, %v343
        %v1450 = vadd.f32 %v1449, %v359
        %v1451 = vadd.f32 %v1450, %v375
        %v1452 = vadd.f32 %v1451, %v391
        %v1453 = vsel %vm1088, %v407, 0.0
        %v1454 = vadd.f32 %v1452, %v1453
        %v1455 = vrot.slane %v1454, 4
        %v1456 = vadd.f32 %v1454, %v1455
        %v1457 = vrot.slane %v1456, 2
        %v1458 = vadd.f32 %v1456, %v1457
        %v1459 = vrot.slane %v1458, 1
        %v1460 = vadd.f32 %v1458, %v1459
        %v1461 = vadd.f32 %v312, %v328
        %v1462 = vadd.f32 %v1461, %v344
        %v1463 = vadd.f32 %v1462, %v360
        %v1464 = vadd.f32 %v1463, %v376
        %v1465 = vadd.f32 %v1464, %v392
        %v1466 = vsel %vm1088, %v408, 0.0
        %v1467 = vadd.f32 %v1465, %v1466
        %v1468 = vrot.slane %v1467, 4
        %v1469 = vadd.f32 %v1467, %v1468
        %v1470 = vrot.slane %v1469, 2
        %v1471 = vadd.f32 %v1469, %v1470
        %v1472 = vrot.slane %v1471, 1
        %v1473 = vadd.f32 %v1471, %v1472
        %v1474 = vadd.f32 %v313, %v329
        %v1475 = vadd.f32 %v1474, %v345
        %v1476 = vadd.f32 %v1475, %v361
        %v1477 = vadd.f32 %v1476, %v377
        %v1478 = vadd.f32 %v1477, %v393
        %v1479 = vsel %vm1088, %v409, 0.0
        %v1480 = vadd.f32 %v1478, %v1479
        %v1481 = vrot.slane %v1480, 4
        %v1482 = vadd.f32 %v1480, %v1481
        %v1483 = vrot.slane %v1482, 2
        %v1484 = vadd.f32 %v1482, %v1483
        %v1485 = vrot.slane %v1484, 1
        %v1486 = vadd.f32 %v1484, %v1485
        %v1487 = vadd.f32 %v314, %v330
        %v1488 = vadd.f32 %v1487, %v346
        %v1489 = vadd.f32 %v1488, %v362
        %v1490 = vadd.f32 %v1489, %v378
        %v1491 = vadd.f32 %v1490, %v394
        %v1492 = vsel %vm1088, %v410, 0.0
        %v1493 = vadd.f32 %v1491, %v1492
        %v1494 = vrot.slane %v1493, 4
        %v1495 = vadd.f32 %v1493, %v1494
        %v1496 = vrot.slane %v1495, 2
        %v1497 = vadd.f32 %v1495, %v1496
        %v1498 = vrot.slane %v1497, 1
        %v1499 = vadd.f32 %v1497, %v1498
        %v1500 = vadd.f32 %v411, %v427
        %v1501 = vadd.f32 %v1500, %v443
        %v1502 = vadd.f32 %v1501, %v459
        %v1503 = vadd.f32 %v1502, %v475
        %v1504 = vadd.f32 %v1503, %v491
        %v1505 = vsel %vm1088, %v507, 0.0
        %v1506 = vadd.f32 %v1504, %v1505
        %v1507 = vrot.slane %v1506, 4
        %v1508 = vadd.f32 %v1506, %v1507
        %v1509 = vrot.slane %v1508, 2
        %v1510 = vadd.f32 %v1508, %v1509
        %v1511 = vrot.slane %v1510, 1
        %v1512 = vadd.f32 %v1510, %v1511
        %v1513 = vadd.f32 %v412, %v428
        %v1514 = vadd.f32 %v1513, %v444
        %v1515 = vadd.f32 %v1514, %v460
        %v1516 = vadd.f32 %v1515, %v476
        %v1517 = vadd.f32 %v1516, %v492
        %v1518 = vsel %vm1088, %v508, 0.0
        %v1519 = vadd.f32 %v1517, %v1518
        %v1520 = vrot.slane %v1519, 4
        %v1521 = vadd.f32 %v1519, %v1520
        %v1522 = vrot.slane %v1521, 2
        %v1523 = vadd.f32 %v1521, %v1522
        %v1524 = vrot.slane %v1523, 1
        %v1525 = vadd.f32 %v1523, %v1524
        %v1526 = vadd.f32 %v413, %v429
        %v1527 = vadd.f32 %v1526, %v445
        %v1528 = vadd.f32 %v1527, %v461
        %v1529 = vadd.f32 %v1528, %v477
        %v1530 = vadd.f32 %v1529, %v493
        %v1531 = vsel %vm1088, %v509, 0.0
        %v1532 = vadd.f32 %v1530, %v1531
        %v1533 = vrot.slane %v1532, 4
        %v1534 = vadd.f32 %v1532, %v1533
        %v1535 = vrot.slane %v1534, 2
        %v1536 = vadd.f32 %v1534, %v1535
        %v1537 = vrot.slane %v1536, 1
        %v1538 = vadd.f32 %v1536, %v1537
        %v1539 = vadd.f32 %v414, %v430
        %v1540 = vadd.f32 %v1539, %v446
        %v1541 = vadd.f32 %v1540, %v462
        %v1542 = vadd.f32 %v1541, %v478
        %v1543 = vadd.f32 %v1542, %v494
        %v1544 = vsel %vm1088, %v510, 0.0
        %v1545 = vadd.f32 %v1543, %v1544
        %v1546 = vrot.slane %v1545, 4
        %v1547 = vadd.f32 %v1545, %v1546
        %v1548 = vrot.slane %v1547, 2
        %v1549 = vadd.f32 %v1547, %v1548
        %v1550 = vrot.slane %v1549, 1
        %v1551 = vadd.f32 %v1549, %v1550
        %v1552 = vadd.f32 %v415, %v431
        %v1553 = vadd.f32 %v1552, %v447
        %v1554 = vadd.f32 %v1553, %v463
        %v1555 = vadd.f32 %v1554, %v479
        %v1556 = vadd.f32 %v1555, %v495
        %v1557 = vsel %vm1088, %v511, 0.0
        %v1558 = vadd.f32 %v1556, %v1557
        %v1559 = vrot.slane %v1558, 4
        %v1560 = vadd.f32 %v1558, %v1559
        %v1561 = vrot.slane %v1560, 2
        %v1562 = vadd.f32 %v1560, %v1561
        %v1563 = vrot.slane %v1562, 1
        %v1564 = vadd.f32 %v1562, %v1563
        %v1565 = vadd.f32 %v416, %v432
        %v1566 = vadd.f32 %v1565, %v448
        %v1567 = vadd.f32 %v1566, %v464
        %v1568 = vadd.f32 %v1567, %v480
        %v1569 = vadd.f32 %v1568, %v496
        %v1570 = vsel %vm1088, %v512, 0.0
        %v1571 = vadd.f32 %v1569, %v1570
        %v1572 = vrot.slane %v1571, 4
        %v1573 = vadd.f32 %v1571, %v1572
        %v1574 = vrot.slane %v1573, 2
        %v1575 = vadd.f32 %v1573, %v1574
        %v1576 = vrot.slane %v1575, 1
        %v1577 = vadd.f32 %v1575, %v1576
        %v1578 = vadd.f32 %v417, %v433
        %v1579 = vadd.f32 %v1578, %v449
        %v1580 = vadd.f32 %v1579, %v465
        %v1581 = vadd.f32 %v1580, %v481
        %v1582 = vadd.f32 %v1581, %v497
        %v1583 = vsel %vm1088, %v513, 0.0
        %v1584 = vadd.f32 %v1582, %v1583
        %v1585 = vrot.slane %v1584, 4
        %v1586 = vadd.f32 %v1584, %v1585
        %v1587 = vrot.slane %v1586, 2
        %v1588 = vadd.f32 %v1586, %v1587
        %v1589 = vrot.slane %v1588, 1
        %v1590 = vadd.f32 %v1588, %v1589
        %v1591 = vadd.f32 %v418, %v434
        %v1592 = vadd.f32 %v1591, %v450
        %v1593 = vadd.f32 %v1592, %v466
        %v1594 = vadd.f32 %v1593, %v482
        %v1595 = vadd.f32 %v1594, %v498
        %v1596 = vsel %vm1088, %v514, 0.0
        %v1597 = vadd.f32 %v1595, %v1596
        %v1598 = vrot.slane %v1597, 4
        %v1599 = vadd.f32 %v1597, %v1598
        %v1600 = vrot.slane %v1599, 2
        %v1601 = vadd.f32 %v1599, %v1600
        %v1602 = vrot.slane %v1601, 1
        %v1603 = vadd.f32 %v1601, %v1602
        %v1604 = vadd.f32 %v419, %v435
        %v1605 = vadd.f32 %v1604, %v451
        %v1606 = vadd.f32 %v1605, %v467
        %v1607 = vadd.f32 %v1606, %v483
        %v1608 = vadd.f32 %v1607, %v499
        %v1609 = vsel %vm1088, %v515, 0.0
        %v1610 = vadd.f32 %v1608, %v1609
        %v1611 = vrot.slane %v1610, 4
        %v1612 = vadd.f32 %v1610, %v1611
        %v1613 = vrot.slane %v1612, 2
        %v1614 = vadd.f32 %v1612, %v1613
        %v1615 = vrot.slane %v1614, 1
        %v1616 = vadd.f32 %v1614, %v1615
        %v1617 = vadd.f32 %v420, %v436
        %v1618 = vadd.f32 %v1617, %v452
        %v1619 = vadd.f32 %v1618, %v468
        %v1620 = vadd.f32 %v1619, %v484
        %v1621 = vadd.f32 %v1620, %v500
        %v1622 = vsel %vm1088, %v516, 0.0
        %v1623 = vadd.f32 %v1621, %v1622
        %v1624 = vrot.slane %v1623, 4
        %v1625 = vadd.f32 %v1623, %v1624
        %v1626 = vrot.slane %v1625, 2
        %v1627 = vadd.f32 %v1625, %v1626
        %v1628 = vrot.slane %v1627, 1
        %v1629 = vadd.f32 %v1627, %v1628
        %v1630 = vadd.f32 %v421, %v437
        %v1631 = vadd.f32 %v1630, %v453
        %v1632 = vadd.f32 %v1631, %v469
        %v1633 = vadd.f32 %v1632, %v485
        %v1634 = vadd.f32 %v1633, %v501
        %v1635 = vsel %vm1088, %v517, 0.0
        %v1636 = vadd.f32 %v1634, %v1635
        %v1637 = vrot.slane %v1636, 4
        %v1638 = vadd.f32 %v1636, %v1637
        %v1639 = vrot.slane %v1638, 2
        %v1640 = vadd.f32 %v1638, %v1639
        %v1641 = vrot.slane %v1640, 1
        %v1642 = vadd.f32 %v1640, %v1641
        %v1643 = vadd.f32 %v422, %v438
        %v1644 = vadd.f32 %v1643, %v454
        %v1645 = vadd.f32 %v1644, %v470
        %v1646 = vadd.f32 %v1645, %v486
        %v1647 = vadd.f32 %v1646, %v502
        %v1648 = vsel %vm1088, %v518, 0.0
        %v1649 = vadd.f32 %v1647, %v1648
        %v1650 = vrot.slane %v1649, 4
        %v1651 = vadd.f32 %v1649, %v1650
        %v1652 = vrot.slane %v1651, 2
        %v1653 = vadd.f32 %v1651, %v1652
        %v1654 = vrot.slane %v1653, 1
        %v1655 = vadd.f32 %v1653, %v1654
        %v1656 = vadd.f32 %v423, %v439
        %v1657 = vadd.f32 %v1656, %v455
        %v1658 = vadd.f32 %v1657, %v471
        %v1659 = vadd.f32 %v1658, %v487
        %v1660 = vadd.f32 %v1659, %v503
        %v1661 = vsel %vm1088, %v519, 0.0
        %v1662 = vadd.f32 %v1660, %v1661
        %v1663 = vrot.slane %v1662, 4
        %v1664 = vadd.f32 %v1662, %v1663
        %v1665 = vrot.slane %v1664, 2
        %v1666 = vadd.f32 %v1664, %v1665
        %v1667 = vrot.slane %v1666, 1
        %v1668 = vadd.f32 %v1666, %v1667
        %v1669 = vadd.f32 %v424, %v440
        %v1670 = vadd.f32 %v1669, %v456
        %v1671 = vadd.f32 %v1670, %v472
        %v1672 = vadd.f32 %v1671, %v488
        %v1673 = vadd.f32 %v1672, %v504
        %v1674 = vsel %vm1088, %v520, 0.0
        %v1675 = vadd.f32 %v1673, %v1674
        %v1676 = vrot.slane %v1675, 4
        %v1677 = vadd.f32 %v1675, %v1676
        %v1678 = vrot.slane %v1677, 2
        %v1679 = vadd.f32 %v1677, %v1678
        %v1680 = vrot.slane %v1679, 1
        %v1681 = vadd.f32 %v1679, %v1680
        %v1682 = vadd.f32 %v425, %v441
        %v1683 = vadd.f32 %v1682, %v457
        %v1684 = vadd.f32 %v1683, %v473
        %v1685 = vadd.f32 %v1684, %v489
        %v1686 = vadd.f32 %v1685, %v505
        %v1687 = vsel %vm1088, %v521, 0.0
        %v1688 = vadd.f32 %v1686, %v1687
        %v1689 = vrot.slane %v1688, 4
        %v1690 = vadd.f32 %v1688, %v1689
        %v1691 = vrot.slane %v1690, 2
        %v1692 = vadd.f32 %v1690, %v1691
        %v1693 = vrot.slane %v1692, 1
        %v1694 = vadd.f32 %v1692, %v1693
        %v1695 = vadd.f32 %v426, %v442
        %v1696 = vadd.f32 %v1695, %v458
        %v1697 = vadd.f32 %v1696, %v474
        %v1698 = vadd.f32 %v1697, %v490
        %v1699 = vadd.f32 %v1698, %v506
        %v1700 = vsel %vm1088, %v522, 0.0
        %v1701 = vadd.f32 %v1699, %v1700
        %v1702 = vrot.slane %v1701, 4
        %v1703 = vadd.f32 %v1701, %v1702
        %v1704 = vrot.slane %v1703, 2
        %v1705 = vadd.f32 %v1703, %v1704
        %v1706 = vrot.slane %v1705, 1
        %v1707 = vadd.f32 %v1705, %v1706
        %v1708 = vadd.f32 %v523, %v539
        %v1709 = vadd.f32 %v1708, %v555
        %v1710 = vadd.f32 %v1709, %v571
        %v1711 = vadd.f32 %v1710, %v587
        %v1712 = vadd.f32 %v1711, %v603
        %v1713 = vsel %vm1088, %v619, 0.0
        %v1714 = vadd.f32 %v1712, %v1713
        %v1715 = vrot.slane %v1714, 4
        %v1716 = vadd.f32 %v1714, %v1715
        %v1717 = vrot.slane %v1716, 2
        %v1718 = vadd.f32 %v1716, %v1717
        %v1719 = vrot.slane %v1718, 1
        %v1720 = vadd.f32 %v1718, %v1719
        %v1721 = vadd.f32 %v524, %v540
        %v1722 = vadd.f32 %v1721, %v556
        %v1723 = vadd.f32 %v1722, %v572
        %v1724 = vadd.f32 %v1723, %v588
        %v1725 = vadd.f32 %v1724, %v604
        %v1726 = vsel %vm1088, %v620, 0.0
        %v1727 = vadd.f32 %v1725, %v1726
        %v1728 = vrot.slane %v1727, 4
        %v1729 = vadd.f32 %v1727, %v1728
        %v1730 = vrot.slane %v1729, 2
        %v1731 = vadd.f32 %v1729, %v1730
        %v1732 = vrot.slane %v1731, 1
        %v1733 = vadd.f32 %v1731, %v1732
        %v1734 = vadd.f32 %v525, %v541
        %v1735 = vadd.f32 %v1734, %v557
        %v1736 = vadd.f32 %v1735, %v573
        %v1737 = vadd.f32 %v1736, %v589
        %v1738 = vadd.f32 %v1737, %v605
        %v1739 = vsel %vm1088, %v621, 0.0
        %v1740 = vadd.f32 %v1738, %v1739
        %v1741 = vrot.slane %v1740, 4
        %v1742 = vadd.f32 %v1740, %v1741
        %v1743 = vrot.slane %v1742, 2
        %v1744 = vadd.f32 %v1742, %v1743
        %v1745 = vrot.slane %v1744, 1
        %v1746 = vadd.f32 %v1744, %v1745
        %v1747 = vadd.f32 %v526, %v542
        %v1748 = vadd.f32 %v1747, %v558
        %v1749 = vadd.f32 %v1748, %v574
        %v1750 = vadd.f32 %v1749, %v590
        %v1751 = vadd.f32 %v1750, %v606
        %v1752 = vsel %vm1088, %v622, 0.0
        %v1753 = vadd.f32 %v1751, %v1752
        %v1754 = vrot.slane %v1753, 4
        %v1755 = vadd.f32 %v1753, %v1754
        %v1756 = vrot.slane %v1755, 2
        %v1757 = vadd.f32 %v1755, %v1756
        %v1758 = vrot.slane %v1757, 1
        %v1759 = vadd.f32 %v1757, %v1758
        %v1760 = vadd.f32 %v527, %v543
        %v1761 = vadd.f32 %v1760, %v559
        %v1762 = vadd.f32 %v1761, %v575
        %v1763 = vadd.f32 %v1762, %v591
        %v1764 = vadd.f32 %v1763, %v607
        %v1765 = vsel %vm1088, %v623, 0.0
        %v1766 = vadd.f32 %v1764, %v1765
        %v1767 = vrot.slane %v1766, 4
        %v1768 = vadd.f32 %v1766, %v1767
        %v1769 = vrot.slane %v1768, 2
        %v1770 = vadd.f32 %v1768, %v1769
        %v1771 = vrot.slane %v1770, 1
        %v1772 = vadd.f32 %v1770, %v1771
        %v1773 = vadd.f32 %v528, %v544
        %v1774 = vadd.f32 %v1773, %v560
        %v1775 = vadd.f32 %v1774, %v576
        %v1776 = vadd.f32 %v1775, %v592
        %v1777 = vadd.f32 %v1776, %v608
        %v1778 = vsel %vm1088, %v624, 0.0
        %v1779 = vadd.f32 %v1777, %v1778
        %v1780 = vrot.slane %v1779, 4
        %v1781 = vadd.f32 %v1779, %v1780
        %v1782 = vrot.slane %v1781, 2
        %v1783 = vadd.f32 %v1781, %v1782
        %v1784 = vrot.slane %v1783, 1
        %v1785 = vadd.f32 %v1783, %v1784
        %v1786 = vadd.f32 %v529, %v545
        %v1787 = vadd.f32 %v1786, %v561
        %v1788 = vadd.f32 %v1787, %v577
        %v1789 = vadd.f32 %v1788, %v593
        %v1790 = vadd.f32 %v1789, %v609
        %v1791 = vsel %vm1088, %v625, 0.0
        %v1792 = vadd.f32 %v1790, %v1791
        %v1793 = vrot.slane %v1792, 4
        %v1794 = vadd.f32 %v1792, %v1793
        %v1795 = vrot.slane %v1794, 2
        %v1796 = vadd.f32 %v1794, %v1795
        %v1797 = vrot.slane %v1796, 1
        %v1798 = vadd.f32 %v1796, %v1797
        %v1799 = vadd.f32 %v530, %v546
        %v1800 = vadd.f32 %v1799, %v562
        %v1801 = vadd.f32 %v1800, %v578
        %v1802 = vadd.f32 %v1801, %v594
        %v1803 = vadd.f32 %v1802, %v610
        %v1804 = vsel %vm1088, %v626, 0.0
        %v1805 = vadd.f32 %v1803, %v1804
        %v1806 = vrot.slane %v1805, 4
        %v1807 = vadd.f32 %v1805, %v1806
        %v1808 = vrot.slane %v1807, 2
        %v1809 = vadd.f32 %v1807, %v1808
        %v1810 = vrot.slane %v1809, 1
        %v1811 = vadd.f32 %v1809, %v1810
        %v1812 = vadd.f32 %v531, %v547
        %v1813 = vadd.f32 %v1812, %v563
        %v1814 = vadd.f32 %v1813, %v579
        %v1815 = vadd.f32 %v1814, %v595
        %v1816 = vadd.f32 %v1815, %v611
        %v1817 = vsel %vm1088, %v627, 0.0
        %v1818 = vadd.f32 %v1816, %v1817
        %v1819 = vrot.slane %v1818, 4
        %v1820 = vadd.f32 %v1818, %v1819
        %v1821 = vrot.slane %v1820, 2
        %v1822 = vadd.f32 %v1820, %v1821
        %v1823 = vrot.slane %v1822, 1
        %v1824 = vadd.f32 %v1822, %v1823
        %v1825 = vadd.f32 %v532, %v548
        %v1826 = vadd.f32 %v1825, %v564
        %v1827 = vadd.f32 %v1826, %v580
        %v1828 = vadd.f32 %v1827, %v596
        %v1829 = vadd.f32 %v1828, %v612
        %v1830 = vsel %vm1088, %v628, 0.0
        %v1831 = vadd.f32 %v1829, %v1830
        %v1832 = vrot.slane %v1831, 4
        %v1833 = vadd.f32 %v1831, %v1832
        %v1834 = vrot.slane %v1833, 2
        %v1835 = vadd.f32 %v1833, %v1834
        %v1836 = vrot.slane %v1835, 1
        %v1837 = vadd.f32 %v1835, %v1836
        %v1838 = vadd.f32 %v533, %v549
        %v1839 = vadd.f32 %v1838, %v565
        %v1840 = vadd.f32 %v1839, %v581
        %v1841 = vadd.f32 %v1840, %v597
        %v1842 = vadd.f32 %v1841, %v613
        %v1843 = vsel %vm1088, %v629, 0.0
        %v1844 = vadd.f32 %v1842, %v1843
        %v1845 = vrot.slane %v1844, 4
        %v1846 = vadd.f32 %v1844, %v1845
        %v1847 = vrot.slane %v1846, 2
        %v1848 = vadd.f32 %v1846, %v1847
        %v1849 = vrot.slane %v1848, 1
        %v1850 = vadd.f32 %v1848, %v1849
        %v1851 = vadd.f32 %v534, %v550
        %v1852 = vadd.f32 %v1851, %v566
        %v1853 = vadd.f32 %v1852, %v582
        %v1854 = vadd.f32 %v1853, %v598
        %v1855 = vadd.f32 %v1854, %v614
        %v1856 = vsel %vm1088, %v630, 0.0
        %v1857 = vadd.f32 %v1855, %v1856
        %v1858 = vrot.slane %v1857, 4
        %v1859 = vadd.f32 %v1857, %v1858
        %v1860 = vrot.slane %v1859, 2
        %v1861 = vadd.f32 %v1859, %v1860
        %v1862 = vrot.slane %v1861, 1
        %v1863 = vadd.f32 %v1861, %v1862
        %v1864 = vadd.f32 %v535, %v551
        %v1865 = vadd.f32 %v1864, %v567
        %v1866 = vadd.f32 %v1865, %v583
        %v1867 = vadd.f32 %v1866, %v599
        %v1868 = vadd.f32 %v1867, %v615
        %v1869 = vsel %vm1088, %v631, 0.0
        %v1870 = vadd.f32 %v1868, %v1869
        %v1871 = vrot.slane %v1870, 4
        %v1872 = vadd.f32 %v1870, %v1871
        %v1873 = vrot.slane %v1872, 2
        %v1874 = vadd.f32 %v1872, %v1873
        %v1875 = vrot.slane %v1874, 1
        %v1876 = vadd.f32 %v1874, %v1875
        %v1877 = vadd.f32 %v536, %v552
        %v1878 = vadd.f32 %v1877, %v568
        %v1879 = vadd.f32 %v1878, %v584
        %v1880 = vadd.f32 %v1879, %v600
        %v1881 = vadd.f32 %v1880, %v616
        %v1882 = vsel %vm1088, %v632, 0.0
        %v1883 = vadd.f32 %v1881, %v1882
        %v1884 = vrot.slane %v1883, 4
        %v1885 = vadd.f32 %v1883, %v1884
        %v1886 = vrot.slane %v1885, 2
        %v1887 = vadd.f32 %v1885, %v1886
        %v1888 = vrot.slane %v1887, 1
        %v1889 = vadd.f32 %v1887, %v1888
        %v1890 = vadd.f32 %v537, %v553
        %v1891 = vadd.f32 %v1890, %v569
        %v1892 = vadd.f32 %v1891, %v585
        %v1893 = vadd.f32 %v1892, %v601
        %v1894 = vadd.f32 %v1893, %v617
        %v1895 = vsel %vm1088, %v633, 0.0
        %v1896 = vadd.f32 %v1894, %v1895
        %v1897 = vrot.slane %v1896, 4
        %v1898 = vadd.f32 %v1896, %v1897
        %v1899 = vrot.slane %v1898, 2
        %v1900 = vadd.f32 %v1898, %v1899
        %v1901 = vrot.slane %v1900, 1
        %v1902 = vadd.f32 %v1900, %v1901
        %v1903 = vadd.f32 %v538, %v554
        %v1904 = vadd.f32 %v1903, %v570
        %v1905 = vadd.f32 %v1904, %v586
        %v1906 = vadd.f32 %v1905, %v602
        %v1907 = vadd.f32 %v1906, %v618
        %v1908 = vsel %vm1088, %v634, 0.0
        %v1909 = vadd.f32 %v1907, %v1908
        %v1910 = vrot.slane %v1909, 4
        %v1911 = vadd.f32 %v1909, %v1910
        %v1912 = vrot.slane %v1911, 2
        %v1913 = vadd.f32 %v1911, %v1912
        %v1914 = vrot.slane %v1913, 1
        %v1915 = vadd.f32 %v1913, %v1914
        %v1916 = vadd.f32 %v635, %v651
        %v1917 = vadd.f32 %v1916, %v667
        %v1918 = vadd.f32 %v1917, %v683
        %v1919 = vadd.f32 %v1918, %v699
        %v1920 = vadd.f32 %v1919, %v715
        %v1921 = vsel %vm1088, %v731, 0.0
        %v1922 = vadd.f32 %v1920, %v1921
        %v1923 = vrot.slane %v1922, 4
        %v1924 = vadd.f32 %v1922, %v1923
        %v1925 = vrot.slane %v1924, 2
        %v1926 = vadd.f32 %v1924, %v1925
        %v1927 = vrot.slane %v1926, 1
        %v1928 = vadd.f32 %v1926, %v1927
        %v1929 = vadd.f32 %v636, %v652
        %v1930 = vadd.f32 %v1929, %v668
        %v1931 = vadd.f32 %v1930, %v684
        %v1932 = vadd.f32 %v1931, %v700
        %v1933 = vadd.f32 %v1932, %v716
        %v1934 = vsel %vm1088, %v732, 0.0
        %v1935 = vadd.f32 %v1933, %v1934
        %v1936 = vrot.slane %v1935, 4
        %v1937 = vadd.f32 %v1935, %v1936
        %v1938 = vrot.slane %v1937, 2
        %v1939 = vadd.f32 %v1937, %v1938
        %v1940 = vrot.slane %v1939, 1
        %v1941 = vadd.f32 %v1939, %v1940
        %v1942 = vadd.f32 %v637, %v653
        %v1943 = vadd.f32 %v1942, %v669
        %v1944 = vadd.f32 %v1943, %v685
        %v1945 = vadd.f32 %v1944, %v701
        %v1946 = vadd.f32 %v1945, %v717
        %v1947 = vsel %vm1088, %v733, 0.0
        %v1948 = vadd.f32 %v1946, %v1947
        %v1949 = vrot.slane %v1948, 4
        %v1950 = vadd.f32 %v1948, %v1949
        %v1951 = vrot.slane %v1950, 2
        %v1952 = vadd.f32 %v1950, %v1951
        %v1953 = vrot.slane %v1952, 1
        %v1954 = vadd.f32 %v1952, %v1953
        %v1955 = vadd.f32 %v638, %v654
        %v1956 = vadd.f32 %v1955, %v670
        %v1957 = vadd.f32 %v1956, %v686
        %v1958 = vadd.f32 %v1957, %v702
        %v1959 = vadd.f32 %v1958, %v718
        %v1960 = vsel %vm1088, %v734, 0.0
        %v1961 = vadd.f32 %v1959, %v1960
        %v1962 = vrot.slane %v1961, 4
        %v1963 = vadd.f32 %v1961, %v1962
        %v1964 = vrot.slane %v1963, 2
        %v1965 = vadd.f32 %v1963, %v1964
        %v1966 = vrot.slane %v1965, 1
        %v1967 = vadd.f32 %v1965, %v1966
        %v1968 = vadd.f32 %v639, %v655
        %v1969 = vadd.f32 %v1968, %v671
        %v1970 = vadd.f32 %v1969, %v687
        %v1971 = vadd.f32 %v1970, %v703
        %v1972 = vadd.f32 %v1971, %v719
        %v1973 = vsel %vm1088, %v735, 0.0
        %v1974 = vadd.f32 %v1972, %v1973
        %v1975 = vrot.slane %v1974, 4
        %v1976 = vadd.f32 %v1974, %v1975
        %v1977 = vrot.slane %v1976, 2
        %v1978 = vadd.f32 %v1976, %v1977
        %v1979 = vrot.slane %v1978, 1
        %v1980 = vadd.f32 %v1978, %v1979
        %v1981 = vadd.f32 %v640, %v656
        %v1982 = vadd.f32 %v1981, %v672
        %v1983 = vadd.f32 %v1982, %v688
        %v1984 = vadd.f32 %v1983, %v704
        %v1985 = vadd.f32 %v1984, %v720
        %v1986 = vsel %vm1088, %v736, 0.0
        %v1987 = vadd.f32 %v1985, %v1986
        %v1988 = vrot.slane %v1987, 4
        %v1989 = vadd.f32 %v1987, %v1988
        %v1990 = vrot.slane %v1989, 2
        %v1991 = vadd.f32 %v1989, %v1990
        %v1992 = vrot.slane %v1991, 1
        %v1993 = vadd.f32 %v1991, %v1992
        %v1994 = vadd.f32 %v641, %v657
        %v1995 = vadd.f32 %v1994, %v673
        %v1996 = vadd.f32 %v1995, %v689
        %v1997 = vadd.f32 %v1996, %v705
        %v1998 = vadd.f32 %v1997, %v721
        %v1999 = vsel %vm1088, %v737, 0.0
        %v2000 = vadd.f32 %v1998, %v1999
        %v2001 = vrot.slane %v2000, 4
        %v2002 = vadd.f32 %v2000, %v2001
        %v2003 = vrot.slane %v2002, 2
        %v2004 = vadd.f32 %v2002, %v2003
        %v2005 = vrot.slane %v2004, 1
        %v2006 = vadd.f32 %v2004, %v2005
        %v2007 = vadd.f32 %v642, %v658
        %v2008 = vadd.f32 %v2007, %v674
        %v2009 = vadd.f32 %v2008, %v690
        %v2010 = vadd.f32 %v2009, %v706
        %v2011 = vadd.f32 %v2010, %v722
        %v2012 = vsel %vm1088, %v738, 0.0
        %v2013 = vadd.f32 %v2011, %v2012
        %v2014 = vrot.slane %v2013, 4
        %v2015 = vadd.f32 %v2013, %v2014
        %v2016 = vrot.slane %v2015, 2
        %v2017 = vadd.f32 %v2015, %v2016
        %v2018 = vrot.slane %v2017, 1
        %v2019 = vadd.f32 %v2017, %v2018
        %v2020 = vadd.f32 %v643, %v659
        %v2021 = vadd.f32 %v2020, %v675
        %v2022 = vadd.f32 %v2021, %v691
        %v2023 = vadd.f32 %v2022, %v707
        %v2024 = vadd.f32 %v2023, %v723
        %v2025 = vsel %vm1088, %v739, 0.0
        %v2026 = vadd.f32 %v2024, %v2025
        %v2027 = vrot.slane %v2026, 4
        %v2028 = vadd.f32 %v2026, %v2027
        %v2029 = vrot.slane %v2028, 2
        %v2030 = vadd.f32 %v2028, %v2029
        %v2031 = vrot.slane %v2030, 1
        %v2032 = vadd.f32 %v2030, %v2031
        %v2033 = vadd.f32 %v644, %v660
        %v2034 = vadd.f32 %v2033, %v676
        %v2035 = vadd.f32 %v2034, %v692
        %v2036 = vadd.f32 %v2035, %v708
        %v2037 = vadd.f32 %v2036, %v724
        %v2038 = vsel %vm1088, %v740, 0.0
        %v2039 = vadd.f32 %v2037, %v2038
        %v2040 = vrot.slane %v2039, 4
        %v2041 = vadd.f32 %v2039, %v2040
        %v2042 = vrot.slane %v2041, 2
        %v2043 = vadd.f32 %v2041, %v2042
        %v2044 = vrot.slane %v2043, 1
        %v2045 = vadd.f32 %v2043, %v2044
        %v2046 = vadd.f32 %v645, %v661
        %v2047 = vadd.f32 %v2046, %v677
        %v2048 = vadd.f32 %v2047, %v693
        %v2049 = vadd.f32 %v2048, %v709
        %v2050 = vadd.f32 %v2049, %v725
        %v2051 = vsel %vm1088, %v741, 0.0
        %v2052 = vadd.f32 %v2050, %v2051
        %v2053 = vrot.slane %v2052, 4
        %v2054 = vadd.f32 %v2052, %v2053
        %v2055 = vrot.slane %v2054, 2
        %v2056 = vadd.f32 %v2054, %v2055
        %v2057 = vrot.slane %v2056, 1
        %v2058 = vadd.f32 %v2056, %v2057
        %v2059 = vadd.f32 %v646, %v662
        %v2060 = vadd.f32 %v2059, %v678
        %v2061 = vadd.f32 %v2060, %v694
        %v2062 = vadd.f32 %v2061, %v710
        %v2063 = vadd.f32 %v2062, %v726
        %v2064 = vsel %vm1088, %v742, 0.0
        %v2065 = vadd.f32 %v2063, %v2064
        %v2066 = vrot.slane %v2065, 4
        %v2067 = vadd.f32 %v2065, %v2066
        %v2068 = vrot.slane %v2067, 2
        %v2069 = vadd.f32 %v2067, %v2068
        %v2070 = vrot.slane %v2069, 1
        %v2071 = vadd.f32 %v2069, %v2070
        %v2072 = vadd.f32 %v647, %v663
        %v2073 = vadd.f32 %v2072, %v679
        %v2074 = vadd.f32 %v2073, %v695
        %v2075 = vadd.f32 %v2074, %v711
        %v2076 = vadd.f32 %v2075, %v727
        %v2077 = vsel %vm1088, %v743, 0.0
        %v2078 = vadd.f32 %v2076, %v2077
        %v2079 = vrot.slane %v2078, 4
        %v2080 = vadd.f32 %v2078, %v2079
        %v2081 = vrot.slane %v2080, 2
        %v2082 = vadd.f32 %v2080, %v2081
        %v2083 = vrot.slane %v2082, 1
        %v2084 = vadd.f32 %v2082, %v2083
        %v2085 = vadd.f32 %v648, %v664
        %v2086 = vadd.f32 %v2085, %v680
        %v2087 = vadd.f32 %v2086, %v696
        %v2088 = vadd.f32 %v2087, %v712
        %v2089 = vadd.f32 %v2088, %v728
        %v2090 = vsel %vm1088, %v744, 0.0
        %v2091 = vadd.f32 %v2089, %v2090
        %v2092 = vrot.slane %v2091, 4
        %v2093 = vadd.f32 %v2091, %v2092
        %v2094 = vrot.slane %v2093, 2
        %v2095 = vadd.f32 %v2093, %v2094
        %v2096 = vrot.slane %v2095, 1
        %v2097 = vadd.f32 %v2095, %v2096
        %v2098 = vadd.f32 %v649, %v665
        %v2099 = vadd.f32 %v2098, %v681
        %v2100 = vadd.f32 %v2099, %v697
        %v2101 = vadd.f32 %v2100, %v713
        %v2102 = vadd.f32 %v2101, %v729
        %v2103 = vsel %vm1088, %v745, 0.0
        %v2104 = vadd.f32 %v2102, %v2103
        %v2105 = vrot.slane %v2104, 4
        %v2106 = vadd.f32 %v2104, %v2105
        %v2107 = vrot.slane %v2106, 2
        %v2108 = vadd.f32 %v2106, %v2107
        %v2109 = vrot.slane %v2108, 1
        %v2110 = vadd.f32 %v2108, %v2109
        %v2111 = vadd.f32 %v650, %v666
        %v2112 = vadd.f32 %v2111, %v682
        %v2113 = vadd.f32 %v2112, %v698
        %v2114 = vadd.f32 %v2113, %v714
        %v2115 = vadd.f32 %v2114, %v730
        %v2116 = vsel %vm1088, %v746, 0.0
        %v2117 = vadd.f32 %v2115, %v2116
        %v2118 = vrot.slane %v2117, 4
        %v2119 = vadd.f32 %v2117, %v2118
        %v2120 = vrot.slane %v2119, 2
        %v2121 = vadd.f32 %v2119, %v2120
        %v2122 = vrot.slane %v2121, 1
        %v2123 = vadd.f32 %v2121, %v2122
        %v2124 = vadd.f32 %v747, %v763
        %v2125 = vadd.f32 %v2124, %v779
        %v2126 = vadd.f32 %v2125, %v795
        %v2127 = vadd.f32 %v2126, %v811
        %v2128 = vadd.f32 %v2127, %v827
        %v2129 = vsel %vm1088, %v843, 0.0
        %v2130 = vadd.f32 %v2128, %v2129
        %v2131 = vrot.slane %v2130, 4
        %v2132 = vadd.f32 %v2130, %v2131
        %v2133 = vrot.slane %v2132, 2
        %v2134 = vadd.f32 %v2132, %v2133
        %v2135 = vrot.slane %v2134, 1
        %v2136 = vadd.f32 %v2134, %v2135
        %v2137 = vadd.f32 %v748, %v764
        %v2138 = vadd.f32 %v2137, %v780
        %v2139 = vadd.f32 %v2138, %v796
        %v2140 = vadd.f32 %v2139, %v812
        %v2141 = vadd.f32 %v2140, %v828
        %v2142 = vsel %vm1088, %v844, 0.0
        %v2143 = vadd.f32 %v2141, %v2142
        %v2144 = vrot.slane %v2143, 4
        %v2145 = vadd.f32 %v2143, %v2144
        %v2146 = vrot.slane %v2145, 2
        %v2147 = vadd.f32 %v2145, %v2146
        %v2148 = vrot.slane %v2147, 1
        %v2149 = vadd.f32 %v2147, %v2148
        %v2150 = vadd.f32 %v749, %v765
        %v2151 = vadd.f32 %v2150, %v781
        %v2152 = vadd.f32 %v2151, %v797
        %v2153 = vadd.f32 %v2152, %v813
        %v2154 = vadd.f32 %v2153, %v829
        %v2155 = vsel %vm1088, %v845, 0.0
        %v2156 = vadd.f32 %v2154, %v2155
        %v2157 = vrot.slane %v2156, 4
        %v2158 = vadd.f32 %v2156, %v2157
        %v2159 = vrot.slane %v2158, 2
        %v2160 = vadd.f32 %v2158, %v2159
        %v2161 = vrot.slane %v2160, 1
        %v2162 = vadd.f32 %v2160, %v2161
        %v2163 = vadd.f32 %v750, %v766
        %v2164 = vadd.f32 %v2163, %v782
        %v2165 = vadd.f32 %v2164, %v798
        %v2166 = vadd.f32 %v2165, %v814
        %v2167 = vadd.f32 %v2166, %v830
        %v2168 = vsel %vm1088, %v846, 0.0
        %v2169 = vadd.f32 %v2167, %v2168
        %v2170 = vrot.slane %v2169, 4
        %v2171 = vadd.f32 %v2169, %v2170
        %v2172 = vrot.slane %v2171, 2
        %v2173 = vadd.f32 %v2171, %v2172
        %v2174 = vrot.slane %v2173, 1
        %v2175 = vadd.f32 %v2173, %v2174
        %v2176 = vadd.f32 %v751, %v767
        %v2177 = vadd.f32 %v2176, %v783
        %v2178 = vadd.f32 %v2177, %v799
        %v2179 = vadd.f32 %v2178, %v815
        %v2180 = vadd.f32 %v2179, %v831
        %v2181 = vsel %vm1088, %v847, 0.0
        %v2182 = vadd.f32 %v2180, %v2181
        %v2183 = vrot.slane %v2182, 4
        %v2184 = vadd.f32 %v2182, %v2183
        %v2185 = vrot.slane %v2184, 2
        %v2186 = vadd.f32 %v2184, %v2185
        %v2187 = vrot.slane %v2186, 1
        %v2188 = vadd.f32 %v2186, %v2187
        %v2189 = vadd.f32 %v752, %v768
        %v2190 = vadd.f32 %v2189, %v784
        %v2191 = vadd.f32 %v2190, %v800
        %v2192 = vadd.f32 %v2191, %v816
        %v2193 = vadd.f32 %v2192, %v832
        %v2194 = vsel %vm1088, %v848, 0.0
        %v2195 = vadd.f32 %v2193, %v2194
        %v2196 = vrot.slane %v2195, 4
        %v2197 = vadd.f32 %v2195, %v2196
        %v2198 = vrot.slane %v2197, 2
        %v2199 = vadd.f32 %v2197, %v2198
        %v2200 = vrot.slane %v2199, 1
        %v2201 = vadd.f32 %v2199, %v2200
        %v2202 = vadd.f32 %v753, %v769
        %v2203 = vadd.f32 %v2202, %v785
        %v2204 = vadd.f32 %v2203, %v801
        %v2205 = vadd.f32 %v2204, %v817
        %v2206 = vadd.f32 %v2205, %v833
        %v2207 = vsel %vm1088, %v849, 0.0
        %v2208 = vadd.f32 %v2206, %v2207
        %v2209 = vrot.slane %v2208, 4
        %v2210 = vadd.f32 %v2208, %v2209
        %v2211 = vrot.slane %v2210, 2
        %v2212 = vadd.f32 %v2210, %v2211
        %v2213 = vrot.slane %v2212, 1
        %v2214 = vadd.f32 %v2212, %v2213
        %v2215 = vadd.f32 %v754, %v770
        %v2216 = vadd.f32 %v2215, %v786
        %v2217 = vadd.f32 %v2216, %v802
        %v2218 = vadd.f32 %v2217, %v818
        %v2219 = vadd.f32 %v2218, %v834
        %v2220 = vsel %vm1088, %v850, 0.0
        %v2221 = vadd.f32 %v2219, %v2220
        %v2222 = vrot.slane %v2221, 4
        %v2223 = vadd.f32 %v2221, %v2222
        %v2224 = vrot.slane %v2223, 2
        %v2225 = vadd.f32 %v2223, %v2224
        %v2226 = vrot.slane %v2225, 1
        %v2227 = vadd.f32 %v2225, %v2226
        %v2228 = vadd.f32 %v755, %v771
        %v2229 = vadd.f32 %v2228, %v787
        %v2230 = vadd.f32 %v2229, %v803
        %v2231 = vadd.f32 %v2230, %v819
        %v2232 = vadd.f32 %v2231, %v835
        %v2233 = vsel %vm1088, %v851, 0.0
        %v2234 = vadd.f32 %v2232, %v2233
        %v2235 = vrot.slane %v2234, 4
        %v2236 = vadd.f32 %v2234, %v2235
        %v2237 = vrot.slane %v2236, 2
        %v2238 = vadd.f32 %v2236, %v2237
        %v2239 = vrot.slane %v2238, 1
        %v2240 = vadd.f32 %v2238, %v2239
        %v2241 = vadd.f32 %v756, %v772
        %v2242 = vadd.f32 %v2241, %v788
        %v2243 = vadd.f32 %v2242, %v804
        %v2244 = vadd.f32 %v2243, %v820
        %v2245 = vadd.f32 %v2244, %v836
        %v2246 = vsel %vm1088, %v852, 0.0
        %v2247 = vadd.f32 %v2245, %v2246
        %v2248 = vrot.slane %v2247, 4
        %v2249 = vadd.f32 %v2247, %v2248
        %v2250 = vrot.slane %v2249, 2
        %v2251 = vadd.f32 %v2249, %v2250
        %v2252 = vrot.slane %v2251, 1
        %v2253 = vadd.f32 %v2251, %v2252
        %v2254 = vadd.f32 %v757, %v773
        %v2255 = vadd.f32 %v2254, %v789
        %v2256 = vadd.f32 %v2255, %v805
        %v2257 = vadd.f32 %v2256, %v821
        %v2258 = vadd.f32 %v2257, %v837
        %v2259 = vsel %vm1088, %v853, 0.0
        %v2260 = vadd.f32 %v2258, %v2259
        %v2261 = vrot.slane %v2260, 4
        %v2262 = vadd.f32 %v2260, %v2261
        %v2263 = vrot.slane %v2262, 2
        %v2264 = vadd.f32 %v2262, %v2263
        %v2265 = vrot.slane %v2264, 1
        %v2266 = vadd.f32 %v2264, %v2265
        %v2267 = vadd.f32 %v758, %v774
        %v2268 = vadd.f32 %v2267, %v790
        %v2269 = vadd.f32 %v2268, %v806
        %v2270 = vadd.f32 %v2269, %v822
        %v2271 = vadd.f32 %v2270, %v838
        %v2272 = vsel %vm1088, %v854, 0.0
        %v2273 = vadd.f32 %v2271, %v2272
        %v2274 = vrot.slane %v2273, 4
        %v2275 = vadd.f32 %v2273, %v2274
        %v2276 = vrot.slane %v2275, 2
        %v2277 = vadd.f32 %v2275, %v2276
        %v2278 = vrot.slane %v2277, 1
        %v2279 = vadd.f32 %v2277, %v2278
        %v2280 = vadd.f32 %v759, %v775
        %v2281 = vadd.f32 %v2280, %v791
        %v2282 = vadd.f32 %v2281, %v807
        %v2283 = vadd.f32 %v2282, %v823
        %v2284 = vadd.f32 %v2283, %v839
        %v2285 = vsel %vm1088, %v855, 0.0
        %v2286 = vadd.f32 %v2284, %v2285
        %v2287 = vrot.slane %v2286, 4
        %v2288 = vadd.f32 %v2286, %v2287
        %v2289 = vrot.slane %v2288, 2
        %v2290 = vadd.f32 %v2288, %v2289
        %v2291 = vrot.slane %v2290, 1
        %v2292 = vadd.f32 %v2290, %v2291
        %v2293 = vadd.f32 %v760, %v776
        %v2294 = vadd.f32 %v2293, %v792
        %v2295 = vadd.f32 %v2294, %v808
        %v2296 = vadd.f32 %v2295, %v824
        %v2297 = vadd.f32 %v2296, %v840
        %v2298 = vsel %vm1088, %v856, 0.0
        %v2299 = vadd.f32 %v2297, %v2298
        %v2300 = vrot.slane %v2299, 4
        %v2301 = vadd.f32 %v2299, %v2300
        %v2302 = vrot.slane %v2301, 2
        %v2303 = vadd.f32 %v2301, %v2302
        %v2304 = vrot.slane %v2303, 1
        %v2305 = vadd.f32 %v2303, %v2304
        %v2306 = vadd.f32 %v761, %v777
        %v2307 = vadd.f32 %v2306, %v793
        %v2308 = vadd.f32 %v2307, %v809
        %v2309 = vadd.f32 %v2308, %v825
        %v2310 = vadd.f32 %v2309, %v841
        %v2311 = vsel %vm1088, %v857, 0.0
        %v2312 = vadd.f32 %v2310, %v2311
        %v2313 = vrot.slane %v2312, 4
        %v2314 = vadd.f32 %v2312, %v2313
        %v2315 = vrot.slane %v2314, 2
        %v2316 = vadd.f32 %v2314, %v2315
        %v2317 = vrot.slane %v2316, 1
        %v2318 = vadd.f32 %v2316, %v2317
        %v2319 = vadd.f32 %v762, %v778
        %v2320 = vadd.f32 %v2319, %v794
        %v2321 = vadd.f32 %v2320, %v810
        %v2322 = vadd.f32 %v2321, %v826
        %v2323 = vadd.f32 %v2322, %v842
        %v2324 = vsel %vm1088, %v858, 0.0
        %v2325 = vadd.f32 %v2323, %v2324
        %v2326 = vrot.slane %v2325, 4
        %v2327 = vadd.f32 %v2325, %v2326
        %v2328 = vrot.slane %v2327, 2
        %v2329 = vadd.f32 %v2327, %v2328
        %v2330 = vrot.slane %v2329, 1
        %v2331 = vadd.f32 %v2329, %v2330
        %v2332 = vadd.f32 %v859, %v875
        %v2333 = vadd.f32 %v2332, %v891
        %v2334 = vadd.f32 %v2333, %v907
        %v2335 = vadd.f32 %v2334, %v923
        %v2336 = vadd.f32 %v2335, %v939
        %v2337 = vsel %vm1088, %v955, 0.0
        %v2338 = vadd.f32 %v2336, %v2337
        %v2339 = vrot.slane %v2338, 4
        %v2340 = vadd.f32 %v2338, %v2339
        %v2341 = vrot.slane %v2340, 2
        %v2342 = vadd.f32 %v2340, %v2341
        %v2343 = vrot.slane %v2342, 1
        %v2344 = vadd.f32 %v2342, %v2343
        %v2345 = vadd.f32 %v860, %v876
        %v2346 = vadd.f32 %v2345, %v892
        %v2347 = vadd.f32 %v2346, %v908
        %v2348 = vadd.f32 %v2347, %v924
        %v2349 = vadd.f32 %v2348, %v940
        %v2350 = vsel %vm1088, %v956, 0.0
        %v2351 = vadd.f32 %v2349, %v2350
        %v2352 = vrot.slane %v2351, 4
        %v2353 = vadd.f32 %v2351, %v2352
        %v2354 = vrot.slane %v2353, 2
        %v2355 = vadd.f32 %v2353, %v2354
        %v2356 = vrot.slane %v2355, 1
        %v2357 = vadd.f32 %v2355, %v2356
        %v2358 = vadd.f32 %v861, %v877
        %v2359 = vadd.f32 %v2358, %v893
        %v2360 = vadd.f32 %v2359, %v909
        %v2361 = vadd.f32 %v2360, %v925
        %v2362 = vadd.f32 %v2361, %v941
        %v2363 = vsel %vm1088, %v957, 0.0
        %v2364 = vadd.f32 %v2362, %v2363
        %v2365 = vrot.slane %v2364, 4
        %v2366 = vadd.f32 %v2364, %v2365
        %v2367 = vrot.slane %v2366, 2
        %v2368 = vadd.f32 %v2366, %v2367
        %v2369 = vrot.slane %v2368, 1
        %v2370 = vadd.f32 %v2368, %v2369
        %v2371 = vadd.f32 %v862, %v878
        %v2372 = vadd.f32 %v2371, %v894
        %v2373 = vadd.f32 %v2372, %v910
        %v2374 = vadd.f32 %v2373, %v926
        %v2375 = vadd.f32 %v2374, %v942
        %v2376 = vsel %vm1088, %v958, 0.0
        %v2377 = vadd.f32 %v2375, %v2376
        %v2378 = vrot.slane %v2377, 4
        %v2379 = vadd.f32 %v2377, %v2378
        %v2380 = vrot.slane %v2379, 2
        %v2381 = vadd.f32 %v2379, %v2380
        %v2382 = vrot.slane %v2381, 1
        %v2383 = vadd.f32 %v2381, %v2382
        %v2384 = vadd.f32 %v863, %v879
        %v2385 = vadd.f32 %v2384, %v895
        %v2386 = vadd.f32 %v2385, %v911
        %v2387 = vadd.f32 %v2386, %v927
        %v2388 = vadd.f32 %v2387, %v943
        %v2389 = vsel %vm1088, %v959, 0.0
        %v2390 = vadd.f32 %v2388, %v2389
        %v2391 = vrot.slane %v2390, 4
        %v2392 = vadd.f32 %v2390, %v2391
        %v2393 = vrot.slane %v2392, 2
        %v2394 = vadd.f32 %v2392, %v2393
        %v2395 = vrot.slane %v2394, 1
        %v2396 = vadd.f32 %v2394, %v2395
        %v2397 = vadd.f32 %v864, %v880
        %v2398 = vadd.f32 %v2397, %v896
        %v2399 = vadd.f32 %v2398, %v912
        %v2400 = vadd.f32 %v2399, %v928
        %v2401 = vadd.f32 %v2400, %v944
        %v2402 = vsel %vm1088, %v960, 0.0
        %v2403 = vadd.f32 %v2401, %v2402
        %v2404 = vrot.slane %v2403, 4
        %v2405 = vadd.f32 %v2403, %v2404
        %v2406 = vrot.slane %v2405, 2
        %v2407 = vadd.f32 %v2405, %v2406
        %v2408 = vrot.slane %v2407, 1
        %v2409 = vadd.f32 %v2407, %v2408
        %v2410 = vadd.f32 %v865, %v881
        %v2411 = vadd.f32 %v2410, %v897
        %v2412 = vadd.f32 %v2411, %v913
        %v2413 = vadd.f32 %v2412, %v929
        %v2414 = vadd.f32 %v2413, %v945
        %v2415 = vsel %vm1088, %v961, 0.0
        %v2416 = vadd.f32 %v2414, %v2415
        %v2417 = vrot.slane %v2416, 4
        %v2418 = vadd.f32 %v2416, %v2417
        %v2419 = vrot.slane %v2418, 2
        %v2420 = vadd.f32 %v2418, %v2419
        %v2421 = vrot.slane %v2420, 1
        %v2422 = vadd.f32 %v2420, %v2421
        %v2423 = vadd.f32 %v866, %v882
        %v2424 = vadd.f32 %v2423, %v898
        %v2425 = vadd.f32 %v2424, %v914
        %v2426 = vadd.f32 %v2425, %v930
        %v2427 = vadd.f32 %v2426, %v946
        %v2428 = vsel %vm1088, %v962, 0.0
        %v2429 = vadd.f32 %v2427, %v2428
        %v2430 = vrot.slane %v2429, 4
        %v2431 = vadd.f32 %v2429, %v2430
        %v2432 = vrot.slane %v2431, 2
        %v2433 = vadd.f32 %v2431, %v2432
        %v2434 = vrot.slane %v2433, 1
        %v2435 = vadd.f32 %v2433, %v2434
        %v2436 = vadd.f32 %v867, %v883
        %v2437 = vadd.f32 %v2436, %v899
        %v2438 = vadd.f32 %v2437, %v915
        %v2439 = vadd.f32 %v2438, %v931
        %v2440 = vadd.f32 %v2439, %v947
        %v2441 = vsel %vm1088, %v963, 0.0
        %v2442 = vadd.f32 %v2440, %v2441
        %v2443 = vrot.slane %v2442, 4
        %v2444 = vadd.f32 %v2442, %v2443
        %v2445 = vrot.slane %v2444, 2
        %v2446 = vadd.f32 %v2444, %v2445
        %v2447 = vrot.slane %v2446, 1
        %v2448 = vadd.f32 %v2446, %v2447
        %v2449 = vadd.f32 %v868, %v884
        %v2450 = vadd.f32 %v2449, %v900
        %v2451 = vadd.f32 %v2450, %v916
        %v2452 = vadd.f32 %v2451, %v932
        %v2453 = vadd.f32 %v2452, %v948
        %v2454 = vsel %vm1088, %v964, 0.0
        %v2455 = vadd.f32 %v2453, %v2454
        %v2456 = vrot.slane %v2455, 4
        %v2457 = vadd.f32 %v2455, %v2456
        %v2458 = vrot.slane %v2457, 2
        %v2459 = vadd.f32 %v2457, %v2458
        %v2460 = vrot.slane %v2459, 1
        %v2461 = vadd.f32 %v2459, %v2460
        %v2462 = vadd.f32 %v869, %v885
        %v2463 = vadd.f32 %v2462, %v901
        %v2464 = vadd.f32 %v2463, %v917
        %v2465 = vadd.f32 %v2464, %v933
        %v2466 = vadd.f32 %v2465, %v949
        %v2467 = vsel %vm1088, %v965, 0.0
        %v2468 = vadd.f32 %v2466, %v2467
        %v2469 = vrot.slane %v2468, 4
        %v2470 = vadd.f32 %v2468, %v2469
        %v2471 = vrot.slane %v2470, 2
        %v2472 = vadd.f32 %v2470, %v2471
        %v2473 = vrot.slane %v2472, 1
        %v2474 = vadd.f32 %v2472, %v2473
        %v2475 = vadd.f32 %v870, %v886
        %v2476 = vadd.f32 %v2475, %v902
        %v2477 = vadd.f32 %v2476, %v918
        %v2478 = vadd.f32 %v2477, %v934
        %v2479 = vadd.f32 %v2478, %v950
        %v2480 = vsel %vm1088, %v966, 0.0
        %v2481 = vadd.f32 %v2479, %v2480
        %v2482 = vrot.slane %v2481, 4
        %v2483 = vadd.f32 %v2481, %v2482
        %v2484 = vrot.slane %v2483, 2
        %v2485 = vadd.f32 %v2483, %v2484
        %v2486 = vrot.slane %v2485, 1
        %v2487 = vadd.f32 %v2485, %v2486
        %v2488 = vadd.f32 %v871, %v887
        %v2489 = vadd.f32 %v2488, %v903
        %v2490 = vadd.f32 %v2489, %v919
        %v2491 = vadd.f32 %v2490, %v935
        %v2492 = vadd.f32 %v2491, %v951
        %v2493 = vsel %vm1088, %v967, 0.0
        %v2494 = vadd.f32 %v2492, %v2493
        %v2495 = vrot.slane %v2494, 4
        %v2496 = vadd.f32 %v2494, %v2495
        %v2497 = vrot.slane %v2496, 2
        %v2498 = vadd.f32 %v2496, %v2497
        %v2499 = vrot.slane %v2498, 1
        %v2500 = vadd.f32 %v2498, %v2499
        %v2501 = vadd.f32 %v872, %v888
        %v2502 = vadd.f32 %v2501, %v904
        %v2503 = vadd.f32 %v2502, %v920
        %v2504 = vadd.f32 %v2503, %v936
        %v2505 = vadd.f32 %v2504, %v952
        %v2506 = vsel %vm1088, %v968, 0.0
        %v2507 = vadd.f32 %v2505, %v2506
        %v2508 = vrot.slane %v2507, 4
        %v2509 = vadd.f32 %v2507, %v2508
        %v2510 = vrot.slane %v2509, 2
        %v2511 = vadd.f32 %v2509, %v2510
        %v2512 = vrot.slane %v2511, 1
        %v2513 = vadd.f32 %v2511, %v2512
        %v2514 = vadd.f32 %v873, %v889
        %v2515 = vadd.f32 %v2514, %v905
        %v2516 = vadd.f32 %v2515, %v921
        %v2517 = vadd.f32 %v2516, %v937
        %v2518 = vadd.f32 %v2517, %v953
        %v2519 = vsel %vm1088, %v969, 0.0
        %v2520 = vadd.f32 %v2518, %v2519
        %v2521 = vrot.slane %v2520, 4
        %v2522 = vadd.f32 %v2520, %v2521
        %v2523 = vrot.slane %v2522, 2
        %v2524 = vadd.f32 %v2522, %v2523
        %v2525 = vrot.slane %v2524, 1
        %v2526 = vadd.f32 %v2524, %v2525
        %v2527 = vadd.f32 %v874, %v890
        %v2528 = vadd.f32 %v2527, %v906
        %v2529 = vadd.f32 %v2528, %v922
        %v2530 = vadd.f32 %v2529, %v938
        %v2531 = vadd.f32 %v2530, %v954
        %v2532 = vsel %vm1088, %v970, 0.0
        %v2533 = vadd.f32 %v2531, %v2532
        %v2534 = vrot.slane %v2533, 4
        %v2535 = vadd.f32 %v2533, %v2534
        %v2536 = vrot.slane %v2535, 2
        %v2537 = vadd.f32 %v2535, %v2536
        %v2538 = vrot.slane %v2537, 1
        %v2539 = vadd.f32 %v2537, %v2538
        %v2540 = vadd.f32 %v971, %v987
        %v2541 = vadd.f32 %v2540, %v1003
        %v2542 = vadd.f32 %v2541, %v1019
        %v2543 = vadd.f32 %v2542, %v1035
        %v2544 = vadd.f32 %v2543, %v1051
        %v2545 = vsel %vm1088, %v1067, 0.0
        %v2546 = vadd.f32 %v2544, %v2545
        %v2547 = vrot.slane %v2546, 4
        %v2548 = vadd.f32 %v2546, %v2547
        %v2549 = vrot.slane %v2548, 2
        %v2550 = vadd.f32 %v2548, %v2549
        %v2551 = vrot.slane %v2550, 1
        %v2552 = vadd.f32 %v2550, %v2551
        %v2553 = vadd.f32 %v972, %v988
        %v2554 = vadd.f32 %v2553, %v1004
        %v2555 = vadd.f32 %v2554, %v1020
        %v2556 = vadd.f32 %v2555, %v1036
        %v2557 = vadd.f32 %v2556, %v1052
        %v2558 = vsel %vm1088, %v1068, 0.0
        %v2559 = vadd.f32 %v2557, %v2558
        %v2560 = vrot.slane %v2559, 4
        %v2561 = vadd.f32 %v2559, %v2560
        %v2562 = vrot.slane %v2561, 2
        %v2563 = vadd.f32 %v2561, %v2562
        %v2564 = vrot.slane %v2563, 1
        %v2565 = vadd.f32 %v2563, %v2564
        %v2566 = vadd.f32 %v973, %v989
        %v2567 = vadd.f32 %v2566, %v1005
        %v2568 = vadd.f32 %v2567, %v1021
        %v2569 = vadd.f32 %v2568, %v1037
        %v2570 = vadd.f32 %v2569, %v1053
        %v2571 = vsel %vm1088, %v1069, 0.0
        %v2572 = vadd.f32 %v2570, %v2571
        %v2573 = vrot.slane %v2572, 4
        %v2574 = vadd.f32 %v2572, %v2573
        %v2575 = vrot.slane %v2574, 2
        %v2576 = vadd.f32 %v2574, %v2575
        %v2577 = vrot.slane %v2576, 1
        %v2578 = vadd.f32 %v2576, %v2577
        %v2579 = vadd.f32 %v974, %v990
        %v2580 = vadd.f32 %v2579, %v1006
        %v2581 = vadd.f32 %v2580, %v1022
        %v2582 = vadd.f32 %v2581, %v1038
        %v2583 = vadd.f32 %v2582, %v1054
        %v2584 = vsel %vm1088, %v1070, 0.0
        %v2585 = vadd.f32 %v2583, %v2584
        %v2586 = vrot.slane %v2585, 4
        %v2587 = vadd.f32 %v2585, %v2586
        %v2588 = vrot.slane %v2587, 2
        %v2589 = vadd.f32 %v2587, %v2588
        %v2590 = vrot.slane %v2589, 1
        %v2591 = vadd.f32 %v2589, %v2590
        %v2592 = vadd.f32 %v975, %v991
        %v2593 = vadd.f32 %v2592, %v1007
        %v2594 = vadd.f32 %v2593, %v1023
        %v2595 = vadd.f32 %v2594, %v1039
        %v2596 = vadd.f32 %v2595, %v1055
        %v2597 = vsel %vm1088, %v1071, 0.0
        %v2598 = vadd.f32 %v2596, %v2597
        %v2599 = vrot.slane %v2598, 4
        %v2600 = vadd.f32 %v2598, %v2599
        %v2601 = vrot.slane %v2600, 2
        %v2602 = vadd.f32 %v2600, %v2601
        %v2603 = vrot.slane %v2602, 1
        %v2604 = vadd.f32 %v2602, %v2603
        %v2605 = vadd.f32 %v976, %v992
        %v2606 = vadd.f32 %v2605, %v1008
        %v2607 = vadd.f32 %v2606, %v1024
        %v2608 = vadd.f32 %v2607, %v1040
        %v2609 = vadd.f32 %v2608, %v1056
        %v2610 = vsel %vm1088, %v1072, 0.0
        %v2611 = vadd.f32 %v2609, %v2610
        %v2612 = vrot.slane %v2611, 4
        %v2613 = vadd.f32 %v2611, %v2612
        %v2614 = vrot.slane %v2613, 2
        %v2615 = vadd.f32 %v2613, %v2614
        %v2616 = vrot.slane %v2615, 1
        %v2617 = vadd.f32 %v2615, %v2616
        %v2618 = vadd.f32 %v977, %v993
        %v2619 = vadd.f32 %v2618, %v1009
        %v2620 = vadd.f32 %v2619, %v1025
        %v2621 = vadd.f32 %v2620, %v1041
        %v2622 = vadd.f32 %v2621, %v1057
        %v2623 = vsel %vm1088, %v1073, 0.0
        %v2624 = vadd.f32 %v2622, %v2623
        %v2625 = vrot.slane %v2624, 4
        %v2626 = vadd.f32 %v2624, %v2625
        %v2627 = vrot.slane %v2626, 2
        %v2628 = vadd.f32 %v2626, %v2627
        %v2629 = vrot.slane %v2628, 1
        %v2630 = vadd.f32 %v2628, %v2629
        %v2631 = vadd.f32 %v978, %v994
        %v2632 = vadd.f32 %v2631, %v1010
        %v2633 = vadd.f32 %v2632, %v1026
        %v2634 = vadd.f32 %v2633, %v1042
        %v2635 = vadd.f32 %v2634, %v1058
        %v2636 = vsel %vm1088, %v1074, 0.0
        %v2637 = vadd.f32 %v2635, %v2636
        %v2638 = vrot.slane %v2637, 4
        %v2639 = vadd.f32 %v2637, %v2638
        %v2640 = vrot.slane %v2639, 2
        %v2641 = vadd.f32 %v2639, %v2640
        %v2642 = vrot.slane %v2641, 1
        %v2643 = vadd.f32 %v2641, %v2642
        %v2644 = vadd.f32 %v979, %v995
        %v2645 = vadd.f32 %v2644, %v1011
        %v2646 = vadd.f32 %v2645, %v1027
        %v2647 = vadd.f32 %v2646, %v1043
        %v2648 = vadd.f32 %v2647, %v1059
        %v2649 = vsel %vm1088, %v1075, 0.0
        %v2650 = vadd.f32 %v2648, %v2649
        %v2651 = vrot.slane %v2650, 4
        %v2652 = vadd.f32 %v2650, %v2651
        %v2653 = vrot.slane %v2652, 2
        %v2654 = vadd.f32 %v2652, %v2653
        %v2655 = vrot.slane %v2654, 1
        %v2656 = vadd.f32 %v2654, %v2655
        %v2657 = vadd.f32 %v980, %v996
        %v2658 = vadd.f32 %v2657, %v1012
        %v2659 = vadd.f32 %v2658, %v1028
        %v2660 = vadd.f32 %v2659, %v1044
        %v2661 = vadd.f32 %v2660, %v1060
        %v2662 = vsel %vm1088, %v1076, 0.0
        %v2663 = vadd.f32 %v2661, %v2662
        %v2664 = vrot.slane %v2663, 4
        %v2665 = vadd.f32 %v2663, %v2664
        %v2666 = vrot.slane %v2665, 2
        %v2667 = vadd.f32 %v2665, %v2666
        %v2668 = vrot.slane %v2667, 1
        %v2669 = vadd.f32 %v2667, %v2668
        %v2670 = vadd.f32 %v981, %v997
        %v2671 = vadd.f32 %v2670, %v1013
        %v2672 = vadd.f32 %v2671, %v1029
        %v2673 = vadd.f32 %v2672, %v1045
        %v2674 = vadd.f32 %v2673, %v1061
        %v2675 = vsel %vm1088, %v1077, 0.0
        %v2676 = vadd.f32 %v2674, %v2675
        %v2677 = vrot.slane %v2676, 4
        %v2678 = vadd.f32 %v2676, %v2677
        %v2679 = vrot.slane %v2678, 2
        %v2680 = vadd.f32 %v2678, %v2679
        %v2681 = vrot.slane %v2680, 1
        %v2682 = vadd.f32 %v2680, %v2681
        %v2683 = vadd.f32 %v982, %v998
        %v2684 = vadd.f32 %v2683, %v1014
        %v2685 = vadd.f32 %v2684, %v1030
        %v2686 = vadd.f32 %v2685, %v1046
        %v2687 = vadd.f32 %v2686, %v1062
        %v2688 = vsel %vm1088, %v1078, 0.0
        %v2689 = vadd.f32 %v2687, %v2688
        %v2690 = vrot.slane %v2689, 4
        %v2691 = vadd.f32 %v2689, %v2690
        %v2692 = vrot.slane %v2691, 2
        %v2693 = vadd.f32 %v2691, %v2692
        %v2694 = vrot.slane %v2693, 1
        %v2695 = vadd.f32 %v2693, %v2694
        %v2696 = vadd.f32 %v983, %v999
        %v2697 = vadd.f32 %v2696, %v1015
        %v2698 = vadd.f32 %v2697, %v1031
        %v2699 = vadd.f32 %v2698, %v1047
        %v2700 = vadd.f32 %v2699, %v1063
        %v2701 = vsel %vm1088, %v1079, 0.0
        %v2702 = vadd.f32 %v2700, %v2701
        %v2703 = vrot.slane %v2702, 4
        %v2704 = vadd.f32 %v2702, %v2703
        %v2705 = vrot.slane %v2704, 2
        %v2706 = vadd.f32 %v2704, %v2705
        %v2707 = vrot.slane %v2706, 1
        %v2708 = vadd.f32 %v2706, %v2707
        %v2709 = vadd.f32 %v984, %v1000
        %v2710 = vadd.f32 %v2709, %v1016
        %v2711 = vadd.f32 %v2710, %v1032
        %v2712 = vadd.f32 %v2711, %v1048
        %v2713 = vadd.f32 %v2712, %v1064
        %v2714 = vsel %vm1088, %v1080, 0.0
        %v2715 = vadd.f32 %v2713, %v2714
        %v2716 = vrot.slane %v2715, 4
        %v2717 = vadd.f32 %v2715, %v2716
        %v2718 = vrot.slane %v2717, 2
        %v2719 = vadd.f32 %v2717, %v2718
        %v2720 = vrot.slane %v2719, 1
        %v2721 = vadd.f32 %v2719, %v2720
        %v2722 = vadd.f32 %v985, %v1001
        %v2723 = vadd.f32 %v2722, %v1017
        %v2724 = vadd.f32 %v2723, %v1033
        %v2725 = vadd.f32 %v2724, %v1049
        %v2726 = vadd.f32 %v2725, %v1065
        %v2727 = vsel %vm1088, %v1081, 0.0
        %v2728 = vadd.f32 %v2726, %v2727
        %v2729 = vrot.slane %v2728, 4
        %v2730 = vadd.f32 %v2728, %v2729
        %v2731 = vrot.slane %v2730, 2
        %v2732 = vadd.f32 %v2730, %v2731
        %v2733 = vrot.slane %v2732, 1
        %v2734 = vadd.f32 %v2732, %v2733
        %v2735 = vadd.f32 %v986, %v1002
        %v2736 = vadd.f32 %v2735, %v1018
        %v2737 = vadd.f32 %v2736, %v1034
        %v2738 = vadd.f32 %v2737, %v1050
        %v2739 = vadd.f32 %v2738, %v1066
        %v2740 = vsel %vm1088, %v1082, 0.0
        %v2741 = vadd.f32 %v2739, %v2740
        %v2742 = vrot.slane %v2741, 4
        %v2743 = vadd.f32 %v2741, %v2742
        %v2744 = vrot.slane %v2743, 2
        %v2745 = vadd.f32 %v2743, %v2744
        %v2746 = vrot.slane %v2745, 1
        %v2747 = vadd.f32 %v2745, %v2746
        %v2748 = vmul.f32 %v1096, 0.020408163
        %v2749 = vmul.f32 %v1109, 0.020408163
        %v2750 = vmul.f32 %v1122, 0.020408163
        %v2751 = vmul.f32 %v1135, 0.020408163
        %v2752 = vmul.f32 %v1148, 0.020408163
        %v2753 = vmul.f32 %v1161, 0.020408163
        %v2754 = vmul.f32 %v1174, 0.020408163
        %v2755 = vmul.f32 %v1187, 0.020408163
        %v2756 = vmul.f32 %v1200, 0.020408163
        %v2757 = vmul.f32 %v1213, 0.020408163
        %v2758 = vmul.f32 %v1226, 0.020408163
        %v2759 = vmul.f32 %v1239, 0.020408163
        %v2760 = vmul.f32 %v1252, 0.020408163
        %v2761 = vmul.f32 %v1265, 0.020408163
        %v2762 = vmul.f32 %v1278, 0.020408163
        %v2763 = vmul.f32 %v1291, 0.020408163
        %v2764 = vmul.f32 %v1304, 0.020408163
        %v2765 = vmul.f32 %v1317, 0.020408163
        %v2766 = vmul.f32 %v1330, 0.020408163
        %v2767 = vmul.f32 %v1343, 0.020408163
        %v2768 = vmul.f32 %v1356, 0.020408163
        %v2769 = vmul.f32 %v1369, 0.020408163
        %v2770 = vmul.f32 %v1382, 0.020408163
        %v2771 = vmul.f32 %v1395, 0.020408163
        %v2772 = vmul.f32 %v1408, 0.020408163
        %v2773 = vmul.f32 %v1421, 0.020408163
        %v2774 = vmul.f32 %v1434, 0.020408163
        %v2775 = vmul.f32 %v1447, 0.020408163
        %v2776 = vmul.f32 %v1460, 0.020408163
        %v2777 = vmul.f32 %v1473, 0.020408163
        %v2778 = vmul.f32 %v1486, 0.020408163
        %v2779 = vmul.f32 %v1499, 0.020408163
        %v2780 = vmul.f32 %v1512, 0.020408163
        %v2781 = vmul.f32 %v1525, 0.020408163
        %v2782 = vmul.f32 %v1538, 0.020408163
        %v2783 = vmul.f32 %v1551, 0.020408163
        %v2784 = vmul.f32 %v1564, 0.020408163
        %v2785 = vmul.f32 %v1577, 0.020408163
        %v2786 = vmul.f32 %v1590, 0.020408163
        %v2787 = vmul.f32 %v1603, 0.020408163
        %v2788 = vmul.f32 %v1616, 0.020408163
        %v2789 = vmul.f32 %v1629, 0.020408163
        %v2790 = vmul.f32 %v1642, 0.020408163
        %v2791 = vmul.f32 %v1655, 0.020408163
        %v2792 = vmul.f32 %v1668, 0.020408163
        %v2793 = vmul.f32 %v1681, 0.020408163
        %v2794 = vmul.f32 %v1694, 0.020408163
        %v2795 = vmul.f32 %v1707, 0.020408163
        %v2796 = vmul.f32 %v1720, 0.020408163
        %v2797 = vmul.f32 %v1733, 0.020408163
        %v2798 = vmul.f32 %v1746, 0.020408163
        %v2799 = vmul.f32 %v1759, 0.020408163
        %v2800 = vmul.f32 %v1772, 0.020408163
        %v2801 = vmul.f32 %v1785, 0.020408163
        %v2802 = vmul.f32 %v1798, 0.020408163
        %v2803 = vmul.f32 %v1811, 0.020408163
        %v2804 = vmul.f32 %v1824, 0.020408163
        %v2805 = vmul.f32 %v1837, 0.020408163
        %v2806 = vmul.f32 %v1850, 0.020408163
        %v2807 = vmul.f32 %v1863, 0.020408163
        %v2808 = vmul.f32 %v1876, 0.020408163
        %v2809 = vmul.f32 %v1889, 0.020408163
        %v2810 = vmul.f32 %v1902, 0.020408163
        %v2811 = vmul.f32 %v1915, 0.020408163
        %v2812 = vmul.f32 %v1928, 0.020408163
        %v2813 = vmul.f32 %v1941, 0.020408163
        %v2814 = vmul.f32 %v1954, 0.020408163
        %v2815 = vmul.f32 %v1967, 0.020408163
        %v2816 = vmul.f32 %v1980, 0.020408163
        %v2817 = vmul.f32 %v1993, 0.020408163
        %v2818 = vmul.f32 %v2006, 0.020408163
        %v2819 = vmul.f32 %v2019, 0.020408163
        %v2820 = vmul.f32 %v2032, 0.020408163
        %v2821 = vmul.f32 %v2045, 0.020408163
        %v2822 = vmul.f32 %v2058, 0.020408163
        %v2823 = vmul.f32 %v2071, 0.020408163
        %v2824 = vmul.f32 %v2084, 0.020408163
        %v2825 = vmul.f32 %v2097, 0.020408163
        %v2826 = vmul.f32 %v2110, 0.020408163
        %v2827 = vmul.f32 %v2123, 0.020408163
        %v2828 = vmul.f32 %v2136, 0.020408163
        %v2829 = vmul.f32 %v2149, 0.020408163
        %v2830 = vmul.f32 %v2162, 0.020408163
        %v2831 = vmul.f32 %v2175, 0.020408163
        %v2832 = vmul.f32 %v2188, 0.020408163
        %v2833 = vmul.f32 %v2201, 0.020408163
        %v2834 = vmul.f32 %v2214, 0.020408163
        %v2835 = vmul.f32 %v2227, 0.020408163
        %v2836 = vmul.f32 %v2240, 0.020408163
        %v2837 = vmul.f32 %v2253, 0.020408163
        %v2838 = vmul.f32 %v2266, 0.020408163
        %v2839 = vmul.f32 %v2279, 0.020408163
        %v2840 = vmul.f32 %v2292, 0.020408163
        %v2841 = vmul.f32 %v2305, 0.020408163
        %v2842 = vmul.f32 %v2318, 0.020408163
        %v2843 = vmul.f32 %v2331, 0.020408163
        %v2844 = vmul.f32 %v2344, 0.020408163
        %v2845 = vmul.f32 %v2357, 0.020408163
        %v2846 = vmul.f32 %v2370, 0.020408163
        %v2847 = vmul.f32 %v2383, 0.020408163
        %v2848 = vmul.f32 %v2396, 0.020408163
        %v2849 = vmul.f32 %v2409, 0.020408163
        %v2850 = vmul.f32 %v2422, 0.020408163
        %v2851 = vmul.f32 %v2435, 0.020408163
        %v2852 = vmul.f32 %v2448, 0.020408163
        %v2853 = vmul.f32 %v2461, 0.020408163
        %v2854 = vmul.f32 %v2474, 0.020408163
        %v2855 = vmul.f32 %v2487, 0.020408163
        %v2856 = vmul.f32 %v2500, 0.020408163
        %v2857 = vmul.f32 %v2513, 0.020408163
        %v2858 = vmul.f32 %v2526, 0.020408163
        %v2859 = vmul.f32 %v2539, 0.020408163
        %v2860 = vmul.f32 %v2552, 0.020408163
        %v2861 = vmul.f32 %v2565, 0.020408163
        %v2862 = vmul.f32 %v2578, 0.020408163
        %v2863 = vmul.f32 %v2591, 0.020408163
        %v2864 = vmul.f32 %v2604, 0.020408163
        %v2865 = vmul.f32 %v2617, 0.020408163
        %v2866 = vmul.f32 %v2630, 0.020408163
        %v2867 = vmul.f32 %v2643, 0.020408163
        %v2868 = vmul.f32 %v2656, 0.020408163
        %v2869 = vmul.f32 %v2669, 0.020408163
        %v2870 = vmul.f32 %v2682, 0.020408163
        %v2871 = vmul.f32 %v2695, 0.020408163
        %v2872 = vmul.f32 %v2708, 0.020408163
        %v2873 = vmul.f32 %v2721, 0.020408163
        %v2874 = vmul.f32 %v2734, 0.020408163
        %v2875 = vmul.f32 %v2747, 0.020408163
        %v2876 = vld [vmem:[%s1] sm:$0xff]
        %v2877 = vld [vmem:[%s1 + $0x8] sm:$0xff]
        %v2878 = vld [vmem:[%s1 + $0x10] sm:$0xff]
        %v2879 = vld [vmem:[%s1 + $0x18] sm:$0xff]
        %v2880 = vld [vmem:[%s1 + $0x20] sm:$0xff]
        %v2881 = vld [vmem:[%s1 + $0x28] sm:$0xff]
        %v2882 = vld [vmem:[%s1 + $0x30] sm:$0xff]
        %v2883 = vld [vmem:[%s1 + $0x38] sm:$0xff]
        %v2884 = vld [vmem:[%s1 + $0x40] sm:$0xff]
        %v2885 = vld [vmem:[%s1 + $0x48] sm:$0xff]
        %v2886 = vld [vmem:[%s1 + $0x50] sm:$0xff]
        %v2887 = vld [vmem:[%s1 + $0x58] sm:$0xff]
        %v2888 = vld [vmem:[%s1 + $0x60] sm:$0xff]
        %v2889 = vld [vmem:[%s1 + $0x68] sm:$0xff]
        %v2890 = vld [vmem:[%s1 + $0x70] sm:$0xff]
        %v2891 = vld [vmem:[%s1 + $0x78] sm:$0xff]
        %v2892 = vld [vmem:[%s1 + $0x80] sm:$0xff]
        %v2893 = vld [vmem:[%s1 + $0x88] sm:$0xff]
        %v2894 = vld [vmem:[%s1 + $0x90] sm:$0xff]
        %v2895 = vld [vmem:[%s1 + $0x98] sm:$0xff]
        %v2896 = vld [vmem:[%s1 + $0xa0] sm:$0xff]
        %v2897 = vld [vmem:[%s1 + $0xa8] sm:$0xff]
        %v2898 = vld [vmem:[%s1 + $0xb0] sm:$0xff]
        %v2899 = vld [vmem:[%s1 + $0xb8] sm:$0xff]
        %v2900 = vld [vmem:[%s1 + $0xc0] sm:$0xff]
        %v2901 = vld [vmem:[%s1 + $0xc8] sm:$0xff]
        %v2902 = vld [vmem:[%s1 + $0xd0] sm:$0xff]
        %v2903 = vld [vmem:[%s1 + $0xd8] sm:$0xff]
        %v2904 = vld [vmem:[%s1 + $0xe0] sm:$0xff]
        %v2905 = vld [vmem:[%s1 + $0xe8] sm:$0xff]
        %v2906 = vld [vmem:[%s1 + $0xf0] sm:$0xff]
        %v2907 = vld [vmem:[%s1 + $0xf8] sm:$0xff]
        %v2908 = vld [vmem:[%s1 + $0x100] sm:$0xff]
        %v2909 = vld [vmem:[%s1 + $0x108] sm:$0xff]
        %v2910 = vld [vmem:[%s1 + $0x110] sm:$0xff]
        %v2911 = vld [vmem:[%s1 + $0x118] sm:$0xff]
        %v2912 = vld [vmem:[%s1 + $0x120] sm:$0xff]
        %v2913 = vld [vmem:[%s1 + $0x128] sm:$0xff]
        %v2914 = vld [vmem:[%s1 + $0x130] sm:$0xff]
        %v2915 = vld [vmem:[%s1 + $0x138] sm:$0xff]
        %v2916 = vld [vmem:[%s1 + $0x140] sm:$0xff]
        %v2917 = vld [vmem:[%s1 + $0x148] sm:$0xff]
        %v2918 = vld [vmem:[%s1 + $0x150] sm:$0xff]
        %v2919 = vld [vmem:[%s1 + $0x158] sm:$0xff]
        %v2920 = vld [vmem:[%s1 + $0x160] sm:$0xff]
        %v2921 = vld [vmem:[%s1 + $0x168] sm:$0xff]
        %v2922 = vld [vmem:[%s1 + $0x170] sm:$0xff]
        %v2923 = vld [vmem:[%s1 + $0x178] sm:$0xff]
        %v2924 = vld [vmem:[%s1 + $0x180] sm:$0xff]
        %v2925 = vld [vmem:[%s1 + $0x188] sm:$0xff]
        %v2926 = vld [vmem:[%s1 + $0x190] sm:$0xff]
        %v2927 = vld [vmem:[%s1 + $0x198] sm:$0xff]
        %v2928 = vld [vmem:[%s1 + $0x1a0] sm:$0xff]
        %v2929 = vld [vmem:[%s1 + $0x1a8] sm:$0xff]
        %v2930 = vld [vmem:[%s1 + $0x1b0] sm:$0xff]
        %v2931 = vld [vmem:[%s1 + $0x1b8] sm:$0xff]
        %v2932 = vld [vmem:[%s1 + $0x1c0] sm:$0xff]
        %v2933 = vld [vmem:[%s1 + $0x1c8] sm:$0xff]
        %v2934 = vld [vmem:[%s1 + $0x1d0] sm:$0xff]
        %v2935 = vld [vmem:[%s1 + $0x1d8] sm:$0xff]
        %v2936 = vld [vmem:[%s1 + $0x1e0] sm:$0xff]
        %v2937 = vld [vmem:[%s1 + $0x1e8] sm:$0xff]
        %v2938 = vld [vmem:[%s1 + $0x1f0] sm:$0xff]
        %v2939 = vld [vmem:[%s1 + $0x1f8] sm:$0xff]
        %v2940 = vld [vmem:[%s1 + $0x200] sm:$0xff]
        %v2941 = vld [vmem:[%s1 + $0x208] sm:$0xff]
        %v2942 = vld [vmem:[%s1 + $0x210] sm:$0xff]
        %v2943 = vld [vmem:[%s1 + $0x218] sm:$0xff]
        %v2944 = vld [vmem:[%s1 + $0x220] sm:$0xff]
        %v2945 = vld [vmem:[%s1 + $0x228] sm:$0xff]
        %v2946 = vld [vmem:[%s1 + $0x230] sm:$0xff]
        %v2947 = vld [vmem:[%s1 + $0x238] sm:$0xff]
        %v2948 = vld [vmem:[%s1 + $0x240] sm:$0xff]
        %v2949 = vld [vmem:[%s1 + $0x248] sm:$0xff]
        %v2950 = vld [vmem:[%s1 + $0x250] sm:$0xff]
        %v2951 = vld [vmem:[%s1 + $0x258] sm:$0xff]
        %v2952 = vld [vmem:[%s1 + $0x260] sm:$0xff]
        %v2953 = vld [vmem:[%s1 + $0x268] sm:$0xff]
        %v2954 = vld [vmem:[%s1 + $0x270] sm:$0xff]
        %v2955 = vld [vmem:[%s1 + $0x278] sm:$0xff]
        %v2956 = vld [vmem:[%s1 + $0x280] sm:$0xff]
        %v2957 = vld [vmem:[%s1 + $0x288] sm:$0xff]
        %v2958 = vld [vmem:[%s1 + $0x290] sm:$0xff]
        %v2959 = vld [vmem:[%s1 + $0x298] sm:$0xff]
        %v2960 = vld [vmem:[%s1 + $0x2a0] sm:$0xff]
        %v2961 = vld [vmem:[%s1 + $0x2a8] sm:$0xff]
        %v2962 = vld [vmem:[%s1 + $0x2b0] sm:$0xff]
        %v2963 = vld [vmem:[%s1 + $0x2b8] sm:$0xff]
        %v2964 = vld [vmem:[%s1 + $0x2c0] sm:$0xff]
        %v2965 = vld [vmem:[%s1 + $0x2c8] sm:$0xff]
        %v2966 = vld [vmem:[%s1 + $0x2d0] sm:$0xff]
        %v2967 = vld [vmem:[%s1 + $0x2d8] sm:$0xff]
        %v2968 = vld [vmem:[%s1 + $0x2e0] sm:$0xff]
        %v2969 = vld [vmem:[%s1 + $0x2e8] sm:$0xff]
        %v2970 = vld [vmem:[%s1 + $0x2f0] sm:$0xff]
        %v2971 = vld [vmem:[%s1 + $0x2f8] sm:$0xff]
        %v2972 = vld [vmem:[%s1 + $0x300] sm:$0xff]
        %v2973 = vld [vmem:[%s1 + $0x308] sm:$0xff]
        %v2974 = vld [vmem:[%s1 + $0x310] sm:$0xff]
        %v2975 = vld [vmem:[%s1 + $0x318] sm:$0xff]
        %v2976 = vld [vmem:[%s1 + $0x320] sm:$0xff]
        %v2977 = vld [vmem:[%s1 + $0x328] sm:$0xff]
        %v2978 = vld [vmem:[%s1 + $0x330] sm:$0xff]
        %v2979 = vld [vmem:[%s1 + $0x338] sm:$0xff]
        %v2980 = vld [vmem:[%s1 + $0x340] sm:$0xff]
        %v2981 = vld [vmem:[%s1 + $0x348] sm:$0xff]
        %v2982 = vld [vmem:[%s1 + $0x350] sm:$0xff]
        %v2983 = vld [vmem:[%s1 + $0x358] sm:$0xff]
        %v2984 = vld [vmem:[%s1 + $0x360] sm:$0xff]
        %v2985 = vld [vmem:[%s1 + $0x368] sm:$0xff]
        %v2986 = vld [vmem:[%s1 + $0x370] sm:$0xff]
        %v2987 = vld [vmem:[%s1 + $0x378] sm:$0xff]
        %v2988 = vld [vmem:[%s1 + $0x380] sm:$0xff]
        %v2989 = vld [vmem:[%s1 + $0x388] sm:$0xff]
        %v2990 = vld [vmem:[%s1 + $0x390] sm:$0xff]
        %v2991 = vld [vmem:[%s1 + $0x398] sm:$0xff]
        %v2992 = vld [vmem:[%s1 + $0x3a0] sm:$0xff]
        %v2993 = vld [vmem:[%s1 + $0x3a8] sm:$0xff]
        %v2994 = vld [vmem:[%s1 + $0x3b0] sm:$0xff]
        %v2995 = vld [vmem:[%s1 + $0x3b8] sm:$0xff]
        %v2996 = vld [vmem:[%s1 + $0x3c0] sm:$0xff]
        %v2997 = vld [vmem:[%s1 + $0x3c8] sm:$0xff]
        %v2998 = vld [vmem:[%s1 + $0x3d0] sm:$0xff]
        %v2999 = vld [vmem:[%s1 + $0x3d8] sm:$0xff]
        %v3000 = vld [vmem:[%s1 + $0x3e0] sm:$0xff]
        %v3001 = vld [vmem:[%s1 + $0x3e8] sm:$0xff]
        %v3002 = vld [vmem:[%s1 + $0x3f0] sm:$0xff]
        %v3003 = vld [vmem:[%s1 + $0x3f8] sm:$0xff]
        %v3004 = vld [vmem:[%s1 + $0x400] sm:$0xff]
        %v3005 = vld [vmem:[%s1 + $0x408] sm:$0xff]
        %v3006 = vld [vmem:[%s1 + $0x410] sm:$0xff]
        %v3007 = vld [vmem:[%s1 + $0x418] sm:$0xff]
        %v3008 = vld [vmem:[%s1 + $0x420] sm:$0xff]
        %v3009 = vld [vmem:[%s1 + $0x428] sm:$0xff]
        %v3010 = vld [vmem:[%s1 + $0x430] sm:$0xff]
        %v3011 = vld [vmem:[%s1 + $0x438] sm:$0xff]
        %v3012 = vld [vmem:[%s1 + $0x440] sm:$0xff]
        %v3013 = vld [vmem:[%s1 + $0x448] sm:$0xff]
        %v3014 = vld [vmem:[%s1 + $0x450] sm:$0xff]
        %v3015 = vld [vmem:[%s1 + $0x458] sm:$0xff]
        %v3016 = vld [vmem:[%s1 + $0x460] sm:$0xff]
        %v3017 = vld [vmem:[%s1 + $0x468] sm:$0xff]
        %v3018 = vld [vmem:[%s1 + $0x470] sm:$0xff]
        %v3019 = vld [vmem:[%s1 + $0x478] sm:$0xff]
        %v3020 = vld [vmem:[%s1 + $0x480] sm:$0xff]
        %v3021 = vld [vmem:[%s1 + $0x488] sm:$0xff]
        %v3022 = vld [vmem:[%s1 + $0x490] sm:$0xff]
        %v3023 = vld [vmem:[%s1 + $0x498] sm:$0xff]
        %v3024 = vld [vmem:[%s1 + $0x4a0] sm:$0xff]
        %v3025 = vld [vmem:[%s1 + $0x4a8] sm:$0xff]
        %v3026 = vld [vmem:[%s1 + $0x4b0] sm:$0xff]
        %v3027 = vld [vmem:[%s1 + $0x4b8] sm:$0xff]
        %v3028 = vld [vmem:[%s1 + $0x4c0] sm:$0xff]
        %v3029 = vld [vmem:[%s1 + $0x4c8] sm:$0xff]
        %v3030 = vld [vmem:[%s1 + $0x4d0] sm:$0xff]
        %v3031 = vld [vmem:[%s1 + $0x4d8] sm:$0xff]
        %v3032 = vld [vmem:[%s1 + $0x4e0] sm:$0xff]
        %v3033 = vld [vmem:[%s1 + $0x4e8] sm:$0xff]
        %v3034 = vld [vmem:[%s1 + $0x4f0] sm:$0xff]
        %v3035 = vld [vmem:[%s1 + $0x4f8] sm:$0xff]
        %v3036 = vld [vmem:[%s1 + $0x500] sm:$0xff]
        %v3037 = vld [vmem:[%s1 + $0x508] sm:$0xff]
        %v3038 = vld [vmem:[%s1 + $0x510] sm:$0xff]
        %v3039 = vld [vmem:[%s1 + $0x518] sm:$0xff]
        %v3040 = vld [vmem:[%s1 + $0x520] sm:$0xff]
        %v3041 = vld [vmem:[%s1 + $0x528] sm:$0xff]
        %v3042 = vld [vmem:[%s1 + $0x530] sm:$0xff]
        %v3043 = vld [vmem:[%s1 + $0x538] sm:$0xff]
        %v3044 = vld [vmem:[%s1 + $0x540] sm:$0xff]
        %v3045 = vld [vmem:[%s1 + $0x548] sm:$0xff]
        %v3046 = vld [vmem:[%s1 + $0x550] sm:$0xff]
        %v3047 = vld [vmem:[%s1 + $0x558] sm:$0xff]
        %v3048 = vld [vmem:[%s1 + $0x560] sm:$0xff]
        %v3049 = vld [vmem:[%s1 + $0x568] sm:$0xff]
        %v3050 = vld [vmem:[%s1 + $0x570] sm:$0xff]
        %v3051 = vld [vmem:[%s1 + $0x578] sm:$0xff]
        %v3052 = vld [vmem:[%s1 + $0x580] sm:$0xff]
        %v3053 = vld [vmem:[%s1 + $0x588] sm:$0xff]
        %v3054 = vld [vmem:[%s1 + $0x590] sm:$0xff]
        %v3055 = vld [vmem:[%s1 + $0x598] sm:$0xff]
        %v3056 = vld [vmem:[%s1 + $0x5a0] sm:$0xff]
        %v3057 = vld [vmem:[%s1 + $0x5a8] sm:$0xff]
        %v3058 = vld [vmem:[%s1 + $0x5b0] sm:$0xff]
        %v3059 = vld [vmem:[%s1 + $0x5b8] sm:$0xff]
        %v3060 = vld [vmem:[%s1 + $0x5c0] sm:$0xff]
        %v3061 = vld [vmem:[%s1 + $0x5c8] sm:$0xff]
        %v3062 = vld [vmem:[%s1 + $0x5d0] sm:$0xff]
        %v3063 = vld [vmem:[%s1 + $0x5d8] sm:$0xff]
        %v3064 = vld [vmem:[%s1 + $0x5e0] sm:$0xff]
        %v3065 = vld [vmem:[%s1 + $0x5e8] sm:$0xff]
        %v3066 = vld [vmem:[%s1 + $0x5f0] sm:$0xff]
        %v3067 = vld [vmem:[%s1 + $0x5f8] sm:$0xff]
        %v3068 = vld [vmem:[%s1 + $0x600] sm:$0xff]
        %v3069 = vld [vmem:[%s1 + $0x608] sm:$0xff]
        %v3070 = vld [vmem:[%s1 + $0x610] sm:$0xff]
        %v3071 = vld [vmem:[%s1 + $0x618] sm:$0xff]
        %v3072 = vld [vmem:[%s1 + $0x620] sm:$0xff]
        %v3073 = vld [vmem:[%s1 + $0x628] sm:$0xff]
        %v3074 = vld [vmem:[%s1 + $0x630] sm:$0xff]
        %v3075 = vld [vmem:[%s1 + $0x638] sm:$0xff]
        %v3076 = vld [vmem:[%s1 + $0x640] sm:$0xff]
        %v3077 = vld [vmem:[%s1 + $0x648] sm:$0xff]
        %v3078 = vld [vmem:[%s1 + $0x650] sm:$0xff]
        %v3079 = vld [vmem:[%s1 + $0x658] sm:$0xff]
        %v3080 = vld [vmem:[%s1 + $0x660] sm:$0xff]
        %v3081 = vld [vmem:[%s1 + $0x668] sm:$0xff]
        %v3082 = vld [vmem:[%s1 + $0x670] sm:$0xff]
        %v3083 = vld [vmem:[%s1 + $0x678] sm:$0xff]
        %v3084 = vld [vmem:[%s1 + $0x680] sm:$0xff]
        %v3085 = vld [vmem:[%s1 + $0x688] sm:$0xff]
        %v3086 = vld [vmem:[%s1 + $0x690] sm:$0xff]
        %v3087 = vld [vmem:[%s1 + $0x698] sm:$0xff]
        %v3088 = vld [vmem:[%s1 + $0x6a0] sm:$0xff]
        %v3089 = vld [vmem:[%s1 + $0x6a8] sm:$0xff]
        %v3090 = vld [vmem:[%s1 + $0x6b0] sm:$0xff]
        %v3091 = vld [vmem:[%s1 + $0x6b8] sm:$0xff]
        %v3092 = vld [vmem:[%s1 + $0x6c0] sm:$0xff]
        %v3093 = vld [vmem:[%s1 + $0x6c8] sm:$0xff]
        %v3094 = vld [vmem:[%s1 + $0x6d0] sm:$0xff]
        %v3095 = vld [vmem:[%s1 + $0x6d8] sm:$0xff]
        %v3096 = vld [vmem:[%s1 + $0x6e0] sm:$0xff]
        %v3097 = vld [vmem:[%s1 + $0x6e8] sm:$0xff]
        %v3098 = vld [vmem:[%s1 + $0x6f0] sm:$0xff]
        %v3099 = vld [vmem:[%s1 + $0x6f8] sm:$0xff]
        %v3100 = vld [vmem:[%s1 + $0x700] sm:$0xff]
        %v3101 = vld [vmem:[%s1 + $0x708] sm:$0xff]
        %v3102 = vld [vmem:[%s1 + $0x710] sm:$0xff]
        %v3103 = vld [vmem:[%s1 + $0x718] sm:$0xff]
        %v3104 = vld [vmem:[%s1 + $0x720] sm:$0xff]
        %v3105 = vld [vmem:[%s1 + $0x728] sm:$0xff]
        %v3106 = vld [vmem:[%s1 + $0x730] sm:$0xff]
        %v3107 = vld [vmem:[%s1 + $0x738] sm:$0xff]
        %v3108 = vld [vmem:[%s1 + $0x740] sm:$0xff]
        %v3109 = vld [vmem:[%s1 + $0x748] sm:$0xff]
        %v3110 = vld [vmem:[%s1 + $0x750] sm:$0xff]
        %v3111 = vld [vmem:[%s1 + $0x758] sm:$0xff]
        %v3112 = vld [vmem:[%s1 + $0x760] sm:$0xff]
        %v3113 = vld [vmem:[%s1 + $0x768] sm:$0xff]
        %v3114 = vld [vmem:[%s1 + $0x770] sm:$0xff]
        %v3115 = vld [vmem:[%s1 + $0x778] sm:$0xff]
        %v3116 = vld [vmem:[%s1 + $0x780] sm:$0xff]
        %v3117 = vld [vmem:[%s1 + $0x788] sm:$0xff]
        %v3118 = vld [vmem:[%s1 + $0x790] sm:$0xff]
        %v3119 = vld [vmem:[%s1 + $0x798] sm:$0xff]
        %v3120 = vld [vmem:[%s1 + $0x7a0] sm:$0xff]
        %v3121 = vld [vmem:[%s1 + $0x7a8] sm:$0xff]
        %v3122 = vld [vmem:[%s1 + $0x7b0] sm:$0xff]
        %v3123 = vld [vmem:[%s1 + $0x7b8] sm:$0xff]
        %v3124 = vld [vmem:[%s1 + $0x7c0] sm:$0xff]
        %v3125 = vld [vmem:[%s1 + $0x7c8] sm:$0xff]
        %v3126 = vld [vmem:[%s1 + $0x7d0] sm:$0xff]
        %v3127 = vld [vmem:[%s1 + $0x7d8] sm:$0xff]
        %v3128 = vld [vmem:[%s1 + $0x7e0] sm:$0xff]
        %v3129 = vld [vmem:[%s1 + $0x7e8] sm:$0xff]
        %v3130 = vld [vmem:[%s1 + $0x7f0] sm:$0xff]
        %v3131 = vld [vmem:[%s1 + $0x7f8] sm:$0xff]
        %v3132 = vld [vmem:[#allocation2] sm:$0x1]
        %v3134 = vlaneseq
        %v3135 = vshrl.u32 %v3134, 7
        %v3136 = vsub.s32 0, %v3135
        %v3137 = vrot.slane %v3132, %v3136
        %vm3267 = vcmask 1041409
        %v3268 = vsel %vm3267, %v2764, %v2748
        %vm3269 = vcmask 1042434
        %v3270 = vsel %vm3269, %v2780, %v3268
        %vm3271 = vcmask 1043459
        %v3272 = vsel %vm3271, %v2796, %v3270
        %vm3273 = vcmask 1044484
        %v3274 = vsel %vm3273, %v2812, %v3272
        %vm3275 = vcmask 1045509
        %v3276 = vsel %vm3275, %v2828, %v3274
        %vm3277 = vcmask 1046534
        %v3278 = vsel %vm3277, %v2844, %v3276
        %vm3279 = vcmask 1047559
        %v3280 = vsel %vm3279, %v2860, %v3278
        %v3281 = vsel %vm3267, %v2765, %v2749
        %v3282 = vsel %vm3269, %v2781, %v3281
        %v3283 = vsel %vm3271, %v2797, %v3282
        %v3284 = vsel %vm3273, %v2813, %v3283
        %v3285 = vsel %vm3275, %v2829, %v3284
        %v3286 = vsel %vm3277, %v2845, %v3285
        %v3287 = vsel %vm3279, %v2861, %v3286
        %v3288 = vsel %vm3267, %v2766, %v2750
        %v3289 = vsel %vm3269, %v2782, %v3288
        %v3290 = vsel %vm3271, %v2798, %v3289
        %v3291 = vsel %vm3273, %v2814, %v3290
        %v3292 = vsel %vm3275, %v2830, %v3291
        %v3293 = vsel %vm3277, %v2846, %v3292
        %v3294 = vsel %vm3279, %v2862, %v3293
        %v3295 = vsel %vm3267, %v2767, %v2751
        %v3296 = vsel %vm3269, %v2783, %v3295
        %v3297 = vsel %vm3271, %v2799, %v3296
        %v3298 = vsel %vm3273, %v2815, %v3297
        %v3299 = vsel %vm3275, %v2831, %v3298
        %v3300 = vsel %vm3277, %v2847, %v3299
        %v3301 = vsel %vm3279, %v2863, %v3300
        %v3302 = vsel %vm3267, %v2768, %v2752
        %v3303 = vsel %vm3269, %v2784, %v3302
        %v3304 = vsel %vm3271, %v2800, %v3303
        %v3305 = vsel %vm3273, %v2816, %v3304
        %v3306 = vsel %vm3275, %v2832, %v3305
        %v3307 = vsel %vm3277, %v2848, %v3306
        %v3308 = vsel %vm3279, %v2864, %v3307
        %v3309 = vsel %vm3267, %v2769, %v2753
        %v3310 = vsel %vm3269, %v2785, %v3309
        %v3311 = vsel %vm3271, %v2801, %v3310
        %v3312 = vsel %vm3273, %v2817, %v3311
        %v3313 = vsel %vm3275, %v2833, %v3312
        %v3314 = vsel %vm3277, %v2849, %v3313
        %v3315 = vsel %vm3279, %v2865, %v3314
        %v3316 = vsel %vm3267, %v2770, %v2754
        %v3317 = vsel %vm3269, %v2786, %v3316
        %v3318 = vsel %vm3271, %v2802, %v3317
        %v3319 = vsel %vm3273, %v2818, %v3318
        %v3320 = vsel %vm3275, %v2834, %v3319
        %v3321 = vsel %vm3277, %v2850, %v3320
        %v3322 = vsel %vm3279, %v2866, %v3321
        %v3323 = vsel %vm3267, %v2771, %v2755
        %v3324 = vsel %vm3269, %v2787, %v3323
        %v3325 = vsel %vm3271, %v2803, %v3324
        %v3326 = vsel %vm3273, %v2819, %v3325
        %v3327 = vsel %vm3275, %v2835, %v3326
        %v3328 = vsel %vm3277, %v2851, %v3327
        %v3329 = vsel %vm3279, %v2867, %v3328
        %v3330 = vsel %vm3267, %v2772, %v2756
        %v3331 = vsel %vm3269, %v2788, %v3330
        %v3332 = vsel %vm3271, %v2804, %v3331
        %v3333 = vsel %vm3273, %v2820, %v3332
        %v3334 = vsel %vm3275, %v2836, %v3333
        %v3335 = vsel %vm3277, %v2852, %v3334
        %v3336 = vsel %vm3279, %v2868, %v3335
        %v3337 = vsel %vm3267, %v2773, %v2757
        %v3338 = vsel %vm3269, %v2789, %v3337
        %v3339 = vsel %vm3271, %v2805, %v3338
        %v3340 = vsel %vm3273, %v2821, %v3339
        %v3341 = vsel %vm3275, %v2837, %v3340
        %v3342 = vsel %vm3277, %v2853, %v3341
        %v3343 = vsel %vm3279, %v2869, %v3342
        %v3344 = vsel %vm3267, %v2774, %v2758
        %v3345 = vsel %vm3269, %v2790, %v3344
        %v3346 = vsel %vm3271, %v2806, %v3345
        %v3347 = vsel %vm3273, %v2822, %v3346
        %v3348 = vsel %vm3275, %v2838, %v3347
        %v3349 = vsel %vm3277, %v2854, %v3348
        %v3350 = vsel %vm3279, %v2870, %v3349
        %v3351 = vsel %vm3267, %v2775, %v2759
        %v3352 = vsel %vm3269, %v2791, %v3351
        %v3353 = vsel %vm3271, %v2807, %v3352
        %v3354 = vsel %vm3273, %v2823, %v3353
        %v3355 = vsel %vm3275, %v2839, %v3354
        %v3356 = vsel %vm3277, %v2855, %v3355
        %v3357 = vsel %vm3279, %v2871, %v3356
        %v3358 = vsel %vm3267, %v2776, %v2760
        %v3359 = vsel %vm3269, %v2792, %v3358
        %v3360 = vsel %vm3271, %v2808, %v3359
        %v3361 = vsel %vm3273, %v2824, %v3360
        %v3362 = vsel %vm3275, %v2840, %v3361
        %v3363 = vsel %vm3277, %v2856, %v3362
        %v3364 = vsel %vm3279, %v2872, %v3363
        %v3365 = vsel %vm3267, %v2777, %v2761
        %v3366 = vsel %vm3269, %v2793, %v3365
        %v3367 = vsel %vm3271, %v2809, %v3366
        %v3368 = vsel %vm3273, %v2825, %v3367
        %v3369 = vsel %vm3275, %v2841, %v3368
        %v3370 = vsel %vm3277, %v2857, %v3369
        %v3371 = vsel %vm3279, %v2873, %v3370
        %v3372 = vsel %vm3267, %v2778, %v2762
        %v3373 = vsel %vm3269, %v2794, %v3372
        %v3374 = vsel %vm3271, %v2810, %v3373
        %v3375 = vsel %vm3273, %v2826, %v3374
        %v3376 = vsel %vm3275, %v2842, %v3375
        %v3377 = vsel %vm3277, %v2858, %v3376
        %v3378 = vsel %vm3279, %v2874, %v3377
        %v3379 = vsel %vm3267, %v2779, %v2763
        %v3380 = vsel %vm3269, %v2795, %v3379
        %v3381 = vsel %vm3271, %v2811, %v3380
        %v3382 = vsel %vm3273, %v2827, %v3381
        %v3383 = vsel %vm3275, %v2843, %v3382
        %v3384 = vsel %vm3277, %v2859, %v3383
        %v3385 = vsel %vm3279, %v2875, %v3384
        %3402 = vmatprep.subr.mxu0 0.0
        %3403 = vmatpush1.msra.mxu0 %v2876
        %3404 = vmatprep.subr.mxu0 0.0
        %3405 = vmatpush1.msra.mxu0 %v2877
        %3406 = vmatprep.subr.mxu0 0.0
        %3407 = vmatpush1.msra.mxu0 %v2878
        %3408 = vmatprep.subr.mxu0 0.0
        %3409 = vmatpush1.msra.mxu0 %v2879
        %3410 = vmatprep.subr.mxu0 0.0
        %3411 = vmatpush1.msra.mxu0 %v2880
        %3412 = vmatprep.subr.mxu0 0.0
        %3413 = vmatpush1.msra.mxu0 %v2881
        %3414 = vmatprep.subr.mxu0 0.0
        %3415 = vmatpush1.msra.mxu0 %v2882
        %3416 = vmatprep.subr.mxu0 0.0
        %3417 = vmatpush1.msra.mxu0 %v2883
        %3418 = vmatprep.subr.mxu0 0.0
        %3419 = vmatpush1.msra.mxu0 %v2884
        %3420 = vmatprep.subr.mxu0 0.0
        %3421 = vmatpush1.msra.mxu0 %v2885
        %3422 = vmatprep.subr.mxu0 0.0
        %3423 = vmatpush1.msra.mxu0 %v2886
        %3424 = vmatprep.subr.mxu0 0.0
        %3425 = vmatpush1.msra.mxu0 %v2887
        %3426 = vmatprep.subr.mxu0 0.0
        %3427 = vmatpush1.msra.mxu0 %v2888
        %3428 = vmatprep.subr.mxu0 0.0
        %3429 = vmatpush1.msra.mxu0 %v2889
        %3430 = vmatprep.subr.mxu0 0.0
        %3431 = vmatpush1.msra.mxu0 %v2890
        %3432 = vmatprep.subr.mxu0 0.0
        %3433 = vmatpush1.msra.mxu0 %v2891
        %3434 = vmatprep.subr.mxu0 0.0
        %3435 = vmatpush1.msra.mxu0 %v2892
        %3436 = vmatprep.subr.mxu0 0.0
        %3437 = vmatpush1.msra.mxu0 %v2893
        %3438 = vmatprep.subr.mxu0 0.0
        %3439 = vmatpush1.msra.mxu0 %v2894
        %3440 = vmatprep.subr.mxu0 0.0
        %3441 = vmatpush1.msra.mxu0 %v2895
        %3442 = vmatprep.subr.mxu0 0.0
        %3443 = vmatpush1.msra.mxu0 %v2896
        %3444 = vmatprep.subr.mxu0 0.0
        %3445 = vmatpush1.msra.mxu0 %v2897
        %3446 = vmatprep.subr.mxu0 0.0
        %3447 = vmatpush1.msra.mxu0 %v2898
        %3448 = vmatprep.subr.mxu0 0.0
        %3449 = vmatpush1.msra.mxu0 %v2899
        %3450 = vmatprep.subr.mxu0 0.0
        %3451 = vmatpush1.msra.mxu0 %v2900
        %3452 = vmatprep.subr.mxu0 0.0
        %3453 = vmatpush1.msra.mxu0 %v2901
        %3454 = vmatprep.subr.mxu0 0.0
        %3455 = vmatpush1.msra.mxu0 %v2902
        %3456 = vmatprep.subr.mxu0 0.0
        %3457 = vmatpush1.msra.mxu0 %v2903
        %3458 = vmatprep.subr.mxu0 0.0
        %3459 = vmatpush1.msra.mxu0 %v2904
        %3460 = vmatprep.subr.mxu0 0.0
        %3461 = vmatpush1.msra.mxu0 %v2905
        %3462 = vmatprep.subr.mxu0 0.0
        %3463 = vmatpush1.msra.mxu0 %v2906
        %3464 = vmatprep.subr.mxu0 0.0
        %3465 = vmatpush1.msra.mxu0 %v2907
        %3466 = vmatprep.mubr.f32.mxu0 %v3287
        %3467 = vmatmul.mubr.f32.gmra.mrb[0].mxu0 %v3280
        %v3468 = vpop.f32.mrb[0].mxu0
        %v3469 = vadd.f32 %v3137, %v3468
        %v3470 = vpop.f32.mrb[0].mxu0
        %3471 = vdwg.mxu0
        %3472 = vmatprep.subr.mxu0 0.0
        %3473 = vmatpush1.msra.mxu0 %v2908
        %3474 = vmatprep.subr.mxu0 0.0
        %3475 = vmatpush1.msra.mxu0 %v2909
        %3476 = vmatprep.subr.mxu0 0.0
        %3477 = vmatpush1.msra.mxu0 %v2910
        %3478 = vmatprep.subr.mxu0 0.0
        %3479 = vmatpush1.msra.mxu0 %v2911
        %3480 = vmatprep.subr.mxu0 0.0
        %3481 = vmatpush1.msra.mxu0 %v2912
        %3482 = vmatprep.subr.mxu0 0.0
        %3483 = vmatpush1.msra.mxu0 %v2913
        %3484 = vmatprep.subr.mxu0 0.0
        %3485 = vmatpush1.msra.mxu0 %v2914
        %3486 = vmatprep.subr.mxu0 0.0
        %3487 = vmatpush1.msra.mxu0 %v2915
        %3488 = vmatprep.subr.mxu0 0.0
        %3489 = vmatpush1.msra.mxu0 %v2916
        %3490 = vmatprep.subr.mxu0 0.0
        %3491 = vmatpush1.msra.mxu0 %v2917
        %3492 = vmatprep.subr.mxu0 0.0
        %3493 = vmatpush1.msra.mxu0 %v2918
        %3494 = vmatprep.subr.mxu0 0.0
        %3495 = vmatpush1.msra.mxu0 %v2919
        %3496 = vmatprep.subr.mxu0 0.0
        %3497 = vmatpush1.msra.mxu0 %v2920
        %3498 = vmatprep.subr.mxu0 0.0
        %3499 = vmatpush1.msra.mxu0 %v2921
        %3500 = vmatprep.subr.mxu0 0.0
        %3501 = vmatpush1.msra.mxu0 %v2922
        %3502 = vmatprep.subr.mxu0 0.0
        %3503 = vmatpush1.msra.mxu0 %v2923
        %3504 = vmatprep.subr.mxu0 0.0
        %3505 = vmatpush1.msra.mxu0 %v2924
        %3506 = vmatprep.subr.mxu0 0.0
        %3507 = vmatpush1.msra.mxu0 %v2925
        %3508 = vmatprep.subr.mxu0 0.0
        %3509 = vmatpush1.msra.mxu0 %v2926
        %3510 = vmatprep.subr.mxu0 0.0
        %3511 = vmatpush1.msra.mxu0 %v2927
        %3512 = vmatprep.subr.mxu0 0.0
        %3513 = vmatpush1.msra.mxu0 %v2928
        %3514 = vmatprep.subr.mxu0 0.0
        %3515 = vmatpush1.msra.mxu0 %v2929
        %3516 = vmatprep.subr.mxu0 0.0
        %3517 = vmatpush1.msra.mxu0 %v2930
        %3518 = vmatprep.subr.mxu0 0.0
        %3519 = vmatpush1.msra.mxu0 %v2931
        %3520 = vmatprep.subr.mxu0 0.0
        %3521 = vmatpush1.msra.mxu0 %v2932
        %3522 = vmatprep.subr.mxu0 0.0
        %3523 = vmatpush1.msra.mxu0 %v2933
        %3524 = vmatprep.subr.mxu0 0.0
        %3525 = vmatpush1.msra.mxu0 %v2934
        %3526 = vmatprep.subr.mxu0 0.0
        %3527 = vmatpush1.msra.mxu0 %v2935
        %3528 = vmatprep.subr.mxu0 0.0
        %3529 = vmatpush1.msra.mxu0 %v2936
        %3530 = vmatprep.subr.mxu0 0.0
        %3531 = vmatpush1.msra.mxu0 %v2937
        %3532 = vmatprep.subr.mxu0 0.0
        %3533 = vmatpush1.msra.mxu0 %v2938
        %3534 = vmatprep.subr.mxu0 0.0
        %3535 = vmatpush1.msra.mxu0 %v2939
        %3536 = vmatprep.mubr.f32.mxu0 %v3301
        %3537 = vmatmul.mubr.f32.gmra.mrb[0].mxu0 %v3294
        %v3538 = vpop.f32.mrb[0].mxu0
        %v3539 = vadd.f32 %v3469, %v3538
        %v3540 = vpop.f32.mrb[0].mxu0
        %3541 = vdwg.mxu0
        %3542 = vmatprep.subr.mxu0 0.0
        %3543 = vmatpush1.msra.mxu0 %v2940
        %3544 = vmatprep.subr.mxu0 0.0
        %3545 = vmatpush1.msra.mxu0 %v2941
        %3546 = vmatprep.subr.mxu0 0.0
        %3547 = vmatpush1.msra.mxu0 %v2942
        %3548 = vmatprep.subr.mxu0 0.0
        %3549 = vmatpush1.msra.mxu0 %v2943
        %3550 = vmatprep.subr.mxu0 0.0
        %3551 = vmatpush1.msra.mxu0 %v2944
        %3552 = vmatprep.subr.mxu0 0.0
        %3553 = vmatpush1.msra.mxu0 %v2945
        %3554 = vmatprep.subr.mxu0 0.0
        %3555 = vmatpush1.msra.mxu0 %v2946
        %3556 = vmatprep.subr.mxu0 0.0
        %3557 = vmatpush1.msra.mxu0 %v2947
        %3558 = vmatprep.subr.mxu0 0.0
        %3559 = vmatpush1.msra.mxu0 %v2948
        %3560 = vmatprep.subr.mxu0 0.0
        %3561 = vmatpush1.msra.mxu0 %v2949
        %3562 = vmatprep.subr.mxu0 0.0
        %3563 = vmatpush1.msra.mxu0 %v2950
        %3564 = vmatprep.subr.mxu0 0.0
        %3565 = vmatpush1.msra.mxu0 %v2951
        %3566 = vmatprep.subr.mxu0 0.0
        %3567 = vmatpush1.msra.mxu0 %v2952
        %3568 = vmatprep.subr.mxu0 0.0
        %3569 = vmatpush1.msra.mxu0 %v2953
        %3570 = vmatprep.subr.mxu0 0.0
        %3571 = vmatpush1.msra.mxu0 %v2954
        %3572 = vmatprep.subr.mxu0 0.0
        %3573 = vmatpush1.msra.mxu0 %v2955
        %3574 = vmatprep.subr.mxu0 0.0
        %3575 = vmatpush1.msra.mxu0 %v2956
        %3576 = vmatprep.subr.mxu0 0.0
        %3577 = vmatpush1.msra.mxu0 %v2957
        %3578 = vmatprep.subr.mxu0 0.0
        %3579 = vmatpush1.msra.mxu0 %v2958
        %3580 = vmatprep.subr.mxu0 0.0
        %3581 = vmatpush1.msra.mxu0 %v2959
        %3582 = vmatprep.subr.mxu0 0.0
        %3583 = vmatpush1.msra.mxu0 %v2960
        %3584 = vmatprep.subr.mxu0 0.0
        %3585 = vmatpush1.msra.mxu0 %v2961
        %3586 = vmatprep.subr.mxu0 0.0
        %3587 = vmatpush1.msra.mxu0 %v2962
        %3588 = vmatprep.subr.mxu0 0.0
        %3589 = vmatpush1.msra.mxu0 %v2963
        %3590 = vmatprep.subr.mxu0 0.0
        %3591 = vmatpush1.msra.mxu0 %v2964
        %3592 = vmatprep.subr.mxu0 0.0
        %3593 = vmatpush1.msra.mxu0 %v2965
        %3594 = vmatprep.subr.mxu0 0.0
        %3595 = vmatpush1.msra.mxu0 %v2966
        %3596 = vmatprep.subr.mxu0 0.0
        %3597 = vmatpush1.msra.mxu0 %v2967
        %3598 = vmatprep.subr.mxu0 0.0
        %3599 = vmatpush1.msra.mxu0 %v2968
        %3600 = vmatprep.subr.mxu0 0.0
        %3601 = vmatpush1.msra.mxu0 %v2969
        %3602 = vmatprep.subr.mxu0 0.0
        %3603 = vmatpush1.msra.mxu0 %v2970
        %3604 = vmatprep.subr.mxu0 0.0
        %3605 = vmatpush1.msra.mxu0 %v2971
        %3606 = vmatprep.mubr.f32.mxu0 %v3315
        %3607 = vmatmul.mubr.f32.gmra.mrb[0].mxu0 %v3308
        %v3608 = vpop.f32.mrb[0].mxu0
        %v3609 = vadd.f32 %v3539, %v3608
        %v3610 = vpop.f32.mrb[0].mxu0
        %3611 = vdwg.mxu0
        %3612 = vmatprep.subr.mxu0 0.0
        %3613 = vmatpush1.msra.mxu0 %v2972
        %3614 = vmatprep.subr.mxu0 0.0
        %3615 = vmatpush1.msra.mxu0 %v2973
        %3616 = vmatprep.subr.mxu0 0.0
        %3617 = vmatpush1.msra.mxu0 %v2974
        %3618 = vmatprep.subr.mxu0 0.0
        %3619 = vmatpush1.msra.mxu0 %v2975
        %3620 = vmatprep.subr.mxu0 0.0
        %3621 = vmatpush1.msra.mxu0 %v2976
        %3622 = vmatprep.subr.mxu0 0.0
        %3623 = vmatpush1.msra.mxu0 %v2977
        %3624 = vmatprep.subr.mxu0 0.0
        %3625 = vmatpush1.msra.mxu0 %v2978
        %3626 = vmatprep.subr.mxu0 0.0
        %3627 = vmatpush1.msra.mxu0 %v2979
        %3628 = vmatprep.subr.mxu0 0.0
        %3629 = vmatpush1.msra.mxu0 %v2980
        %3630 = vmatprep.subr.mxu0 0.0
        %3631 = vmatpush1.msra.mxu0 %v2981
        %3632 = vmatprep.subr.mxu0 0.0
        %3633 = vmatpush1.msra.mxu0 %v2982
        %3634 = vmatprep.subr.mxu0 0.0
        %3635 = vmatpush1.msra.mxu0 %v2983
        %3636 = vmatprep.subr.mxu0 0.0
        %3637 = vmatpush1.msra.mxu0 %v2984
        %3638 = vmatprep.subr.mxu0 0.0
        %3639 = vmatpush1.msra.mxu0 %v2985
        %3640 = vmatprep.subr.mxu0 0.0
        %3641 = vmatpush1.msra.mxu0 %v2986
        %3642 = vmatprep.subr.mxu0 0.0
        %3643 = vmatpush1.msra.mxu0 %v2987
        %3644 = vmatprep.subr.mxu0 0.0
        %3645 = vmatpush1.msra.mxu0 %v2988
        %3646 = vmatprep.subr.mxu0 0.0
        %3647 = vmatpush1.msra.mxu0 %v2989
        %3648 = vmatprep.subr.mxu0 0.0
        %3649 = vmatpush1.msra.mxu0 %v2990
        %3650 = vmatprep.subr.mxu0 0.0
        %3651 = vmatpush1.msra.mxu0 %v2991
        %3652 = vmatprep.subr.mxu0 0.0
        %3653 = vmatpush1.msra.mxu0 %v2992
        %3654 = vmatprep.subr.mxu0 0.0
        %3655 = vmatpush1.msra.mxu0 %v2993
        %3656 = vmatprep.subr.mxu0 0.0
        %3657 = vmatpush1.msra.mxu0 %v2994
        %3658 = vmatprep.subr.mxu0 0.0
        %3659 = vmatpush1.msra.mxu0 %v2995
        %3660 = vmatprep.subr.mxu0 0.0
        %3661 = vmatpush1.msra.mxu0 %v2996
        %3662 = vmatprep.subr.mxu0 0.0
        %3663 = vmatpush1.msra.mxu0 %v2997
        %3664 = vmatprep.subr.mxu0 0.0
        %3665 = vmatpush1.msra.mxu0 %v2998
        %3666 = vmatprep.subr.mxu0 0.0
        %3667 = vmatpush1.msra.mxu0 %v2999
        %3668 = vmatprep.subr.mxu0 0.0
        %3669 = vmatpush1.msra.mxu0 %v3000
        %3670 = vmatprep.subr.mxu0 0.0
        %3671 = vmatpush1.msra.mxu0 %v3001
        %3672 = vmatprep.subr.mxu0 0.0
        %3673 = vmatpush1.msra.mxu0 %v3002
        %3674 = vmatprep.subr.mxu0 0.0
        %3675 = vmatpush1.msra.mxu0 %v3003
        %3676 = vmatprep.mubr.f32.mxu0 %v3329
        %3677 = vmatmul.mubr.f32.gmra.mrb[0].mxu0 %v3322
        %v3678 = vpop.f32.mrb[0].mxu0
        %v3679 = vadd.f32 %v3609, %v3678
        %v3680 = vpop.f32.mrb[0].mxu0
        %3681 = vdwg.mxu0
        %3682 = vmatprep.subr.mxu0 0.0
        %3683 = vmatpush1.msra.mxu0 %v3004
        %3684 = vmatprep.subr.mxu0 0.0
        %3685 = vmatpush1.msra.mxu0 %v3005
        %3686 = vmatprep.subr.mxu0 0.0
        %3687 = vmatpush1.msra.mxu0 %v3006
        %3688 = vmatprep.subr.mxu0 0.0
        %3689 = vmatpush1.msra.mxu0 %v3007
        %3690 = vmatprep.subr.mxu0 0.0
        %3691 = vmatpush1.msra.mxu0 %v3008
        %3692 = vmatprep.subr.mxu0 0.0
        %3693 = vmatpush1.msra.mxu0 %v3009
        %3694 = vmatprep.subr.mxu0 0.0
        %3695 = vmatpush1.msra.mxu0 %v3010
        %3696 = vmatprep.subr.mxu0 0.0
        %3697 = vmatpush1.msra.mxu0 %v3011
        %3698 = vmatprep.subr.mxu0 0.0
        %3699 = vmatpush1.msra.mxu0 %v3012
        %3700 = vmatprep.subr.mxu0 0.0
        %3701 = vmatpush1.msra.mxu0 %v3013
        %3702 = vmatprep.subr.mxu0 0.0
        %3703 = vmatpush1.msra.mxu0 %v3014
        %3704 = vmatprep.subr.mxu0 0.0
        %3705 = vmatpush1.msra.mxu0 %v3015
        %3706 = vmatprep.subr.mxu0 0.0
        %3707 = vmatpush1.msra.mxu0 %v3016
        %3708 = vmatprep.subr.mxu0 0.0
        %3709 = vmatpush1.msra.mxu0 %v3017
        %3710 = vmatprep.subr.mxu0 0.0
        %3711 = vmatpush1.msra.mxu0 %v3018
        %3712 = vmatprep.subr.mxu0 0.0
        %3713 = vmatpush1.msra.mxu0 %v3019
        %3714 = vmatprep.subr.mxu0 0.0
        %3715 = vmatpush1.msra.mxu0 %v3020
        %3716 = vmatprep.subr.mxu0 0.0
        %3717 = vmatpush1.msra.mxu0 %v3021
        %3718 = vmatprep.subr.mxu0 0.0
        %3719 = vmatpush1.msra.mxu0 %v3022
        %3720 = vmatprep.subr.mxu0 0.0
        %3721 = vmatpush1.msra.mxu0 %v3023
        %3722 = vmatprep.subr.mxu0 0.0
        %3723 = vmatpush1.msra.mxu0 %v3024
        %3724 = vmatprep.subr.mxu0 0.0
        %3725 = vmatpush1.msra.mxu0 %v3025
        %3726 = vmatprep.subr.mxu0 0.0
        %3727 = vmatpush1.msra.mxu0 %v3026
        %3728 = vmatprep.subr.mxu0 0.0
        %3729 = vmatpush1.msra.mxu0 %v3027
        %3730 = vmatprep.subr.mxu0 0.0
        %3731 = vmatpush1.msra.mxu0 %v3028
        %3732 = vmatprep.subr.mxu0 0.0
        %3733 = vmatpush1.msra.mxu0 %v3029
        %3734 = vmatprep.subr.mxu0 0.0
        %3735 = vmatpush1.msra.mxu0 %v3030
        %3736 = vmatprep.subr.mxu0 0.0
        %3737 = vmatpush1.msra.mxu0 %v3031
        %3738 = vmatprep.subr.mxu0 0.0
        %3739 = vmatpush1.msra.mxu0 %v3032
        %3740 = vmatprep.subr.mxu0 0.0
        %3741 = vmatpush1.msra.mxu0 %v3033
        %3742 = vmatprep.subr.mxu0 0.0
        %3743 = vmatpush1.msra.mxu0 %v3034
        %3744 = vmatprep.subr.mxu0 0.0
        %3745 = vmatpush1.msra.mxu0 %v3035
        %3746 = vmatprep.mubr.f32.mxu0 %v3343
        %3747 = vmatmul.mubr.f32.gmra.mrb[0].mxu0 %v3336
        %v3748 = vpop.f32.mrb[0].mxu0
        %v3749 = vadd.f32 %v3679, %v3748
        %v3750 = vpop.f32.mrb[0].mxu0
        %3751 = vdwg.mxu0
        %3752 = vmatprep.subr.mxu0 0.0
        %3753 = vmatpush1.msra.mxu0 %v3036
        %3754 = vmatprep.subr.mxu0 0.0
        %3755 = vmatpush1.msra.mxu0 %v3037
        %3756 = vmatprep.subr.mxu0 0.0
        %3757 = vmatpush1.msra.mxu0 %v3038
        %3758 = vmatprep.subr.mxu0 0.0
        %3759 = vmatpush1.msra.mxu0 %v3039
        %3760 = vmatprep.subr.mxu0 0.0
        %3761 = vmatpush1.msra.mxu0 %v3040
        %3762 = vmatprep.subr.mxu0 0.0
        %3763 = vmatpush1.msra.mxu0 %v3041
        %3764 = vmatprep.subr.mxu0 0.0
        %3765 = vmatpush1.msra.mxu0 %v3042
        %3766 = vmatprep.subr.mxu0 0.0
        %3767 = vmatpush1.msra.mxu0 %v3043
        %3768 = vmatprep.subr.mxu0 0.0
        %3769 = vmatpush1.msra.mxu0 %v3044
        %3770 = vmatprep.subr.mxu0 0.0
        %3771 = vmatpush1.msra.mxu0 %v3045
        %3772 = vmatprep.subr.mxu0 0.0
        %3773 = vmatpush1.msra.mxu0 %v3046
        %3774 = vmatprep.subr.mxu0 0.0
        %3775 = vmatpush1.msra.mxu0 %v3047
        %3776 = vmatprep.subr.mxu0 0.0
        %3777 = vmatpush1.msra.mxu0 %v3048
        %3778 = vmatprep.subr.mxu0 0.0
        %3779 = vmatpush1.msra.mxu0 %v3049
        %3780 = vmatprep.subr.mxu0 0.0
        %3781 = vmatpush1.msra.mxu0 %v3050
        %3782 = vmatprep.subr.mxu0 0.0
        %3783 = vmatpush1.msra.mxu0 %v3051
        %3784 = vmatprep.subr.mxu0 0.0
        %3785 = vmatpush1.msra.mxu0 %v3052
        %3786 = vmatprep.subr.mxu0 0.0
        %3787 = vmatpush1.msra.mxu0 %v3053
        %3788 = vmatprep.subr.mxu0 0.0
        %3789 = vmatpush1.msra.mxu0 %v3054
        %3790 = vmatprep.subr.mxu0 0.0
        %3791 = vmatpush1.msra.mxu0 %v3055
        %3792 = vmatprep.subr.mxu0 0.0
        %3793 = vmatpush1.msra.mxu0 %v3056
        %3794 = vmatprep.subr.mxu0 0.0
        %3795 = vmatpush1.msra.mxu0 %v3057
        %3796 = vmatprep.subr.mxu0 0.0
        %3797 = vmatpush1.msra.mxu0 %v3058
        %3798 = vmatprep.subr.mxu0 0.0
        %3799 = vmatpush1.msra.mxu0 %v3059
        %3800 = vmatprep.subr.mxu0 0.0
        %3801 = vmatpush1.msra.mxu0 %v3060
        %3802 = vmatprep.subr.mxu0 0.0
        %3803 = vmatpush1.msra.mxu0 %v3061
        %3804 = vmatprep.subr.mxu0 0.0
        %3805 = vmatpush1.msra.mxu0 %v3062
        %3806 = vmatprep.subr.mxu0 0.0
        %3807 = vmatpush1.msra.mxu0 %v3063
        %3808 = vmatprep.subr.mxu0 0.0
        %3809 = vmatpush1.msra.mxu0 %v3064
        %3810 = vmatprep.subr.mxu0 0.0
        %3811 = vmatpush1.msra.mxu0 %v3065
        %3812 = vmatprep.subr.mxu0 0.0
        %3813 = vmatpush1.msra.mxu0 %v3066
        %3814 = vmatprep.subr.mxu0 0.0
        %3815 = vmatpush1.msra.mxu0 %v3067
        %3816 = vmatprep.mubr.f32.mxu0 %v3357
        %3817 = vmatmul.mubr.f32.gmra.mrb[0].mxu0 %v3350
        %v3818 = vpop.f32.mrb[0].mxu0
        %v3819 = vadd.f32 %v3749, %v3818
        %v3820 = vpop.f32.mrb[0].mxu0
        %3821 = vdwg.mxu0
        %3822 = vmatprep.subr.mxu0 0.0
        %3823 = vmatpush1.msra.mxu0 %v3068
        %3824 = vmatprep.subr.mxu0 0.0
        %3825 = vmatpush1.msra.mxu0 %v3069
        %3826 = vmatprep.subr.mxu0 0.0
        %3827 = vmatpush1.msra.mxu0 %v3070
        %3828 = vmatprep.subr.mxu0 0.0
        %3829 = vmatpush1.msra.mxu0 %v3071
        %3830 = vmatprep.subr.mxu0 0.0
        %3831 = vmatpush1.msra.mxu0 %v3072
        %3832 = vmatprep.subr.mxu0 0.0
        %3833 = vmatpush1.msra.mxu0 %v3073
        %3834 = vmatprep.subr.mxu0 0.0
        %3835 = vmatpush1.msra.mxu0 %v3074
        %3836 = vmatprep.subr.mxu0 0.0
        %3837 = vmatpush1.msra.mxu0 %v3075
        %3838 = vmatprep.subr.mxu0 0.0
        %3839 = vmatpush1.msra.mxu0 %v3076
        %3840 = vmatprep.subr.mxu0 0.0
        %3841 = vmatpush1.msra.mxu0 %v3077
        %3842 = vmatprep.subr.mxu0 0.0
        %3843 = vmatpush1.msra.mxu0 %v3078
        %3844 = vmatprep.subr.mxu0 0.0
        %3845 = vmatpush1.msra.mxu0 %v3079
        %3846 = vmatprep.subr.mxu0 0.0
        %3847 = vmatpush1.msra.mxu0 %v3080
        %3848 = vmatprep.subr.mxu0 0.0
        %3849 = vmatpush1.msra.mxu0 %v3081
        %3850 = vmatprep.subr.mxu0 0.0
        %3851 = vmatpush1.msra.mxu0 %v3082
        %3852 = vmatprep.subr.mxu0 0.0
        %3853 = vmatpush1.msra.mxu0 %v3083
        %3854 = vmatprep.subr.mxu0 0.0
        %3855 = vmatpush1.msra.mxu0 %v3084
        %3856 = vmatprep.subr.mxu0 0.0
        %3857 = vmatpush1.msra.mxu0 %v3085
        %3858 = vmatprep.subr.mxu0 0.0
        %3859 = vmatpush1.msra.mxu0 %v3086
        %3860 = vmatprep.subr.mxu0 0.0
        %3861 = vmatpush1.msra.mxu0 %v3087
        %3862 = vmatprep.subr.mxu0 0.0
        %3863 = vmatpush1.msra.mxu0 %v3088
        %3864 = vmatprep.subr.mxu0 0.0
        %3865 = vmatpush1.msra.mxu0 %v3089
        %3866 = vmatprep.subr.mxu0 0.0
        %3867 = vmatpush1.msra.mxu0 %v3090
        %3868 = vmatprep.subr.mxu0 0.0
        %3869 = vmatpush1.msra.mxu0 %v3091
        %3870 = vmatprep.subr.mxu0 0.0
        %3871 = vmatpush1.msra.mxu0 %v3092
        %3872 = vmatprep.subr.mxu0 0.0
        %3873 = vmatpush1.msra.mxu0 %v3093
        %3874 = vmatprep.subr.mxu0 0.0
        %3875 = vmatpush1.msra.mxu0 %v3094
        %3876 = vmatprep.subr.mxu0 0.0
        %3877 = vmatpush1.msra.mxu0 %v3095
        %3878 = vmatprep.subr.mxu0 0.0
        %3879 = vmatpush1.msra.mxu0 %v3096
        %3880 = vmatprep.subr.mxu0 0.0
        %3881 = vmatpush1.msra.mxu0 %v3097
        %3882 = vmatprep.subr.mxu0 0.0
        %3883 = vmatpush1.msra.mxu0 %v3098
        %3884 = vmatprep.subr.mxu0 0.0
        %3885 = vmatpush1.msra.mxu0 %v3099
        %3886 = vmatprep.mubr.f32.mxu0 %v3371
        %3887 = vmatmul.mubr.f32.gmra.mrb[0].mxu0 %v3364
        %v3888 = vpop.f32.mrb[0].mxu0
        %v3889 = vadd.f32 %v3819, %v3888
        %v3890 = vpop.f32.mrb[0].mxu0
        %3891 = vdwg.mxu0
        %3892 = vmatprep.subr.mxu0 0.0
        %3893 = vmatpush1.msra.mxu0 %v3100
        %3894 = vmatprep.subr.mxu0 0.0
        %3895 = vmatpush1.msra.mxu0 %v3101
        %3896 = vmatprep.subr.mxu0 0.0
        %3897 = vmatpush1.msra.mxu0 %v3102
        %3898 = vmatprep.subr.mxu0 0.0
        %3899 = vmatpush1.msra.mxu0 %v3103
        %3900 = vmatprep.subr.mxu0 0.0
        %3901 = vmatpush1.msra.mxu0 %v3104
        %3902 = vmatprep.subr.mxu0 0.0
        %3903 = vmatpush1.msra.mxu0 %v3105
        %3904 = vmatprep.subr.mxu0 0.0
        %3905 = vmatpush1.msra.mxu0 %v3106
        %3906 = vmatprep.subr.mxu0 0.0
        %3907 = vmatpush1.msra.mxu0 %v3107
        %3908 = vmatprep.subr.mxu0 0.0
        %3909 = vmatpush1.msra.mxu0 %v3108
        %3910 = vmatprep.subr.mxu0 0.0
        %3911 = vmatpush1.msra.mxu0 %v3109
        %3912 = vmatprep.subr.mxu0 0.0
        %3913 = vmatpush1.msra.mxu0 %v3110
        %3914 = vmatprep.subr.mxu0 0.0
        %3915 = vmatpush1.msra.mxu0 %v3111
        %3916 = vmatprep.subr.mxu0 0.0
        %3917 = vmatpush1.msra.mxu0 %v3112
        %3918 = vmatprep.subr.mxu0 0.0
        %3919 = vmatpush1.msra.mxu0 %v3113
        %3920 = vmatprep.subr.mxu0 0.0
        %3921 = vmatpush1.msra.mxu0 %v3114
        %3922 = vmatprep.subr.mxu0 0.0
        %3923 = vmatpush1.msra.mxu0 %v3115
        %3924 = vmatprep.subr.mxu0 0.0
        %3925 = vmatpush1.msra.mxu0 %v3116
        %3926 = vmatprep.subr.mxu0 0.0
        %3927 = vmatpush1.msra.mxu0 %v3117
        %3928 = vmatprep.subr.mxu0 0.0
        %3929 = vmatpush1.msra.mxu0 %v3118
        %3930 = vmatprep.subr.mxu0 0.0
        %3931 = vmatpush1.msra.mxu0 %v3119
        %3932 = vmatprep.subr.mxu0 0.0
        %3933 = vmatpush1.msra.mxu0 %v3120
        %3934 = vmatprep.subr.mxu0 0.0
        %3935 = vmatpush1.msra.mxu0 %v3121
        %3936 = vmatprep.subr.mxu0 0.0
        %3937 = vmatpush1.msra.mxu0 %v3122
        %3938 = vmatprep.subr.mxu0 0.0
        %3939 = vmatpush1.msra.mxu0 %v3123
        %3940 = vmatprep.subr.mxu0 0.0
        %3941 = vmatpush1.msra.mxu0 %v3124
        %3942 = vmatprep.subr.mxu0 0.0
        %3943 = vmatpush1.msra.mxu0 %v3125
        %3944 = vmatprep.subr.mxu0 0.0
        %3945 = vmatpush1.msra.mxu0 %v3126
        %3946 = vmatprep.subr.mxu0 0.0
        %3947 = vmatpush1.msra.mxu0 %v3127
        %3948 = vmatprep.subr.mxu0 0.0
        %3949 = vmatpush1.msra.mxu0 %v3128
        %3950 = vmatprep.subr.mxu0 0.0
        %3951 = vmatpush1.msra.mxu0 %v3129
        %3952 = vmatprep.subr.mxu0 0.0
        %3953 = vmatpush1.msra.mxu0 %v3130
        %3954 = vmatprep.subr.mxu0 0.0
        %3955 = vmatpush1.msra.mxu0 %v3131
        %3956 = vmatprep.mubr.f32.mxu0 %v3385
        %3957 = vmatmul.mubr.f32.gmra.mrb[0].mxu0 %v3378
        %v3958 = vpop.f32.mrb[0].mxu0
        %v3959 = vadd.f32 %v3889, %v3958
        %v3960 = vpop.f32.mrb[0].mxu0
        %3961 = vdwg.mxu0
        %vm3962 = vcmask 211968
        %3963 = vst.msk [vmem:[%s179] sm:$0xff] %vm3962, %v3959
        %s3964 = sand.u32 %s94, 1
        %s3965 = scalar_lea.sflag [#allocation4], %s3964
        %s3966 = sand.u32 %s94, 1
        %s3967 = smul.addr %s3966, 8
        %s3968 = scalar_lea.vmem [#allocation5], %s3967
        // Predicated region
        $region37: #{tpu_custom_call.1} parent=31 // pred_check
          %p3969 = pneg %p104
        $region38: #{tpu_custom_call.1} parent=31 // pred_check_branch
          %3971 = sbr.rel (%p3969) target = $region40
        $region39: #{tpu_custom_call.1} parent=31 // pred_region
          %s3973 = ssub.s32 128, 128
          %3974 = vsyncadd %s3965, %s3973
          %s3975 = smul.addr %s18, 128
          %s3976 = scalar_lea.hbm %s3, %s3975
          %s3978 = sshll.u32 %s3968, 4
          %s3979 = int_to_ptr.vmem [resolvable:$true] %s3978
          %3981 = dma.vmem_to_hbm [thread:$0]  %s3979, 128, %s3976, %s3965
        $region40: #{tpu_custom_call.1} parent=31 // pred_fallthru
          _
      $region32: #{tpu_custom_call.1} parent=5 // pred_fallthru
        _
      %p3982 = scmp.le.s32.totalorder 2, %s13
      // Predicated region
      $region41: #{tpu_custom_call.1} parent=5 // pred_check
        %p3983 = pneg %p3982
      $region42: #{tpu_custom_call.1} parent=5 // pred_check_branch
        %3985 = sbr.rel (%p3983) target = $region44
      $region43: #{tpu_custom_call.1} parent=5 // pred_region
        %s3986 = ssub.s32 %s13, 2
        // Predicated region
        $region45: #{tpu_custom_call.1} parent=43 // pred_check
          %p3987 = pneg %p110
        $region46: #{tpu_custom_call.1} parent=43 // pred_check_branch
          %3989 = sbr.rel (%p3987) target = $region48
        $region47: #{tpu_custom_call.1} parent=43 // pred_region
          %s3990 = sand.u32 %s95, 1
          %s3991 = scalar_lea.sflag [#allocation4], %s3990
          %s3992 = sand.u32 %s95, 1
          %s3993 = smul.addr %s3992, 8
          %s3994 = scalar_lea.vmem [#allocation5], %s3993
          %3995 = dma.done %s3991, 128
        $region48: #{tpu_custom_call.1} parent=43 // pred_fallthru
          _
      $region44: #{tpu_custom_call.1} parent=5 // pred_fallthru
        _
    $region6: #{tpu_custom_call.1} parent=1 // loop_footer
      %s17 = sadd.s32 1, %s13
    $region7: #{tpu_custom_call.1} parent=1 // loop_footer_branch
      %12 = sbr.rel target = $region3
    $region8: #{tpu_custom_call.1} parent=1 // loop_exit
      _
    %3996 = vsyncpa [#allocation3], 1
    %s3997 = scalar_lea.sflag [#allocation3], 1
    %3998 = vsyncpa %s3997, 1
    %3999 = vsyncpa [#allocation4], 1
    %s4000 = scalar_lea.sflag [#allocation4], 1
    %4001 = vsyncpa %s4000, 1

</llo_original>
